<compile_context>
chip_gen: v7x
topology: tpu7x:2x2x1
jax: 0.10.0
libtpu: 0.0.40
codegen_flags: <defaults>
</compile_context>

<pallas_src>
import functools

import jax
import jax.numpy as jnp
from jax.experimental import pallas as pl
from jax.experimental.pallas import tpu as pltpu


# -----------------------------------------------------------------------------
# Pallas kernels
# -----------------------------------------------------------------------------
def _bigru_steps(xp_ref, h0_ref, whh_ref, bhh_ref, out_ref, *,
                 clip_val, clip_output):
    """Fused bidirectional GRU recurrence.

    xp_ref  : (T, B, 6H)  precomputed x @ W_ih + b_ih, columns laid out as
                          [fwd: r|z|n  (0:3H) , bwd: r|z|n (3H:6H)]
    h0_ref  : (2, B, H)   initial hidden (dir 0 = fwd, 1 = bwd)
    whh_ref : (2H, 6H)    block-diagonal recurrent weight:
                          rows 0:H -> cols 0:3H (fwd W_hh^T),
                          rows H:2H -> cols 3H:6H (bwd W_hh^T)
    bhh_ref : (1, 6H)     [b_hh_fwd | b_hh_bwd]
    out_ref : (T, B, 2H)  out[t, :, :H] = fwd state at t,
                          out[t, :, H:] = bwd state at t
    Returns (h_f_final, h_b_final) as traced values.
    """
    T, B, H6 = xp_ref.shape
    H = h0_ref.shape[-1]
    H3 = 3 * H

    # Hoist loop-invariant loads / broadcasts (JAX does not CSE broadcasts).
    whh = whh_ref[...]                                  # (2H, 6H)
    bhh = jnp.broadcast_to(bhh_ref[...], (B, H6))       # (B, 6H)

    h_f = h0_ref[0]                                     # (B, H)
    h_b = h0_ref[1]                                     # (B, H)

    # Fully unrolled: T is a small static trip count; all slices are static,
    # giving the scheduler full cross-step visibility.
    for t in range(T):
        tb = T - 1 - t

        # Single recurrent matmul for both directions (block-diagonal weight).
        h_cat = jnp.concatenate([h_f, h_b], axis=-1)    # (B, 2H)
        hg = jnp.dot(h_cat, whh,
                     preferred_element_type=jnp.float32) + bhh   # (B, 6H)

        i_f = xp_ref[t]                                 # (B, 6H) -> use cols 0:3H
        i_b = xp_ref[tb]                                # (B, 6H) -> use cols 3H:6H

        # Forward direction (PyTorch GRU cell semantics, gate order r,z,n).
        r_f = jax.nn.sigmoid(i_f[:, 0:H] + hg[:, 0:H])
        z_f = jax.nn.sigmoid(i_f[:, H:2 * H] + hg[:, H:2 * H])
        n_f = jnp.tanh(i_f[:, 2 * H:H3] + r_f * hg[:, 2 * H:H3])
        h_f = (1.0 - z_f) * n_f + z_f * h_f

        # Backward direction, walking time in reverse.
        r_b = jax.nn.sigmoid(i_b[:, H3:H3 + H] + hg[:, H3:H3 + H])
        z_b = jax.nn.sigmoid(i_b[:, H3 + H:H3 + 2 * H] + hg[:, H3 + H:H3 + 2 * H])
        n_b = jnp.tanh(i_b[:, H3 + 2 * H:H6] + r_b * hg[:, H3 + 2 * H:H6])
        h_b = (1.0 - z_b) * n_b + z_b * h_b

        o_f, o_b = h_f, h_b
        if clip_output:                                 # c-encoder output clamp
            o_f = jnp.clip(o_f, -clip_val, clip_val)
            o_b = jnp.clip(o_b, -clip_val, clip_val)

        out_ref[t, :, 0:H] = o_f
        out_ref[tb, :, H:2 * H] = o_b

    return h_f, h_b


def _bigru_head_kernel(xp_ref, h0_ref, whh_ref, bhh_ref, wfc_ref, bfc_ref,
                       out_ref, mean_ref, logvar_ref, *, clip_val):
    """g-encoder: bidirectional GRU + fused g0 head epilogue.

    head: clamp(h_fwd, h_bwd) -> cat -> Linear(2H, 2L) -> split(mean, logvar)
    wfc_ref : (2H, 2L)   bfc_ref : (1, 2L)
    """
    h_f, h_b = _bigru_steps(xp_ref, h0_ref, whh_ref, bhh_ref, out_ref,
                            clip_val=clip_val, clip_output=False)
    h_cat = jnp.clip(jnp.concatenate([h_f, h_b], axis=-1), -clip_val, clip_val)
    theta = jnp.dot(h_cat, wfc_ref[...],
                    preferred_element_type=jnp.float32) + bfc_ref[...]
    L = mean_ref.shape[-1]
    mean_ref[...] = theta[:, 0:L]
    logvar_ref[...] = theta[:, L:2 * L]


def _bigru_kernel(xp_ref, h0_ref, whh_ref, bhh_ref, out_ref, *,
                  clip_val, clip_output):
    """c-encoder: bidirectional GRU with clamp folded into the output writes."""
    _bigru_steps(xp_ref, h0_ref, whh_ref, bhh_ref, out_ref,
                 clip_val=clip_val, clip_output=clip_output)


# -----------------------------------------------------------------------------
# Weight packing (done ONCE, outside the jitted forward)
# -----------------------------------------------------------------------------
def pack_bigru_params(p):
    """Pack PyTorch-layout bidirectional GRU params.

    p: w_ih_{f,b}: (3H, I)   w_hh_{f,b}: (3H, H)   b_ih_{f,b}, b_hh_{f,b}: (3H,)
    Returns:
      wih : (I, 6H)   cols [fwd r|z|n , bwd r|z|n]
      bih : (6H,)
      whh : (2H, 6H)  block-diagonal (fwd block, bwd block)
      bhh : (1, 6H)
    """
    H = p["w_hh_f"].shape[1]
    wih = jnp.concatenate([p["w_ih_f"].T, p["w_ih_b"].T], axis=1)
    bih = jnp.concatenate([p["b_ih_f"], p["b_ih_b"]])
    z = jnp.zeros((H, 3 * H), jnp.float32)
    whh = jnp.concatenate(
        [jnp.concatenate([p["w_hh_f"].T, z], axis=1),
         jnp.concatenate([z, p["w_hh_b"].T], axis=1)], axis=0)
    bhh = jnp.concatenate([p["b_hh_f"], p["b_hh_b"]]).reshape(1, -1)
    return {"wih": wih, "bih": bih, "whh": whh, "bhh": bhh}


def pack_head_params(fc_w, fc_b):
    """fc_w: (2L, 2H) PyTorch Linear weight, fc_b: (2L,)."""
    return {"w": fc_w.T, "b": fc_b.reshape(1, -1)}


# -----------------------------------------------------------------------------
# JAX glue / wrappers
# -----------------------------------------------------------------------------
_VMEM = pl.BlockSpec(memory_space=pltpu.MemorySpace.VMEM)


def _input_projection(x, gru_p):
    """One big non-recurrent matmul: (T*B, I) @ (I, 6H) + b_ih."""
    return jnp.einsum("tbi,ih->tbh", x, gru_p["wih"]) + gru_p["bih"]


def lfads_encoder_forward(params, x, hidden, *, g_latent_size,
                          c_encoder_size, clip_val):
    """Mirrors LFADS_Encoder.forward (dropout=0 -> identity)."""
    g_init, c_init = hidden
    T, B, _ = x.shape
    Hg = g_init.shape[-1]
    L = g_latent_size

    gp = params["gru_g"]
    xp_g = _input_projection(x, gp)                     # (T, B, 6Hg)

    out_g, g0_mean, g0_logvar = pl.pallas_call(
        functools.partial(_bigru_head_kernel, clip_val=clip_val),
        out_shape=(jax.ShapeDtypeStruct((T, B, 2 * Hg), jnp.float32),
                   jax.ShapeDtypeStruct((B, L), jnp.float32),
                   jax.ShapeDtypeStruct((B, L), jnp.float32)),
        in_specs=[_VMEM] * 6,
        out_specs=(_VMEM, _VMEM, _VMEM),
    )(xp_g, g_init, gp["whh"], gp["bhh"], params["fc"]["w"], params["fc"]["b"])

    if c_encoder_size > 0:
        cp = params["gru_c"]
        Hc = c_init.shape[-1]
        xp_c = _input_projection(x, cp)                 # (T, B, 6Hc)
        out_c = pl.pallas_call(
            functools.partial(_bigru_kernel, clip_val=clip_val,
                              clip_output=True),
            out_shape=jax.ShapeDtypeStruct((T, B, 2 * Hc), jnp.float32),
            in_specs=[_VMEM] * 4,
            out_specs=_VMEM,
        )(xp_c, c_init, cp["whh"], cp["bhh"])
        return g0_mean, g0_logvar, out_g, out_c
    return g0_mean, g0_logvar, out_g, None


# -----------------------------------------------------------------------------
# Deterministic parameter construction (PyTorch-style uniform init)
# -----------------------------------------------------------------------------
def _uniform(key, shape, bound):
    return jax.random.uniform(key, shape, jnp.float32, -bound, bound)


def make_gru_params(key, input_size, hidden_size):
    b = 1.0 / jnp.sqrt(jnp.float32(hidden_size))
    ks = jax.random.split(key, 8)
    return {
        "w_ih_f": _uniform(ks[0], (3 * hidden_size, input_size), b),
        "w_hh_f": _uniform(ks[1], (3 * hidden_size, hidden_size), b),
        "b_ih_f": _uniform(ks[2], (3 * hidden_size,), b),
        "b_hh_f": _uniform(ks[3], (3 * hidden_size,), b),
        "w_ih_b": _uniform(ks[4], (3 * hidden_size, input_size), b),
        "w_hh_b": _uniform(ks[5], (3 * hidden_size, hidden_size), b),
        "b_ih_b": _uniform(ks[6], (3 * hidden_size,), b),
        "b_hh_b": _uniform(ks[7], (3 * hidden_size,), b),
    }


def make_raw_params(key, input_size, g_encoder_size, g_latent_size,
                    c_encoder_size):
    k_g, k_c, k_w, k_b = jax.random.split(key, 4)
    bound = 1.0 / jnp.sqrt(jnp.float32(2 * g_encoder_size))
    raw = {
        "gru_g": make_gru_params(k_g, input_size, g_encoder_size),
        "fc_w": _uniform(k_w, (2 * g_latent_size, 2 * g_encoder_size), bound),
        "fc_b": _uniform(k_b, (2 * g_latent_size,), bound),
    }
    if c_encoder_size > 0:
        raw["gru_c"] = make_gru_params(k_c, input_size, c_encoder_size)
    return raw


def pack_params(raw, c_encoder_size):
    packed = {
        "gru_g": pack_bigru_params(raw["gru_g"]),
        "fc": pack_head_params(raw["fc_w"], raw["fc_b"]),
    }
    if c_encoder_size > 0:
        packed["gru_c"] = pack_bigru_params(raw["gru_c"])
    return packed


# -----------------------------------------------------------------------------
if __name__ == "__main__":
    # Small LFADS-style sizes.
    T, B = 10, 4
    input_size = 16
    g_encoder_size = 32
    g_latent_size = 16
    c_encoder_size = 8
    clip_val = 5.0

    key = jax.random.PRNGKey(0)
    k_p, k_x, k_hg, k_hc = jax.random.split(key, 4)

    raw_params = make_raw_params(k_p, input_size, g_encoder_size,
                                 g_latent_size, c_encoder_size)
    # Pack / pre-transpose weights once, outside the jitted forward.
    params = pack_params(raw_params, c_encoder_size)

    x = jax.random.normal(k_x, (T, B, input_size), jnp.float32)
    hidden = (jax.random.normal(k_hg, (2, B, g_encoder_size), jnp.float32),
              jax.random.normal(k_hc, (2, B, c_encoder_size), jnp.float32))

    fwd = jax.jit(functools.partial(
        lfads_encoder_forward,
        g_latent_size=g_latent_size,
        c_encoder_size=c_encoder_size,
        clip_val=clip_val))

    g0_mean, g0_logvar, out_g, out_c = fwd(params, x, hidden)
    jax.block_until_ready((g0_mean, g0_logvar, out_g, out_c))

    assert g0_mean.shape == (B, g_latent_size)
    assert g0_logvar.shape == (B, g_latent_size)
    assert out_g.shape == (T, B, 2 * g_encoder_size)
    assert out_c.shape == (T, B, 2 * c_encoder_size)
    assert bool(jnp.all(jnp.isfinite(g0_mean)))
    assert bool(jnp.all(jnp.isfinite(out_g)))
    assert bool(jnp.all(jnp.abs(out_c) <= clip_val + 1e-6))

    print("KERNEL_OK")
</pallas_src>

<mosaic_0001>
module attributes {stable_mosaic.version = 11 : i64} {
  func.func @_bigru_head_kernel(%arg0: memref<10x4x192xf32, #tpu.memory_space<vmem>>, %arg1: memref<2x4x32xf32, #tpu.memory_space<vmem>>, %arg2: memref<64x192xf32, #tpu.memory_space<vmem>>, %arg3: memref<1x192xf32, #tpu.memory_space<vmem>>, %arg4: memref<64x32xf32, #tpu.memory_space<vmem>>, %arg5: memref<1x32xf32, #tpu.memory_space<vmem>>, %arg6: memref<10x4x64xf32, #tpu.memory_space<vmem>>, %arg7: memref<4x16xf32, #tpu.memory_space<vmem>>, %arg8: memref<4x16xf32, #tpu.memory_space<vmem>>) attributes {dimension_semantics = [], scalar_prefetch = 0 : i64, scratch_operands = 0 : i64, tpu.core_type = #tpu.core_type<tc>} {
    %c0 = arith.constant 0 : index
    %c0_0 = arith.constant 0 : index
    %0 = vector.load %arg2[%c0, %c0_0] : memref<64x192xf32, #tpu.memory_space<vmem>>, vector<64x192xf32>
    %c0_1 = arith.constant 0 : index
    %c0_2 = arith.constant 0 : index
    %1 = vector.load %arg3[%c0_1, %c0_2] : memref<1x192xf32, #tpu.memory_space<vmem>>, vector<1x192xf32>
    %2 = vector.shape_cast %1 : vector<1x192xf32> to vector<1x192xf32>
    %3 = vector.broadcast %2 : vector<1x192xf32> to vector<4x192xf32>
    %c0_3 = arith.constant 0 : index
    %c0_4 = arith.constant 0 : index
    %c0_5 = arith.constant 0 : index
    %4 = vector.load %arg1[%c0_3, %c0_4, %c0_5] : memref<2x4x32xf32, #tpu.memory_space<vmem>>, vector<1x4x32xf32>
    %5 = vector.shape_cast %4 : vector<1x4x32xf32> to vector<4x32xf32>
    %c1 = arith.constant 1 : index
    %c0_6 = arith.constant 0 : index
    %c0_7 = arith.constant 0 : index
    %6 = vector.load %arg1[%c1, %c0_6, %c0_7] : memref<2x4x32xf32, #tpu.memory_space<vmem>>, vector<1x4x32xf32>
    %7 = vector.shape_cast %6 : vector<1x4x32xf32> to vector<4x32xf32>
    %8 = tpu.concatenate %5, %7 in 1 : vector<4x32xf32>, vector<4x32xf32> -> vector<4x64xf32>
    %cst = arith.constant dense<0.000000e+00> : vector<4x192xf32>
    %9 = tpu.matmul %8, %0, %cst {dimension_numbers = #tpu.dot_dimension_numbers<[1], [0], [0], [1], [0, 0, 1, 1], [], []>} : vector<4x64xf32>, vector<64x192xf32>, vector<4x192xf32> -> vector<4x192xf32>
    %10 = arith.addf %9, %3 : vector<4x192xf32>
    %c0_8 = arith.constant 0 : index
    %c0_9 = arith.constant 0 : index
    %c0_10 = arith.constant 0 : index
    %11 = vector.load %arg0[%c0_8, %c0_9, %c0_10] : memref<10x4x192xf32, #tpu.memory_space<vmem>>, vector<1x4x192xf32>
    %12 = vector.shape_cast %11 : vector<1x4x192xf32> to vector<4x192xf32>
    %c9 = arith.constant 9 : index
    %c0_11 = arith.constant 0 : index
    %c0_12 = arith.constant 0 : index
    %13 = vector.load %arg0[%c9, %c0_11, %c0_12] : memref<10x4x192xf32, #tpu.memory_space<vmem>>, vector<1x4x192xf32>
    %14 = vector.shape_cast %13 : vector<1x4x192xf32> to vector<4x192xf32>
    %15 = vector.extract_strided_slice %12 {offsets = [0, 0], sizes = [4, 32], strides = [1, 1]} : vector<4x192xf32> to vector<4x32xf32>
    %16 = vector.extract_strided_slice %10 {offsets = [0, 0], sizes = [4, 32], strides = [1, 1]} : vector<4x192xf32> to vector<4x32xf32>
    %17 = arith.addf %15, %16 : vector<4x32xf32>
    %18 = arith.negf %17 : vector<4x32xf32>
    %19 = math.exp %18 : vector<4x32xf32>
    %cst_13 = arith.constant 1.000000e+00 : f32
    %20 = vector.broadcast %cst_13 : f32 to vector<4x32xf32>
    %21 = arith.addf %20, %19 : vector<4x32xf32>
    %22 = arith.divf %20, %21 : vector<4x32xf32>
    %23 = vector.extract_strided_slice %12 {offsets = [0, 32], sizes = [4, 32], strides = [1, 1]} : vector<4x192xf32> to vector<4x32xf32>
    %24 = vector.extract_strided_slice %10 {offsets = [0, 32], sizes = [4, 32], strides = [1, 1]} : vector<4x192xf32> to vector<4x32xf32>
    %25 = arith.addf %23, %24 : vector<4x32xf32>
    %26 = arith.negf %25 : vector<4x32xf32>
    %27 = math.exp %26 : vector<4x32xf32>
    %cst_14 = arith.constant 1.000000e+00 : f32
    %28 = vector.broadcast %cst_14 : f32 to vector<4x32xf32>
    %29 = arith.addf %28, %27 : vector<4x32xf32>
    %30 = arith.divf %28, %29 : vector<4x32xf32>
    %31 = vector.extract_strided_slice %12 {offsets = [0, 64], sizes = [4, 32], strides = [1, 1]} : vector<4x192xf32> to vector<4x32xf32>
    %32 = vector.extract_strided_slice %10 {offsets = [0, 64], sizes = [4, 32], strides = [1, 1]} : vector<4x192xf32> to vector<4x32xf32>
    %33 = arith.mulf %22, %32 : vector<4x32xf32>
    %34 = arith.addf %31, %33 : vector<4x32xf32>
    %35 = math.tanh %34 : vector<4x32xf32>
    %cst_15 = arith.constant 1.000000e+00 : f32
    %36 = vector.broadcast %cst_15 : f32 to vector<4x32xf32>
    %37 = arith.subf %36, %30 : vector<4x32xf32>
    %38 = arith.mulf %37, %35 : vector<4x32xf32>
    %39 = arith.mulf %30, %5 : vector<4x32xf32>
    %40 = arith.addf %38, %39 : vector<4x32xf32>
    %41 = vector.extract_strided_slice %14 {offsets = [0, 96], sizes = [4, 32], strides = [1, 1]} : vector<4x192xf32> to vector<4x32xf32>
    %42 = vector.extract_strided_slice %10 {offsets = [0, 96], sizes = [4, 32], strides = [1, 1]} : vector<4x192xf32> to vector<4x32xf32>
    %43 = arith.addf %41, %42 : vector<4x32xf32>
    %44 = arith.negf %43 : vector<4x32xf32>
    %45 = math.exp %44 : vector<4x32xf32>
    %cst_16 = arith.constant 1.000000e+00 : f32
    %46 = vector.broadcast %cst_16 : f32 to vector<4x32xf32>
    %47 = arith.addf %46, %45 : vector<4x32xf32>
    %48 = arith.divf %46, %47 : vector<4x32xf32>
    %49 = vector.extract_strided_slice %14 {offsets = [0, 128], sizes = [4, 32], strides = [1, 1]} : vector<4x192xf32> to vector<4x32xf32>
    %50 = vector.extract_strided_slice %10 {offsets = [0, 128], sizes = [4, 32], strides = [1, 1]} : vector<4x192xf32> to vector<4x32xf32>
    %51 = arith.addf %49, %50 : vector<4x32xf32>
    %52 = arith.negf %51 : vector<4x32xf32>
    %53 = math.exp %52 : vector<4x32xf32>
    %cst_17 = arith.constant 1.000000e+00 : f32
    %54 = vector.broadcast %cst_17 : f32 to vector<4x32xf32>
    %55 = arith.addf %54, %53 : vector<4x32xf32>
    %56 = arith.divf %54, %55 : vector<4x32xf32>
    %57 = vector.extract_strided_slice %14 {offsets = [0, 160], sizes = [4, 32], strides = [1, 1]} : vector<4x192xf32> to vector<4x32xf32>
    %58 = vector.extract_strided_slice %10 {offsets = [0, 160], sizes = [4, 32], strides = [1, 1]} : vector<4x192xf32> to vector<4x32xf32>
    %59 = arith.mulf %48, %58 : vector<4x32xf32>
    %60 = arith.addf %57, %59 : vector<4x32xf32>
    %61 = math.tanh %60 : vector<4x32xf32>
    %cst_18 = arith.constant 1.000000e+00 : f32
    %62 = vector.broadcast %cst_18 : f32 to vector<4x32xf32>
    %63 = arith.subf %62, %56 : vector<4x32xf32>
    %64 = arith.mulf %63, %61 : vector<4x32xf32>
    %65 = arith.mulf %56, %7 : vector<4x32xf32>
    %66 = arith.addf %64, %65 : vector<4x32xf32>
    %c0_19 = arith.constant 0 : index
    %c0_20 = arith.constant 0 : index
    %c0_21 = arith.constant 0 : index
    %67 = vector.load %arg6[%c0_19, %c0_20, %c0_21] : memref<10x4x64xf32, #tpu.memory_space<vmem>>, vector<1x4x32xf32>
    %68 = vector.shape_cast %67 : vector<1x4x32xf32> to vector<4x32xf32>
    %69 = vector.shape_cast %40 : vector<4x32xf32> to vector<1x4x32xf32>
    tpu.vector_store %arg6[%c0_19, %c0_20, %c0_21], %69 {strides = array<i32>} : memref<10x4x64xf32, #tpu.memory_space<vmem>>, vector<1x4x32xf32>,
    %c9_22 = arith.constant 9 : index
    %c0_23 = arith.constant 0 : index
    %c32 = arith.constant 32 : index
    %70 = vector.load %arg6[%c9_22, %c0_23, %c32] : memref<10x4x64xf32, #tpu.memory_space<vmem>>, vector<1x4x32xf32>
    %71 = vector.shape_cast %70 : vector<1x4x32xf32> to vector<4x32xf32>
    %72 = vector.shape_cast %66 : vector<4x32xf32> to vector<1x4x32xf32>
    tpu.vector_store %arg6[%c9_22, %c0_23, %c32], %72 {strides = array<i32>} : memref<10x4x64xf32, #tpu.memory_space<vmem>>, vector<1x4x32xf32>,
    %73 = tpu.concatenate %40, %66 in 1 : vector<4x32xf32>, vector<4x32xf32> -> vector<4x64xf32>
    %cst_24 = arith.constant dense<0.000000e+00> : vector<4x192xf32>
    %74 = tpu.matmul %73, %0, %cst_24 {dimension_numbers = #tpu.dot_dimension_numbers<[1], [0], [0], [1], [0, 0, 1, 1], [], []>} : vector<4x64xf32>, vector<64x192xf32>, vector<4x192xf32> -> vector<4x192xf32>
    %75 = arith.addf %74, %3 : vector<4x192xf32>
    %c1_25 = arith.constant 1 : index
    %c0_26 = arith.constant 0 : index
    %c0_27 = arith.constant 0 : index
    %76 = vector.load %arg0[%c1_25, %c0_26, %c0_27] : memref<10x4x192xf32, #tpu.memory_space<vmem>>, vector<1x4x192xf32>
    %77 = vector.shape_cast %76 : vector<1x4x192xf32> to vector<4x192xf32>
    %c8 = arith.constant 8 : index
    %c0_28 = arith.constant 0 : index
    %c0_29 = arith.constant 0 : index
    %78 = vector.load %arg0[%c8, %c0_28, %c0_29] : memref<10x4x192xf32, #tpu.memory_space<vmem>>, vector<1x4x192xf32>
    %79 = vector.shape_cast %78 : vector<1x4x192xf32> to vector<4x192xf32>
    %80 = vector.extract_strided_slice %77 {offsets = [0, 0], sizes = [4, 32], strides = [1, 1]} : vector<4x192xf32> to vector<4x32xf32>
    %81 = vector.extract_strided_slice %75 {offsets = [0, 0], sizes = [4, 32], strides = [1, 1]} : vector<4x192xf32> to vector<4x32xf32>
    %82 = arith.addf %80, %81 : vector<4x32xf32>
    %83 = arith.negf %82 : vector<4x32xf32>
    %84 = math.exp %83 : vector<4x32xf32>
    %cst_30 = arith.constant 1.000000e+00 : f32
    %85 = vector.broadcast %cst_30 : f32 to vector<4x32xf32>
    %86 = arith.addf %85, %84 : vector<4x32xf32>
    %87 = arith.divf %85, %86 : vector<4x32xf32>
    %88 = vector.extract_strided_slice %77 {offsets = [0, 32], sizes = [4, 32], strides = [1, 1]} : vector<4x192xf32> to vector<4x32xf32>
    %89 = vector.extract_strided_slice %75 {offsets = [0, 32], sizes = [4, 32], strides = [1, 1]} : vector<4x192xf32> to vector<4x32xf32>
    %90 = arith.addf %88, %89 : vector<4x32xf32>
    %91 = arith.negf %90 : vector<4x32xf32>
    %92 = math.exp %91 : vector<4x32xf32>
    %cst_31 = arith.constant 1.000000e+00 : f32
    %93 = vector.broadcast %cst_31 : f32 to vector<4x32xf32>
    %94 = arith.addf %93, %92 : vector<4x32xf32>
    %95 = arith.divf %93, %94 : vector<4x32xf32>
    %96 = vector.extract_strided_slice %77 {offsets = [0, 64], sizes = [4, 32], strides = [1, 1]} : vector<4x192xf32> to vector<4x32xf32>
    %97 = vector.extract_strided_slice %75 {offsets = [0, 64], sizes = [4, 32], strides = [1, 1]} : vector<4x192xf32> to vector<4x32xf32>
    %98 = arith.mulf %87, %97 : vector<4x32xf32>
    %99 = arith.addf %96, %98 : vector<4x32xf32>
    %100 = math.tanh %99 : vector<4x32xf32>
    %cst_32 = arith.constant 1.000000e+00 : f32
    %101 = vector.broadcast %cst_32 : f32 to vector<4x32xf32>
    %102 = arith.subf %101, %95 : vector<4x32xf32>
    %103 = arith.mulf %102, %100 : vector<4x32xf32>
    %104 = arith.mulf %95, %40 : vector<4x32xf32>
    %105 = arith.addf %103, %104 : vector<4x32xf32>
    %106 = vector.extract_strided_slice %79 {offsets = [0, 96], sizes = [4, 32], strides = [1, 1]} : vector<4x192xf32> to vector<4x32xf32>
    %107 = vector.extract_strided_slice %75 {offsets = [0, 96], sizes = [4, 32], strides = [1, 1]} : vector<4x192xf32> to vector<4x32xf32>
    %108 = arith.addf %106, %107 : vector<4x32xf32>
    %109 = arith.negf %108 : vector<4x32xf32>
    %110 = math.exp %109 : vector<4x32xf32>
    %cst_33 = arith.constant 1.000000e+00 : f32
    %111 = vector.broadcast %cst_33 : f32 to vector<4x32xf32>
    %112 = arith.addf %111, %110 : vector<4x32xf32>
    %113 = arith.divf %111, %112 : vector<4x32xf32>
    %114 = vector.extract_strided_slice %79 {offsets = [0, 128], sizes = [4, 32], strides = [1, 1]} : vector<4x192xf32> to vector<4x32xf32>
    %115 = vector.extract_strided_slice %75 {offsets = [0, 128], sizes = [4, 32], strides = [1, 1]} : vector<4x192xf32> to vector<4x32xf32>
    %116 = arith.addf %114, %115 : vector<4x32xf32>
    %117 = arith.negf %116 : vector<4x32xf32>
    %118 = math.exp %117 : vector<4x32xf32>
    %cst_34 = arith.constant 1.000000e+00 : f32
    %119 = vector.broadcast %cst_34 : f32 to vector<4x32xf32>
    %120 = arith.addf %119, %118 : vector<4x32xf32>
    %121 = arith.divf %119, %120 : vector<4x32xf32>
    %122 = vector.extract_strided_slice %79 {offsets = [0, 160], sizes = [4, 32], strides = [1, 1]} : vector<4x192xf32> to vector<4x32xf32>
    %123 = vector.extract_strided_slice %75 {offsets = [0, 160], sizes = [4, 32], strides = [1, 1]} : vector<4x192xf32> to vector<4x32xf32>
    %124 = arith.mulf %113, %123 : vector<4x32xf32>
    %125 = arith.addf %122, %124 : vector<4x32xf32>
    %126 = math.tanh %125 : vector<4x32xf32>
    %cst_35 = arith.constant 1.000000e+00 : f32
    %127 = vector.broadcast %cst_35 : f32 to vector<4x32xf32>
    %128 = arith.subf %127, %121 : vector<4x32xf32>
    %129 = arith.mulf %128, %126 : vector<4x32xf32>
    %130 = arith.mulf %121, %66 : vector<4x32xf32>
    %131 = arith.addf %129, %130 : vector<4x32xf32>
    %c1_36 = arith.constant 1 : index
    %c0_37 = arith.constant 0 : index
    %c0_38 = arith.constant 0 : index
    %132 = vector.load %arg6[%c1_36, %c0_37, %c0_38] : memref<10x4x64xf32, #tpu.memory_space<vmem>>, vector<1x4x32xf32>
    %133 = vector.shape_cast %132 : vector<1x4x32xf32> to vector<4x32xf32>
    %134 = vector.shape_cast %105 : vector<4x32xf32> to vector<1x4x32xf32>
    tpu.vector_store %arg6[%c1_36, %c0_37, %c0_38], %134 {strides = array<i32>} : memref<10x4x64xf32, #tpu.memory_space<vmem>>, vector<1x4x32xf32>,
    %c8_39 = arith.constant 8 : index
    %c0_40 = arith.constant 0 : index
    %c32_41 = arith.constant 32 : index
    %135 = vector.load %arg6[%c8_39, %c0_40, %c32_41] : memref<10x4x64xf32, #tpu.memory_space<vmem>>, vector<1x4x32xf32>
    %136 = vector.shape_cast %135 : vector<1x4x32xf32> to vector<4x32xf32>
    %137 = vector.shape_cast %131 : vector<4x32xf32> to vector<1x4x32xf32>
    tpu.vector_store %arg6[%c8_39, %c0_40, %c32_41], %137 {strides = array<i32>} : memref<10x4x64xf32, #tpu.memory_space<vmem>>, vector<1x4x32xf32>,
    %138 = tpu.concatenate %105, %131 in 1 : vector<4x32xf32>, vector<4x32xf32> -> vector<4x64xf32>
    %cst_42 = arith.constant dense<0.000000e+00> : vector<4x192xf32>
    %139 = tpu.matmul %138, %0, %cst_42 {dimension_numbers = #tpu.dot_dimension_numbers<[1], [0], [0], [1], [0, 0, 1, 1], [], []>} : vector<4x64xf32>, vector<64x192xf32>, vector<4x192xf32> -> vector<4x192xf32>
    %140 = arith.addf %139, %3 : vector<4x192xf32>
    %c2 = arith.constant 2 : index
    %c0_43 = arith.constant 0 : index
    %c0_44 = arith.constant 0 : index
    %141 = vector.load %arg0[%c2, %c0_43, %c0_44] : memref<10x4x192xf32, #tpu.memory_space<vmem>>, vector<1x4x192xf32>
    %142 = vector.shape_cast %141 : vector<1x4x192xf32> to vector<4x192xf32>
    %c7 = arith.constant 7 : index
    %c0_45 = arith.constant 0 : index
    %c0_46 = arith.constant 0 : index
    %143 = vector.load %arg0[%c7, %c0_45, %c0_46] : memref<10x4x192xf32, #tpu.memory_space<vmem>>, vector<1x4x192xf32>
    %144 = vector.shape_cast %143 : vector<1x4x192xf32> to vector<4x192xf32>
    %145 = vector.extract_strided_slice %142 {offsets = [0, 0], sizes = [4, 32], strides = [1, 1]} : vector<4x192xf32> to vector<4x32xf32>
    %146 = vector.extract_strided_slice %140 {offsets = [0, 0], sizes = [4, 32], strides = [1, 1]} : vector<4x192xf32> to vector<4x32xf32>
    %147 = arith.addf %145, %146 : vector<4x32xf32>
    %148 = arith.negf %147 : vector<4x32xf32>
    %149 = math.exp %148 : vector<4x32xf32>
    %cst_47 = arith.constant 1.000000e+00 : f32
    %150 = vector.broadcast %cst_47 : f32 to vector<4x32xf32>
    %151 = arith.addf %150, %149 : vector<4x32xf32>
    %152 = arith.divf %150, %151 : vector<4x32xf32>
    %153 = vector.extract_strided_slice %142 {offsets = [0, 32], sizes = [4, 32], strides = [1, 1]} : vector<4x192xf32> to vector<4x32xf32>
    %154 = vector.extract_strided_slice %140 {offsets = [0, 32], sizes = [4, 32], strides = [1, 1]} : vector<4x192xf32> to vector<4x32xf32>
    %155 = arith.addf %153, %154 : vector<4x32xf32>
    %156 = arith.negf %155 : vector<4x32xf32>
    %157 = math.exp %156 : vector<4x32xf32>
    %cst_48 = arith.constant 1.000000e+00 : f32
    %158 = vector.broadcast %cst_48 : f32 to vector<4x32xf32>
    %159 = arith.addf %158, %157 : vector<4x32xf32>
    %160 = arith.divf %158, %159 : vector<4x32xf32>
    %161 = vector.extract_strided_slice %142 {offsets = [0, 64], sizes = [4, 32], strides = [1, 1]} : vector<4x192xf32> to vector<4x32xf32>
    %162 = vector.extract_strided_slice %140 {offsets = [0, 64], sizes = [4, 32], strides = [1, 1]} : vector<4x192xf32> to vector<4x32xf32>
    %163 = arith.mulf %152, %162 : vector<4x32xf32>
    %164 = arith.addf %161, %163 : vector<4x32xf32>
    %165 = math.tanh %164 : vector<4x32xf32>
    %cst_49 = arith.constant 1.000000e+00 : f32
    %166 = vector.broadcast %cst_49 : f32 to vector<4x32xf32>
    %167 = arith.subf %166, %160 : vector<4x32xf32>
    %168 = arith.mulf %167, %165 : vector<4x32xf32>
    %169 = arith.mulf %160, %105 : vector<4x32xf32>
    %170 = arith.addf %168, %169 : vector<4x32xf32>
    %171 = vector.extract_strided_slice %144 {offsets = [0, 96], sizes = [4, 32], strides = [1, 1]} : vector<4x192xf32> to vector<4x32xf32>
    %172 = vector.extract_strided_slice %140 {offsets = [0, 96], sizes = [4, 32], strides = [1, 1]} : vector<4x192xf32> to vector<4x32xf32>
    %173 = arith.addf %171, %172 : vector<4x32xf32>
    %174 = arith.negf %173 : vector<4x32xf32>
    %175 = math.exp %174 : vector<4x32xf32>
    %cst_50 = arith.constant 1.000000e+00 : f32
    %176 = vector.broadcast %cst_50 : f32 to vector<4x32xf32>
    %177 = arith.addf %176, %175 : vector<4x32xf32>
    %178 = arith.divf %176, %177 : vector<4x32xf32>
    %179 = vector.extract_strided_slice %144 {offsets = [0, 128], sizes = [4, 32], strides = [1, 1]} : vector<4x192xf32> to vector<4x32xf32>
    %180 = vector.extract_strided_slice %140 {offsets = [0, 128], sizes = [4, 32], strides = [1, 1]} : vector<4x192xf32> to vector<4x32xf32>
    %181 = arith.addf %179, %180 : vector<4x32xf32>
    %182 = arith.negf %181 : vector<4x32xf32>
    %183 = math.exp %182 : vector<4x32xf32>
    %cst_51 = arith.constant 1.000000e+00 : f32
    %184 = vector.broadcast %cst_51 : f32 to vector<4x32xf32>
    %185 = arith.addf %184, %183 : vector<4x32xf32>
    %186 = arith.divf %184, %185 : vector<4x32xf32>
    %187 = vector.extract_strided_slice %144 {offsets = [0, 160], sizes = [4, 32], strides = [1, 1]} : vector<4x192xf32> to vector<4x32xf32>
    %188 = vector.extract_strided_slice %140 {offsets = [0, 160], sizes = [4, 32], strides = [1, 1]} : vector<4x192xf32> to vector<4x32xf32>
    %189 = arith.mulf %178, %188 : vector<4x32xf32>
    %190 = arith.addf %187, %189 : vector<4x32xf32>
    %191 = math.tanh %190 : vector<4x32xf32>
    %cst_52 = arith.constant 1.000000e+00 : f32
    %192 = vector.broadcast %cst_52 : f32 to vector<4x32xf32>
    %193 = arith.subf %192, %186 : vector<4x32xf32>
    %194 = arith.mulf %193, %191 : vector<4x32xf32>
    %195 = arith.mulf %186, %131 : vector<4x32xf32>
    %196 = arith.addf %194, %195 : vector<4x32xf32>
    %c2_53 = arith.constant 2 : index
    %c0_54 = arith.constant 0 : index
    %c0_55 = arith.constant 0 : index
    %197 = vector.load %arg6[%c2_53, %c0_54, %c0_55] : memref<10x4x64xf32, #tpu.memory_space<vmem>>, vector<1x4x32xf32>
    %198 = vector.shape_cast %197 : vector<1x4x32xf32> to vector<4x32xf32>
    %199 = vector.shape_cast %170 : vector<4x32xf32> to vector<1x4x32xf32>
    tpu.vector_store %arg6[%c2_53, %c0_54, %c0_55], %199 {strides = array<i32>} : memref<10x4x64xf32, #tpu.memory_space<vmem>>, vector<1x4x32xf32>,
    %c7_56 = arith.constant 7 : index
    %c0_57 = arith.constant 0 : index
    %c32_58 = arith.constant 32 : index
    %200 = vector.load %arg6[%c7_56, %c0_57, %c32_58] : memref<10x4x64xf32, #tpu.memory_space<vmem>>, vector<1x4x32xf32>
    %201 = vector.shape_cast %200 : vector<1x4x32xf32> to vector<4x32xf32>
    %202 = vector.shape_cast %196 : vector<4x32xf32> to vector<1x4x32xf32>
    tpu.vector_store %arg6[%c7_56, %c0_57, %c32_58], %202 {strides = array<i32>} : memref<10x4x64xf32, #tpu.memory_space<vmem>>, vector<1x4x32xf32>,
    %203 = tpu.concatenate %170, %196 in 1 : vector<4x32xf32>, vector<4x32xf32> -> vector<4x64xf32>
    %cst_59 = arith.constant dense<0.000000e+00> : vector<4x192xf32>
    %204 = tpu.matmul %203, %0, %cst_59 {dimension_numbers = #tpu.dot_dimension_numbers<[1], [0], [0], [1], [0, 0, 1, 1], [], []>} : vector<4x64xf32>, vector<64x192xf32>, vector<4x192xf32> -> vector<4x192xf32>
    %205 = arith.addf %204, %3 : vector<4x192xf32>
    %c3 = arith.constant 3 : index
    %c0_60 = arith.constant 0 : index
    %c0_61 = arith.constant 0 : index
    %206 = vector.load %arg0[%c3, %c0_60, %c0_61] : memref<10x4x192xf32, #tpu.memory_space<vmem>>, vector<1x4x192xf32>
    %207 = vector.shape_cast %206 : vector<1x4x192xf32> to vector<4x192xf32>
    %c6 = arith.constant 6 : index
    %c0_62 = arith.constant 0 : index
    %c0_63 = arith.constant 0 : index
    %208 = vector.load %arg0[%c6, %c0_62, %c0_63] : memref<10x4x192xf32, #tpu.memory_space<vmem>>, vector<1x4x192xf32>
    %209 = vector.shape_cast %208 : vector<1x4x192xf32> to vector<4x192xf32>
    %210 = vector.extract_strided_slice %207 {offsets = [0, 0], sizes = [4, 32], strides = [1, 1]} : vector<4x192xf32> to vector<4x32xf32>
    %211 = vector.extract_strided_slice %205 {offsets = [0, 0], sizes = [4, 32], strides = [1, 1]} : vector<4x192xf32> to vector<4x32xf32>
    %212 = arith.addf %210, %211 : vector<4x32xf32>
    %213 = arith.negf %212 : vector<4x32xf32>
    %214 = math.exp %213 : vector<4x32xf32>
    %cst_64 = arith.constant 1.000000e+00 : f32
    %215 = vector.broadcast %cst_64 : f32 to vector<4x32xf32>
    %216 = arith.addf %215, %214 : vector<4x32xf32>
    %217 = arith.divf %215, %216 : vector<4x32xf32>
    %218 = vector.extract_strided_slice %207 {offsets = [0, 32], sizes = [4, 32], strides = [1, 1]} : vector<4x192xf32> to vector<4x32xf32>
    %219 = vector.extract_strided_slice %205 {offsets = [0, 32], sizes = [4, 32], strides = [1, 1]} : vector<4x192xf32> to vector<4x32xf32>
    %220 = arith.addf %218, %219 : vector<4x32xf32>
    %221 = arith.negf %220 : vector<4x32xf32>
    %222 = math.exp %221 : vector<4x32xf32>
    %cst_65 = arith.constant 1.000000e+00 : f32
    %223 = vector.broadcast %cst_65 : f32 to vector<4x32xf32>
    %224 = arith.addf %223, %222 : vector<4x32xf32>
    %225 = arith.divf %223, %224 : vector<4x32xf32>
    %226 = vector.extract_strided_slice %207 {offsets = [0, 64], sizes = [4, 32], strides = [1, 1]} : vector<4x192xf32> to vector<4x32xf32>
    %227 = vector.extract_strided_slice %205 {offsets = [0, 64], sizes = [4, 32], strides = [1, 1]} : vector<4x192xf32> to vector<4x32xf32>
    %228 = arith.mulf %217, %227 : vector<4x32xf32>
    %229 = arith.addf %226, %228 : vector<4x32xf32>
    %230 = math.tanh %229 : vector<4x32xf32>
    %cst_66 = arith.constant 1.000000e+00 : f32
    %231 = vector.broadcast %cst_66 : f32 to vector<4x32xf32>
    %232 = arith.subf %231, %225 : vector<4x32xf32>
    %233 = arith.mulf %232, %230 : vector<4x32xf32>
    %234 = arith.mulf %225, %170 : vector<4x32xf32>
    %235 = arith.addf %233, %234 : vector<4x32xf32>
    %236 = vector.extract_strided_slice %209 {offsets = [0, 96], sizes = [4, 32], strides = [1, 1]} : vector<4x192xf32> to vector<4x32xf32>
    %237 = vector.extract_strided_slice %205 {offsets = [0, 96], sizes = [4, 32], strides = [1, 1]} : vector<4x192xf32> to vector<4x32xf32>
    %238 = arith.addf %236, %237 : vector<4x32xf32>
    %239 = arith.negf %238 : vector<4x32xf32>
    %240 = math.exp %239 : vector<4x32xf32>
    %cst_67 = arith.constant 1.000000e+00 : f32
    %241 = vector.broadcast %cst_67 : f32 to vector<4x32xf32>
    %242 = arith.addf %241, %240 : vector<4x32xf32>
    %243 = arith.divf %241, %242 : vector<4x32xf32>
    %244 = vector.extract_strided_slice %209 {offsets = [0, 128], sizes = [4, 32], strides = [1, 1]} : vector<4x192xf32> to vector<4x32xf32>
    %245 = vector.extract_strided_slice %205 {offsets = [0, 128], sizes = [4, 32], strides = [1, 1]} : vector<4x192xf32> to vector<4x32xf32>
    %246 = arith.addf %244, %245 : vector<4x32xf32>
    %247 = arith.negf %246 : vector<4x32xf32>
    %248 = math.exp %247 : vector<4x32xf32>
    %cst_68 = arith.constant 1.000000e+00 : f32
    %249 = vector.broadcast %cst_68 : f32 to vector<4x32xf32>
    %250 = arith.addf %249, %248 : vector<4x32xf32>
    %251 = arith.divf %249, %250 : vector<4x32xf32>
    %252 = vector.extract_strided_slice %209 {offsets = [0, 160], sizes = [4, 32], strides = [1, 1]} : vector<4x192xf32> to vector<4x32xf32>
    %253 = vector.extract_strided_slice %205 {offsets = [0, 160], sizes = [4, 32], strides = [1, 1]} : vector<4x192xf32> to vector<4x32xf32>
    %254 = arith.mulf %243, %253 : vector<4x32xf32>
    %255 = arith.addf %252, %254 : vector<4x32xf32>
    %256 = math.tanh %255 : vector<4x32xf32>
    %cst_69 = arith.constant 1.000000e+00 : f32
    %257 = vector.broadcast %cst_69 : f32 to vector<4x32xf32>
    %258 = arith.subf %257, %251 : vector<4x32xf32>
    %259 = arith.mulf %258, %256 : vector<4x32xf32>
    %260 = arith.mulf %251, %196 : vector<4x32xf32>
    %261 = arith.addf %259, %260 : vector<4x32xf32>
    %c3_70 = arith.constant 3 : index
    %c0_71 = arith.constant 0 : index
    %c0_72 = arith.constant 0 : index
    %262 = vector.load %arg6[%c3_70, %c0_71, %c0_72] : memref<10x4x64xf32, #tpu.memory_space<vmem>>, vector<1x4x32xf32>
    %263 = vector.shape_cast %262 : vector<1x4x32xf32> to vector<4x32xf32>
    %264 = vector.shape_cast %235 : vector<4x32xf32> to vector<1x4x32xf32>
    tpu.vector_store %arg6[%c3_70, %c0_71, %c0_72], %264 {strides = array<i32>} : memref<10x4x64xf32, #tpu.memory_space<vmem>>, vector<1x4x32xf32>,
    %c6_73 = arith.constant 6 : index
    %c0_74 = arith.constant 0 : index
    %c32_75 = arith.constant 32 : index
    %265 = vector.load %arg6[%c6_73, %c0_74, %c32_75] : memref<10x4x64xf32, #tpu.memory_space<vmem>>, vector<1x4x32xf32>
    %266 = vector.shape_cast %265 : vector<1x4x32xf32> to vector<4x32xf32>
    %267 = vector.shape_cast %261 : vector<4x32xf32> to vector<1x4x32xf32>
    tpu.vector_store %arg6[%c6_73, %c0_74, %c32_75], %267 {strides = array<i32>} : memref<10x4x64xf32, #tpu.memory_space<vmem>>, vector<1x4x32xf32>,
    %268 = tpu.concatenate %235, %261 in 1 : vector<4x32xf32>, vector<4x32xf32> -> vector<4x64xf32>
    %cst_76 = arith.constant dense<0.000000e+00> : vector<4x192xf32>
    %269 = tpu.matmul %268, %0, %cst_76 {dimension_numbers = #tpu.dot_dimension_numbers<[1], [0], [0], [1], [0, 0, 1, 1], [], []>} : vector<4x64xf32>, vector<64x192xf32>, vector<4x192xf32> -> vector<4x192xf32>
    %270 = arith.addf %269, %3 : vector<4x192xf32>
    %c4 = arith.constant 4 : index
    %c0_77 = arith.constant 0 : index
    %c0_78 = arith.constant 0 : index
    %271 = vector.load %arg0[%c4, %c0_77, %c0_78] : memref<10x4x192xf32, #tpu.memory_space<vmem>>, vector<1x4x192xf32>
    %272 = vector.shape_cast %271 : vector<1x4x192xf32> to vector<4x192xf32>
    %c5 = arith.constant 5 : index
    %c0_79 = arith.constant 0 : index
    %c0_80 = arith.constant 0 : index
    %273 = vector.load %arg0[%c5, %c0_79, %c0_80] : memref<10x4x192xf32, #tpu.memory_space<vmem>>, vector<1x4x192xf32>
    %274 = vector.shape_cast %273 : vector<1x4x192xf32> to vector<4x192xf32>
    %275 = vector.extract_strided_slice %272 {offsets = [0, 0], sizes = [4, 32], strides = [1, 1]} : vector<4x192xf32> to vector<4x32xf32>
    %276 = vector.extract_strided_slice %270 {offsets = [0, 0], sizes = [4, 32], strides = [1, 1]} : vector<4x192xf32> to vector<4x32xf32>
    %277 = arith.addf %275, %276 : vector<4x32xf32>
    %278 = arith.negf %277 : vector<4x32xf32>
    %279 = math.exp %278 : vector<4x32xf32>
    %cst_81 = arith.constant 1.000000e+00 : f32
    %280 = vector.broadcast %cst_81 : f32 to vector<4x32xf32>
    %281 = arith.addf %280, %279 : vector<4x32xf32>
    %282 = arith.divf %280, %281 : vector<4x32xf32>
    %283 = vector.extract_strided_slice %272 {offsets = [0, 32], sizes = [4, 32], strides = [1, 1]} : vector<4x192xf32> to vector<4x32xf32>
    %284 = vector.extract_strided_slice %270 {offsets = [0, 32], sizes = [4, 32], strides = [1, 1]} : vector<4x192xf32> to vector<4x32xf32>
    %285 = arith.addf %283, %284 : vector<4x32xf32>
    %286 = arith.negf %285 : vector<4x32xf32>
    %287 = math.exp %286 : vector<4x32xf32>
    %cst_82 = arith.constant 1.000000e+00 : f32
    %288 = vector.broadcast %cst_82 : f32 to vector<4x32xf32>
    %289 = arith.addf %288, %287 : vector<4x32xf32>
    %290 = arith.divf %288, %289 : vector<4x32xf32>
    %291 = vector.extract_strided_slice %272 {offsets = [0, 64], sizes = [4, 32], strides = [1, 1]} : vector<4x192xf32> to vector<4x32xf32>
    %292 = vector.extract_strided_slice %270 {offsets = [0, 64], sizes = [4, 32], strides = [1, 1]} : vector<4x192xf32> to vector<4x32xf32>
    %293 = arith.mulf %282, %292 : vector<4x32xf32>
    %294 = arith.addf %291, %293 : vector<4x32xf32>
    %295 = math.tanh %294 : vector<4x32xf32>
    %cst_83 = arith.constant 1.000000e+00 : f32
    %296 = vector.broadcast %cst_83 : f32 to vector<4x32xf32>
    %297 = arith.subf %296, %290 : vector<4x32xf32>
    %298 = arith.mulf %297, %295 : vector<4x32xf32>
    %299 = arith.mulf %290, %235 : vector<4x32xf32>
    %300 = arith.addf %298, %299 : vector<4x32xf32>
    %301 = vector.extract_strided_slice %274 {offsets = [0, 96], sizes = [4, 32], strides = [1, 1]} : vector<4x192xf32> to vector<4x32xf32>
    %302 = vector.extract_strided_slice %270 {offsets = [0, 96], sizes = [4, 32], strides = [1, 1]} : vector<4x192xf32> to vector<4x32xf32>
    %303 = arith.addf %301, %302 : vector<4x32xf32>
    %304 = arith.negf %303 : vector<4x32xf32>
    %305 = math.exp %304 : vector<4x32xf32>
    %cst_84 = arith.constant 1.000000e+00 : f32
    %306 = vector.broadcast %cst_84 : f32 to vector<4x32xf32>
    %307 = arith.addf %306, %305 : vector<4x32xf32>
    %308 = arith.divf %306, %307 : vector<4x32xf32>
    %309 = vector.extract_strided_slice %274 {offsets = [0, 128], sizes = [4, 32], strides = [1, 1]} : vector<4x192xf32> to vector<4x32xf32>
    %310 = vector.extract_strided_slice %270 {offsets = [0, 128], sizes = [4, 32], strides = [1, 1]} : vector<4x192xf32> to vector<4x32xf32>
    %311 = arith.addf %309, %310 : vector<4x32xf32>
    %312 = arith.negf %311 : vector<4x32xf32>
    %313 = math.exp %312 : vector<4x32xf32>
    %cst_85 = arith.constant 1.000000e+00 : f32
    %314 = vector.broadcast %cst_85 : f32 to vector<4x32xf32>
    %315 = arith.addf %314, %313 : vector<4x32xf32>
    %316 = arith.divf %314, %315 : vector<4x32xf32>
    %317 = vector.extract_strided_slice %274 {offsets = [0, 160], sizes = [4, 32], strides = [1, 1]} : vector<4x192xf32> to vector<4x32xf32>
    %318 = vector.extract_strided_slice %270 {offsets = [0, 160], sizes = [4, 32], strides = [1, 1]} : vector<4x192xf32> to vector<4x32xf32>
    %319 = arith.mulf %308, %318 : vector<4x32xf32>
    %320 = arith.addf %317, %319 : vector<4x32xf32>
    %321 = math.tanh %320 : vector<4x32xf32>
    %cst_86 = arith.constant 1.000000e+00 : f32
    %322 = vector.broadcast %cst_86 : f32 to vector<4x32xf32>
    %323 = arith.subf %322, %316 : vector<4x32xf32>
    %324 = arith.mulf %323, %321 : vector<4x32xf32>
    %325 = arith.mulf %316, %261 : vector<4x32xf32>
    %326 = arith.addf %324, %325 : vector<4x32xf32>
    %c4_87 = arith.constant 4 : index
    %c0_88 = arith.constant 0 : index
    %c0_89 = arith.constant 0 : index
    %327 = vector.load %arg6[%c4_87, %c0_88, %c0_89] : memref<10x4x64xf32, #tpu.memory_space<vmem>>, vector<1x4x32xf32>
    %328 = vector.shape_cast %327 : vector<1x4x32xf32> to vector<4x32xf32>
    %329 = vector.shape_cast %300 : vector<4x32xf32> to vector<1x4x32xf32>
    tpu.vector_store %arg6[%c4_87, %c0_88, %c0_89], %329 {strides = array<i32>} : memref<10x4x64xf32, #tpu.memory_space<vmem>>, vector<1x4x32xf32>,
    %c5_90 = arith.constant 5 : index
    %c0_91 = arith.constant 0 : index
    %c32_92 = arith.constant 32 : index
    %330 = vector.load %arg6[%c5_90, %c0_91, %c32_92] : memref<10x4x64xf32, #tpu.memory_space<vmem>>, vector<1x4x32xf32>
    %331 = vector.shape_cast %330 : vector<1x4x32xf32> to vector<4x32xf32>
    %332 = vector.shape_cast %326 : vector<4x32xf32> to vector<1x4x32xf32>
    tpu.vector_store %arg6[%c5_90, %c0_91, %c32_92], %332 {strides = array<i32>} : memref<10x4x64xf32, #tpu.memory_space<vmem>>, vector<1x4x32xf32>,
    %333 = tpu.concatenate %300, %326 in 1 : vector<4x32xf32>, vector<4x32xf32> -> vector<4x64xf32>
    %cst_93 = arith.constant dense<0.000000e+00> : vector<4x192xf32>
    %334 = tpu.matmul %333, %0, %cst_93 {dimension_numbers = #tpu.dot_dimension_numbers<[1], [0], [0], [1], [0, 0, 1, 1], [], []>} : vector<4x64xf32>, vector<64x192xf32>, vector<4x192xf32> -> vector<4x192xf32>
    %335 = arith.addf %334, %3 : vector<4x192xf32>
    %c5_94 = arith.constant 5 : index
    %c0_95 = arith.constant 0 : index
    %c0_96 = arith.constant 0 : index
    %336 = vector.load %arg0[%c5_94, %c0_95, %c0_96] : memref<10x4x192xf32, #tpu.memory_space<vmem>>, vector<1x4x192xf32>
    %337 = vector.shape_cast %336 : vector<1x4x192xf32> to vector<4x192xf32>
    %c4_97 = arith.constant 4 : index
    %c0_98 = arith.constant 0 : index
    %c0_99 = arith.constant 0 : index
    %338 = vector.load %arg0[%c4_97, %c0_98, %c0_99] : memref<10x4x192xf32, #tpu.memory_space<vmem>>, vector<1x4x192xf32>
    %339 = vector.shape_cast %338 : vector<1x4x192xf32> to vector<4x192xf32>
    %340 = vector.extract_strided_slice %337 {offsets = [0, 0], sizes = [4, 32], strides = [1, 1]} : vector<4x192xf32> to vector<4x32xf32>
    %341 = vector.extract_strided_slice %335 {offsets = [0, 0], sizes = [4, 32], strides = [1, 1]} : vector<4x192xf32> to vector<4x32xf32>
    %342 = arith.addf %340, %341 : vector<4x32xf32>
    %343 = arith.negf %342 : vector<4x32xf32>
    %344 = math.exp %343 : vector<4x32xf32>
    %cst_100 = arith.constant 1.000000e+00 : f32
    %345 = vector.broadcast %cst_100 : f32 to vector<4x32xf32>
    %346 = arith.addf %345, %344 : vector<4x32xf32>
    %347 = arith.divf %345, %346 : vector<4x32xf32>
    %348 = vector.extract_strided_slice %337 {offsets = [0, 32], sizes = [4, 32], strides = [1, 1]} : vector<4x192xf32> to vector<4x32xf32>
    %349 = vector.extract_strided_slice %335 {offsets = [0, 32], sizes = [4, 32], strides = [1, 1]} : vector<4x192xf32> to vector<4x32xf32>
    %350 = arith.addf %348, %349 : vector<4x32xf32>
    %351 = arith.negf %350 : vector<4x32xf32>
    %352 = math.exp %351 : vector<4x32xf32>
    %cst_101 = arith.constant 1.000000e+00 : f32
    %353 = vector.broadcast %cst_101 : f32 to vector<4x32xf32>
    %354 = arith.addf %353, %352 : vector<4x32xf32>
    %355 = arith.divf %353, %354 : vector<4x32xf32>
    %356 = vector.extract_strided_slice %337 {offsets = [0, 64], sizes = [4, 32], strides = [1, 1]} : vector<4x192xf32> to vector<4x32xf32>
    %357 = vector.extract_strided_slice %335 {offsets = [0, 64], sizes = [4, 32], strides = [1, 1]} : vector<4x192xf32> to vector<4x32xf32>
    %358 = arith.mulf %347, %357 : vector<4x32xf32>
    %359 = arith.addf %356, %358 : vector<4x32xf32>
    %360 = math.tanh %359 : vector<4x32xf32>
    %cst_102 = arith.constant 1.000000e+00 : f32
    %361 = vector.broadcast %cst_102 : f32 to vector<4x32xf32>
    %362 = arith.subf %361, %355 : vector<4x32xf32>
    %363 = arith.mulf %362, %360 : vector<4x32xf32>
    %364 = arith.mulf %355, %300 : vector<4x32xf32>
    %365 = arith.addf %363, %364 : vector<4x32xf32>
    %366 = vector.extract_strided_slice %339 {offsets = [0, 96], sizes = [4, 32], strides = [1, 1]} : vector<4x192xf32> to vector<4x32xf32>
    %367 = vector.extract_strided_slice %335 {offsets = [0, 96], sizes = [4, 32], strides = [1, 1]} : vector<4x192xf32> to vector<4x32xf32>
    %368 = arith.addf %366, %367 : vector<4x32xf32>
    %369 = arith.negf %368 : vector<4x32xf32>
    %370 = math.exp %369 : vector<4x32xf32>
    %cst_103 = arith.constant 1.000000e+00 : f32
    %371 = vector.broadcast %cst_103 : f32 to vector<4x32xf32>
    %372 = arith.addf %371, %370 : vector<4x32xf32>
    %373 = arith.divf %371, %372 : vector<4x32xf32>
    %374 = vector.extract_strided_slice %339 {offsets = [0, 128], sizes = [4, 32], strides = [1, 1]} : vector<4x192xf32> to vector<4x32xf32>
    %375 = vector.extract_strided_slice %335 {offsets = [0, 128], sizes = [4, 32], strides = [1, 1]} : vector<4x192xf32> to vector<4x32xf32>
    %376 = arith.addf %374, %375 : vector<4x32xf32>
    %377 = arith.negf %376 : vector<4x32xf32>
    %378 = math.exp %377 : vector<4x32xf32>
    %cst_104 = arith.constant 1.000000e+00 : f32
    %379 = vector.broadcast %cst_104 : f32 to vector<4x32xf32>
    %380 = arith.addf %379, %378 : vector<4x32xf32>
    %381 = arith.divf %379, %380 : vector<4x32xf32>
    %382 = vector.extract_strided_slice %339 {offsets = [0, 160], sizes = [4, 32], strides = [1, 1]} : vector<4x192xf32> to vector<4x32xf32>
    %383 = vector.extract_strided_slice %335 {offsets = [0, 160], sizes = [4, 32], strides = [1, 1]} : vector<4x192xf32> to vector<4x32xf32>
    %384 = arith.mulf %373, %383 : vector<4x32xf32>
    %385 = arith.addf %382, %384 : vector<4x32xf32>
    %386 = math.tanh %385 : vector<4x32xf32>
    %cst_105 = arith.constant 1.000000e+00 : f32
    %387 = vector.broadcast %cst_105 : f32 to vector<4x32xf32>
    %388 = arith.subf %387, %381 : vector<4x32xf32>
    %389 = arith.mulf %388, %386 : vector<4x32xf32>
    %390 = arith.mulf %381, %326 : vector<4x32xf32>
    %391 = arith.addf %389, %390 : vector<4x32xf32>
    %c5_106 = arith.constant 5 : index
    %c0_107 = arith.constant 0 : index
    %c0_108 = arith.constant 0 : index
    %392 = vector.load %arg6[%c5_106, %c0_107, %c0_108] : memref<10x4x64xf32, #tpu.memory_space<vmem>>, vector<1x4x32xf32>
    %393 = vector.shape_cast %392 : vector<1x4x32xf32> to vector<4x32xf32>
    %394 = vector.shape_cast %365 : vector<4x32xf32> to vector<1x4x32xf32>
    tpu.vector_store %arg6[%c5_106, %c0_107, %c0_108], %394 {strides = array<i32>} : memref<10x4x64xf32, #tpu.memory_space<vmem>>, vector<1x4x32xf32>,
    %c4_109 = arith.constant 4 : index
    %c0_110 = arith.constant 0 : index
    %c32_111 = arith.constant 32 : index
    %395 = vector.load %arg6[%c4_109, %c0_110, %c32_111] : memref<10x4x64xf32, #tpu.memory_space<vmem>>, vector<1x4x32xf32>
    %396 = vector.shape_cast %395 : vector<1x4x32xf32> to vector<4x32xf32>
    %397 = vector.shape_cast %391 : vector<4x32xf32> to vector<1x4x32xf32>
    tpu.vector_store %arg6[%c4_109, %c0_110, %c32_111], %397 {strides = array<i32>} : memref<10x4x64xf32, #tpu.memory_space<vmem>>, vector<1x4x32xf32>,
    %398 = tpu.concatenate %365, %391 in 1 : vector<4x32xf32>, vector<4x32xf32> -> vector<4x64xf32>
    %cst_112 = arith.constant dense<0.000000e+00> : vector<4x192xf32>
    %399 = tpu.matmul %398, %0, %cst_112 {dimension_numbers = #tpu.dot_dimension_numbers<[1], [0], [0], [1], [0, 0, 1, 1], [], []>} : vector<4x64xf32>, vector<64x192xf32>, vector<4x192xf32> -> vector<4x192xf32>
    %400 = arith.addf %399, %3 : vector<4x192xf32>
    %c6_113 = arith.constant 6 : index
    %c0_114 = arith.constant 0 : index
    %c0_115 = arith.constant 0 : index
    %401 = vector.load %arg0[%c6_113, %c0_114, %c0_115] : memref<10x4x192xf32, #tpu.memory_space<vmem>>, vector<1x4x192xf32>
    %402 = vector.shape_cast %401 : vector<1x4x192xf32> to vector<4x192xf32>
    %c3_116 = arith.constant 3 : index
    %c0_117 = arith.constant 0 : index
    %c0_118 = arith.constant 0 : index
    %403 = vector.load %arg0[%c3_116, %c0_117, %c0_118] : memref<10x4x192xf32, #tpu.memory_space<vmem>>, vector<1x4x192xf32>
    %404 = vector.shape_cast %403 : vector<1x4x192xf32> to vector<4x192xf32>
    %405 = vector.extract_strided_slice %402 {offsets = [0, 0], sizes = [4, 32], strides = [1, 1]} : vector<4x192xf32> to vector<4x32xf32>
    %406 = vector.extract_strided_slice %400 {offsets = [0, 0], sizes = [4, 32], strides = [1, 1]} : vector<4x192xf32> to vector<4x32xf32>
    %407 = arith.addf %405, %406 : vector<4x32xf32>
    %408 = arith.negf %407 : vector<4x32xf32>
    %409 = math.exp %408 : vector<4x32xf32>
    %cst_119 = arith.constant 1.000000e+00 : f32
    %410 = vector.broadcast %cst_119 : f32 to vector<4x32xf32>
    %411 = arith.addf %410, %409 : vector<4x32xf32>
    %412 = arith.divf %410, %411 : vector<4x32xf32>
    %413 = vector.extract_strided_slice %402 {offsets = [0, 32], sizes = [4, 32], strides = [1, 1]} : vector<4x192xf32> to vector<4x32xf32>
    %414 = vector.extract_strided_slice %400 {offsets = [0, 32], sizes = [4, 32], strides = [1, 1]} : vector<4x192xf32> to vector<4x32xf32>
    %415 = arith.addf %413, %414 : vector<4x32xf32>
    %416 = arith.negf %415 : vector<4x32xf32>
    %417 = math.exp %416 : vector<4x32xf32>
    %cst_120 = arith.constant 1.000000e+00 : f32
    %418 = vector.broadcast %cst_120 : f32 to vector<4x32xf32>
    %419 = arith.addf %418, %417 : vector<4x32xf32>
    %420 = arith.divf %418, %419 : vector<4x32xf32>
    %421 = vector.extract_strided_slice %402 {offsets = [0, 64], sizes = [4, 32], strides = [1, 1]} : vector<4x192xf32> to vector<4x32xf32>
    %422 = vector.extract_strided_slice %400 {offsets = [0, 64], sizes = [4, 32], strides = [1, 1]} : vector<4x192xf32> to vector<4x32xf32>
    %423 = arith.mulf %412, %422 : vector<4x32xf32>
    %424 = arith.addf %421, %423 : vector<4x32xf32>
    %425 = math.tanh %424 : vector<4x32xf32>
    %cst_121 = arith.constant 1.000000e+00 : f32
    %426 = vector.broadcast %cst_121 : f32 to vector<4x32xf32>
    %427 = arith.subf %426, %420 : vector<4x32xf32>
    %428 = arith.mulf %427, %425 : vector<4x32xf32>
    %429 = arith.mulf %420, %365 : vector<4x32xf32>
    %430 = arith.addf %428, %429 : vector<4x32xf32>
    %431 = vector.extract_strided_slice %404 {offsets = [0, 96], sizes = [4, 32], strides = [1, 1]} : vector<4x192xf32> to vector<4x32xf32>
    %432 = vector.extract_strided_slice %400 {offsets = [0, 96], sizes = [4, 32], strides = [1, 1]} : vector<4x192xf32> to vector<4x32xf32>
    %433 = arith.addf %431, %432 : vector<4x32xf32>
    %434 = arith.negf %433 : vector<4x32xf32>
    %435 = math.exp %434 : vector<4x32xf32>
    %cst_122 = arith.constant 1.000000e+00 : f32
    %436 = vector.broadcast %cst_122 : f32 to vector<4x32xf32>
    %437 = arith.addf %436, %435 : vector<4x32xf32>
    %438 = arith.divf %436, %437 : vector<4x32xf32>
    %439 = vector.extract_strided_slice %404 {offsets = [0, 128], sizes = [4, 32], strides = [1, 1]} : vector<4x192xf32> to vector<4x32xf32>
    %440 = vector.extract_strided_slice %400 {offsets = [0, 128], sizes = [4, 32], strides = [1, 1]} : vector<4x192xf32> to vector<4x32xf32>
    %441 = arith.addf %439, %440 : vector<4x32xf32>
    %442 = arith.negf %441 : vector<4x32xf32>
    %443 = math.exp %442 : vector<4x32xf32>
    %cst_123 = arith.constant 1.000000e+00 : f32
    %444 = vector.broadcast %cst_123 : f32 to vector<4x32xf32>
    %445 = arith.addf %444, %443 : vector<4x32xf32>
    %446 = arith.divf %444, %445 : vector<4x32xf32>
    %447 = vector.extract_strided_slice %404 {offsets = [0, 160], sizes = [4, 32], strides = [1, 1]} : vector<4x192xf32> to vector<4x32xf32>
    %448 = vector.extract_strided_slice %400 {offsets = [0, 160], sizes = [4, 32], strides = [1, 1]} : vector<4x192xf32> to vector<4x32xf32>
    %449 = arith.mulf %438, %448 : vector<4x32xf32>
    %450 = arith.addf %447, %449 : vector<4x32xf32>
    %451 = math.tanh %450 : vector<4x32xf32>
    %cst_124 = arith.constant 1.000000e+00 : f32
    %452 = vector.broadcast %cst_124 : f32 to vector<4x32xf32>
    %453 = arith.subf %452, %446 : vector<4x32xf32>
    %454 = arith.mulf %453, %451 : vector<4x32xf32>
    %455 = arith.mulf %446, %391 : vector<4x32xf32>
    %456 = arith.addf %454, %455 : vector<4x32xf32>
    %c6_125 = arith.constant 6 : index
    %c0_126 = arith.constant 0 : index
    %c0_127 = arith.constant 0 : index
    %457 = vector.load %arg6[%c6_125, %c0_126, %c0_127] : memref<10x4x64xf32, #tpu.memory_space<vmem>>, vector<1x4x32xf32>
    %458 = vector.shape_cast %457 : vector<1x4x32xf32> to vector<4x32xf32>
    %459 = vector.shape_cast %430 : vector<4x32xf32> to vector<1x4x32xf32>
    tpu.vector_store %arg6[%c6_125, %c0_126, %c0_127], %459 {strides = array<i32>} : memref<10x4x64xf32, #tpu.memory_space<vmem>>, vector<1x4x32xf32>,
    %c3_128 = arith.constant 3 : index
    %c0_129 = arith.constant 0 : index
    %c32_130 = arith.constant 32 : index
    %460 = vector.load %arg6[%c3_128, %c0_129, %c32_130] : memref<10x4x64xf32, #tpu.memory_space<vmem>>, vector<1x4x32xf32>
    %461 = vector.shape_cast %460 : vector<1x4x32xf32> to vector<4x32xf32>
    %462 = vector.shape_cast %456 : vector<4x32xf32> to vector<1x4x32xf32>
    tpu.vector_store %arg6[%c3_128, %c0_129, %c32_130], %462 {strides = array<i32>} : memref<10x4x64xf32, #tpu.memory_space<vmem>>, vector<1x4x32xf32>,
    %463 = tpu.concatenate %430, %456 in 1 : vector<4x32xf32>, vector<4x32xf32> -> vector<4x64xf32>
    %cst_131 = arith.constant dense<0.000000e+00> : vector<4x192xf32>
    %464 = tpu.matmul %463, %0, %cst_131 {dimension_numbers = #tpu.dot_dimension_numbers<[1], [0], [0], [1], [0, 0, 1, 1], [], []>} : vector<4x64xf32>, vector<64x192xf32>, vector<4x192xf32> -> vector<4x192xf32>
    %465 = arith.addf %464, %3 : vector<4x192xf32>
    %c7_132 = arith.constant 7 : index
    %c0_133 = arith.constant 0 : index
    %c0_134 = arith.constant 0 : index
    %466 = vector.load %arg0[%c7_132, %c0_133, %c0_134] : memref<10x4x192xf32, #tpu.memory_space<vmem>>, vector<1x4x192xf32>
    %467 = vector.shape_cast %466 : vector<1x4x192xf32> to vector<4x192xf32>
    %c2_135 = arith.constant 2 : index
    %c0_136 = arith.constant 0 : index
    %c0_137 = arith.constant 0 : index
    %468 = vector.load %arg0[%c2_135, %c0_136, %c0_137] : memref<10x4x192xf32, #tpu.memory_space<vmem>>, vector<1x4x192xf32>
    %469 = vector.shape_cast %468 : vector<1x4x192xf32> to vector<4x192xf32>
    %470 = vector.extract_strided_slice %467 {offsets = [0, 0], sizes = [4, 32], strides = [1, 1]} : vector<4x192xf32> to vector<4x32xf32>
    %471 = vector.extract_strided_slice %465 {offsets = [0, 0], sizes = [4, 32], strides = [1, 1]} : vector<4x192xf32> to vector<4x32xf32>
    %472 = arith.addf %470, %471 : vector<4x32xf32>
    %473 = arith.negf %472 : vector<4x32xf32>
    %474 = math.exp %473 : vector<4x32xf32>
    %cst_138 = arith.constant 1.000000e+00 : f32
    %475 = vector.broadcast %cst_138 : f32 to vector<4x32xf32>
    %476 = arith.addf %475, %474 : vector<4x32xf32>
    %477 = arith.divf %475, %476 : vector<4x32xf32>
    %478 = vector.extract_strided_slice %467 {offsets = [0, 32], sizes = [4, 32], strides = [1, 1]} : vector<4x192xf32> to vector<4x32xf32>
    %479 = vector.extract_strided_slice %465 {offsets = [0, 32], sizes = [4, 32], strides = [1, 1]} : vector<4x192xf32> to vector<4x32xf32>
    %480 = arith.addf %478, %479 : vector<4x32xf32>
    %481 = arith.negf %480 : vector<4x32xf32>
    %482 = math.exp %481 : vector<4x32xf32>
    %cst_139 = arith.constant 1.000000e+00 : f32
    %483 = vector.broadcast %cst_139 : f32 to vector<4x32xf32>
    %484 = arith.addf %483, %482 : vector<4x32xf32>
    %485 = arith.divf %483, %484 : vector<4x32xf32>
    %486 = vector.extract_strided_slice %467 {offsets = [0, 64], sizes = [4, 32], strides = [1, 1]} : vector<4x192xf32> to vector<4x32xf32>
    %487 = vector.extract_strided_slice %465 {offsets = [0, 64], sizes = [4, 32], strides = [1, 1]} : vector<4x192xf32> to vector<4x32xf32>
    %488 = arith.mulf %477, %487 : vector<4x32xf32>
    %489 = arith.addf %486, %488 : vector<4x32xf32>
    %490 = math.tanh %489 : vector<4x32xf32>
    %cst_140 = arith.constant 1.000000e+00 : f32
    %491 = vector.broadcast %cst_140 : f32 to vector<4x32xf32>
    %492 = arith.subf %491, %485 : vector<4x32xf32>
    %493 = arith.mulf %492, %490 : vector<4x32xf32>
    %494 = arith.mulf %485, %430 : vector<4x32xf32>
    %495 = arith.addf %493, %494 : vector<4x32xf32>
    %496 = vector.extract_strided_slice %469 {offsets = [0, 96], sizes = [4, 32], strides = [1, 1]} : vector<4x192xf32> to vector<4x32xf32>
    %497 = vector.extract_strided_slice %465 {offsets = [0, 96], sizes = [4, 32], strides = [1, 1]} : vector<4x192xf32> to vector<4x32xf32>
    %498 = arith.addf %496, %497 : vector<4x32xf32>
    %499 = arith.negf %498 : vector<4x32xf32>
    %500 = math.exp %499 : vector<4x32xf32>
    %cst_141 = arith.constant 1.000000e+00 : f32
    %501 = vector.broadcast %cst_141 : f32 to vector<4x32xf32>
    %502 = arith.addf %501, %500 : vector<4x32xf32>
    %503 = arith.divf %501, %502 : vector<4x32xf32>
    %504 = vector.extract_strided_slice %469 {offsets = [0, 128], sizes = [4, 32], strides = [1, 1]} : vector<4x192xf32> to vector<4x32xf32>
    %505 = vector.extract_strided_slice %465 {offsets = [0, 128], sizes = [4, 32], strides = [1, 1]} : vector<4x192xf32> to vector<4x32xf32>
    %506 = arith.addf %504, %505 : vector<4x32xf32>
    %507 = arith.negf %506 : vector<4x32xf32>
    %508 = math.exp %507 : vector<4x32xf32>
    %cst_142 = arith.constant 1.000000e+00 : f32
    %509 = vector.broadcast %cst_142 : f32 to vector<4x32xf32>
    %510 = arith.addf %509, %508 : vector<4x32xf32>
    %511 = arith.divf %509, %510 : vector<4x32xf32>
    %512 = vector.extract_strided_slice %469 {offsets = [0, 160], sizes = [4, 32], strides = [1, 1]} : vector<4x192xf32> to vector<4x32xf32>
    %513 = vector.extract_strided_slice %465 {offsets = [0, 160], sizes = [4, 32], strides = [1, 1]} : vector<4x192xf32> to vector<4x32xf32>
    %514 = arith.mulf %503, %513 : vector<4x32xf32>
    %515 = arith.addf %512, %514 : vector<4x32xf32>
    %516 = math.tanh %515 : vector<4x32xf32>
    %cst_143 = arith.constant 1.000000e+00 : f32
    %517 = vector.broadcast %cst_143 : f32 to vector<4x32xf32>
    %518 = arith.subf %517, %511 : vector<4x32xf32>
    %519 = arith.mulf %518, %516 : vector<4x32xf32>
    %520 = arith.mulf %511, %456 : vector<4x32xf32>
    %521 = arith.addf %519, %520 : vector<4x32xf32>
    %c7_144 = arith.constant 7 : index
    %c0_145 = arith.constant 0 : index
    %c0_146 = arith.constant 0 : index
    %522 = vector.load %arg6[%c7_144, %c0_145, %c0_146] : memref<10x4x64xf32, #tpu.memory_space<vmem>>, vector<1x4x32xf32>
    %523 = vector.shape_cast %522 : vector<1x4x32xf32> to vector<4x32xf32>
    %524 = vector.shape_cast %495 : vector<4x32xf32> to vector<1x4x32xf32>
    tpu.vector_store %arg6[%c7_144, %c0_145, %c0_146], %524 {strides = array<i32>} : memref<10x4x64xf32, #tpu.memory_space<vmem>>, vector<1x4x32xf32>,
    %c2_147 = arith.constant 2 : index
    %c0_148 = arith.constant 0 : index
    %c32_149 = arith.constant 32 : index
    %525 = vector.load %arg6[%c2_147, %c0_148, %c32_149] : memref<10x4x64xf32, #tpu.memory_space<vmem>>, vector<1x4x32xf32>
    %526 = vector.shape_cast %525 : vector<1x4x32xf32> to vector<4x32xf32>
    %527 = vector.shape_cast %521 : vector<4x32xf32> to vector<1x4x32xf32>
    tpu.vector_store %arg6[%c2_147, %c0_148, %c32_149], %527 {strides = array<i32>} : memref<10x4x64xf32, #tpu.memory_space<vmem>>, vector<1x4x32xf32>,
    %528 = tpu.concatenate %495, %521 in 1 : vector<4x32xf32>, vector<4x32xf32> -> vector<4x64xf32>
    %cst_150 = arith.constant dense<0.000000e+00> : vector<4x192xf32>
    %529 = tpu.matmul %528, %0, %cst_150 {dimension_numbers = #tpu.dot_dimension_numbers<[1], [0], [0], [1], [0, 0, 1, 1], [], []>} : vector<4x64xf32>, vector<64x192xf32>, vector<4x192xf32> -> vector<4x192xf32>
    %530 = arith.addf %529, %3 : vector<4x192xf32>
    %c8_151 = arith.constant 8 : index
    %c0_152 = arith.constant 0 : index
    %c0_153 = arith.constant 0 : index
    %531 = vector.load %arg0[%c8_151, %c0_152, %c0_153] : memref<10x4x192xf32, #tpu.memory_space<vmem>>, vector<1x4x192xf32>
    %532 = vector.shape_cast %531 : vector<1x4x192xf32> to vector<4x192xf32>
    %c1_154 = arith.constant 1 : index
    %c0_155 = arith.constant 0 : index
    %c0_156 = arith.constant 0 : index
    %533 = vector.load %arg0[%c1_154, %c0_155, %c0_156] : memref<10x4x192xf32, #tpu.memory_space<vmem>>, vector<1x4x192xf32>
    %534 = vector.shape_cast %533 : vector<1x4x192xf32> to vector<4x192xf32>
    %535 = vector.extract_strided_slice %532 {offsets = [0, 0], sizes = [4, 32], strides = [1, 1]} : vector<4x192xf32> to vector<4x32xf32>
    %536 = vector.extract_strided_slice %530 {offsets = [0, 0], sizes = [4, 32], strides = [1, 1]} : vector<4x192xf32> to vector<4x32xf32>
    %537 = arith.addf %535, %536 : vector<4x32xf32>
    %538 = arith.negf %537 : vector<4x32xf32>
    %539 = math.exp %538 : vector<4x32xf32>
    %cst_157 = arith.constant 1.000000e+00 : f32
    %540 = vector.broadcast %cst_157 : f32 to vector<4x32xf32>
    %541 = arith.addf %540, %539 : vector<4x32xf32>
    %542 = arith.divf %540, %541 : vector<4x32xf32>
    %543 = vector.extract_strided_slice %532 {offsets = [0, 32], sizes = [4, 32], strides = [1, 1]} : vector<4x192xf32> to vector<4x32xf32>
    %544 = vector.extract_strided_slice %530 {offsets = [0, 32], sizes = [4, 32], strides = [1, 1]} : vector<4x192xf32> to vector<4x32xf32>
    %545 = arith.addf %543, %544 : vector<4x32xf32>
    %546 = arith.negf %545 : vector<4x32xf32>
    %547 = math.exp %546 : vector<4x32xf32>
    %cst_158 = arith.constant 1.000000e+00 : f32
    %548 = vector.broadcast %cst_158 : f32 to vector<4x32xf32>
    %549 = arith.addf %548, %547 : vector<4x32xf32>
    %550 = arith.divf %548, %549 : vector<4x32xf32>
    %551 = vector.extract_strided_slice %532 {offsets = [0, 64], sizes = [4, 32], strides = [1, 1]} : vector<4x192xf32> to vector<4x32xf32>
    %552 = vector.extract_strided_slice %530 {offsets = [0, 64], sizes = [4, 32], strides = [1, 1]} : vector<4x192xf32> to vector<4x32xf32>
    %553 = arith.mulf %542, %552 : vector<4x32xf32>
    %554 = arith.addf %551, %553 : vector<4x32xf32>
    %555 = math.tanh %554 : vector<4x32xf32>
    %cst_159 = arith.constant 1.000000e+00 : f32
    %556 = vector.broadcast %cst_159 : f32 to vector<4x32xf32>
    %557 = arith.subf %556, %550 : vector<4x32xf32>
    %558 = arith.mulf %557, %555 : vector<4x32xf32>
    %559 = arith.mulf %550, %495 : vector<4x32xf32>
    %560 = arith.addf %558, %559 : vector<4x32xf32>
    %561 = vector.extract_strided_slice %534 {offsets = [0, 96], sizes = [4, 32], strides = [1, 1]} : vector<4x192xf32> to vector<4x32xf32>
    %562 = vector.extract_strided_slice %530 {offsets = [0, 96], sizes = [4, 32], strides = [1, 1]} : vector<4x192xf32> to vector<4x32xf32>
    %563 = arith.addf %561, %562 : vector<4x32xf32>
    %564 = arith.negf %563 : vector<4x32xf32>
    %565 = math.exp %564 : vector<4x32xf32>
    %cst_160 = arith.constant 1.000000e+00 : f32
    %566 = vector.broadcast %cst_160 : f32 to vector<4x32xf32>
    %567 = arith.addf %566, %565 : vector<4x32xf32>
    %568 = arith.divf %566, %567 : vector<4x32xf32>
    %569 = vector.extract_strided_slice %534 {offsets = [0, 128], sizes = [4, 32], strides = [1, 1]} : vector<4x192xf32> to vector<4x32xf32>
    %570 = vector.extract_strided_slice %530 {offsets = [0, 128], sizes = [4, 32], strides = [1, 1]} : vector<4x192xf32> to vector<4x32xf32>
    %571 = arith.addf %569, %570 : vector<4x32xf32>
    %572 = arith.negf %571 : vector<4x32xf32>
    %573 = math.exp %572 : vector<4x32xf32>
    %cst_161 = arith.constant 1.000000e+00 : f32
    %574 = vector.broadcast %cst_161 : f32 to vector<4x32xf32>
    %575 = arith.addf %574, %573 : vector<4x32xf32>
    %576 = arith.divf %574, %575 : vector<4x32xf32>
    %577 = vector.extract_strided_slice %534 {offsets = [0, 160], sizes = [4, 32], strides = [1, 1]} : vector<4x192xf32> to vector<4x32xf32>
    %578 = vector.extract_strided_slice %530 {offsets = [0, 160], sizes = [4, 32], strides = [1, 1]} : vector<4x192xf32> to vector<4x32xf32>
    %579 = arith.mulf %568, %578 : vector<4x32xf32>
    %580 = arith.addf %577, %579 : vector<4x32xf32>
    %581 = math.tanh %580 : vector<4x32xf32>
    %cst_162 = arith.constant 1.000000e+00 : f32
    %582 = vector.broadcast %cst_162 : f32 to vector<4x32xf32>
    %583 = arith.subf %582, %576 : vector<4x32xf32>
    %584 = arith.mulf %583, %581 : vector<4x32xf32>
    %585 = arith.mulf %576, %521 : vector<4x32xf32>
    %586 = arith.addf %584, %585 : vector<4x32xf32>
    %c8_163 = arith.constant 8 : index
    %c0_164 = arith.constant 0 : index
    %c0_165 = arith.constant 0 : index
    %587 = vector.load %arg6[%c8_163, %c0_164, %c0_165] : memref<10x4x64xf32, #tpu.memory_space<vmem>>, vector<1x4x32xf32>
    %588 = vector.shape_cast %587 : vector<1x4x32xf32> to vector<4x32xf32>
    %589 = vector.shape_cast %560 : vector<4x32xf32> to vector<1x4x32xf32>
    tpu.vector_store %arg6[%c8_163, %c0_164, %c0_165], %589 {strides = array<i32>} : memref<10x4x64xf32, #tpu.memory_space<vmem>>, vector<1x4x32xf32>,
    %c1_166 = arith.constant 1 : index
    %c0_167 = arith.constant 0 : index
    %c32_168 = arith.constant 32 : index
    %590 = vector.load %arg6[%c1_166, %c0_167, %c32_168] : memref<10x4x64xf32, #tpu.memory_space<vmem>>, vector<1x4x32xf32>
    %591 = vector.shape_cast %590 : vector<1x4x32xf32> to vector<4x32xf32>
    %592 = vector.shape_cast %586 : vector<4x32xf32> to vector<1x4x32xf32>
    tpu.vector_store %arg6[%c1_166, %c0_167, %c32_168], %592 {strides = array<i32>} : memref<10x4x64xf32, #tpu.memory_space<vmem>>, vector<1x4x32xf32>,
    %593 = tpu.concatenate %560, %586 in 1 : vector<4x32xf32>, vector<4x32xf32> -> vector<4x64xf32>
    %cst_169 = arith.constant dense<0.000000e+00> : vector<4x192xf32>
    %594 = tpu.matmul %593, %0, %cst_169 {dimension_numbers = #tpu.dot_dimension_numbers<[1], [0], [0], [1], [0, 0, 1, 1], [], []>} : vector<4x64xf32>, vector<64x192xf32>, vector<4x192xf32> -> vector<4x192xf32>
    %595 = arith.addf %594, %3 : vector<4x192xf32>
    %c9_170 = arith.constant 9 : index
    %c0_171 = arith.constant 0 : index
    %c0_172 = arith.constant 0 : index
    %596 = vector.load %arg0[%c9_170, %c0_171, %c0_172] : memref<10x4x192xf32, #tpu.memory_space<vmem>>, vector<1x4x192xf32>
    %597 = vector.shape_cast %596 : vector<1x4x192xf32> to vector<4x192xf32>
    %c0_173 = arith.constant 0 : index
    %c0_174 = arith.constant 0 : index
    %c0_175 = arith.constant 0 : index
    %598 = vector.load %arg0[%c0_173, %c0_174, %c0_175] : memref<10x4x192xf32, #tpu.memory_space<vmem>>, vector<1x4x192xf32>
    %599 = vector.shape_cast %598 : vector<1x4x192xf32> to vector<4x192xf32>
    %600 = vector.extract_strided_slice %597 {offsets = [0, 0], sizes = [4, 32], strides = [1, 1]} : vector<4x192xf32> to vector<4x32xf32>
    %601 = vector.extract_strided_slice %595 {offsets = [0, 0], sizes = [4, 32], strides = [1, 1]} : vector<4x192xf32> to vector<4x32xf32>
    %602 = arith.addf %600, %601 : vector<4x32xf32>
    %603 = arith.negf %602 : vector<4x32xf32>
    %604 = math.exp %603 : vector<4x32xf32>
    %cst_176 = arith.constant 1.000000e+00 : f32
    %605 = vector.broadcast %cst_176 : f32 to vector<4x32xf32>
    %606 = arith.addf %605, %604 : vector<4x32xf32>
    %607 = arith.divf %605, %606 : vector<4x32xf32>
    %608 = vector.extract_strided_slice %597 {offsets = [0, 32], sizes = [4, 32], strides = [1, 1]} : vector<4x192xf32> to vector<4x32xf32>
    %609 = vector.extract_strided_slice %595 {offsets = [0, 32], sizes = [4, 32], strides = [1, 1]} : vector<4x192xf32> to vector<4x32xf32>
    %610 = arith.addf %608, %609 : vector<4x32xf32>
    %611 = arith.negf %610 : vector<4x32xf32>
    %612 = math.exp %611 : vector<4x32xf32>
    %cst_177 = arith.constant 1.000000e+00 : f32
    %613 = vector.broadcast %cst_177 : f32 to vector<4x32xf32>
    %614 = arith.addf %613, %612 : vector<4x32xf32>
    %615 = arith.divf %613, %614 : vector<4x32xf32>
    %616 = vector.extract_strided_slice %597 {offsets = [0, 64], sizes = [4, 32], strides = [1, 1]} : vector<4x192xf32> to vector<4x32xf32>
    %617 = vector.extract_strided_slice %595 {offsets = [0, 64], sizes = [4, 32], strides = [1, 1]} : vector<4x192xf32> to vector<4x32xf32>
    %618 = arith.mulf %607, %617 : vector<4x32xf32>
    %619 = arith.addf %616, %618 : vector<4x32xf32>
    %620 = math.tanh %619 : vector<4x32xf32>
    %cst_178 = arith.constant 1.000000e+00 : f32
    %621 = vector.broadcast %cst_178 : f32 to vector<4x32xf32>
    %622 = arith.subf %621, %615 : vector<4x32xf32>
    %623 = arith.mulf %622, %620 : vector<4x32xf32>
    %624 = arith.mulf %615, %560 : vector<4x32xf32>
    %625 = arith.addf %623, %624 : vector<4x32xf32>
    %626 = vector.extract_strided_slice %599 {offsets = [0, 96], sizes = [4, 32], strides = [1, 1]} : vector<4x192xf32> to vector<4x32xf32>
    %627 = vector.extract_strided_slice %595 {offsets = [0, 96], sizes = [4, 32], strides = [1, 1]} : vector<4x192xf32> to vector<4x32xf32>
    %628 = arith.addf %626, %627 : vector<4x32xf32>
    %629 = arith.negf %628 : vector<4x32xf32>
    %630 = math.exp %629 : vector<4x32xf32>
    %cst_179 = arith.constant 1.000000e+00 : f32
    %631 = vector.broadcast %cst_179 : f32 to vector<4x32xf32>
    %632 = arith.addf %631, %630 : vector<4x32xf32>
    %633 = arith.divf %631, %632 : vector<4x32xf32>
    %634 = vector.extract_strided_slice %599 {offsets = [0, 128], sizes = [4, 32], strides = [1, 1]} : vector<4x192xf32> to vector<4x32xf32>
    %635 = vector.extract_strided_slice %595 {offsets = [0, 128], sizes = [4, 32], strides = [1, 1]} : vector<4x192xf32> to vector<4x32xf32>
    %636 = arith.addf %634, %635 : vector<4x32xf32>
    %637 = arith.negf %636 : vector<4x32xf32>
    %638 = math.exp %637 : vector<4x32xf32>
    %cst_180 = arith.constant 1.000000e+00 : f32
    %639 = vector.broadcast %cst_180 : f32 to vector<4x32xf32>
    %640 = arith.addf %639, %638 : vector<4x32xf32>
    %641 = arith.divf %639, %640 : vector<4x32xf32>
    %642 = vector.extract_strided_slice %599 {offsets = [0, 160], sizes = [4, 32], strides = [1, 1]} : vector<4x192xf32> to vector<4x32xf32>
    %643 = vector.extract_strided_slice %595 {offsets = [0, 160], sizes = [4, 32], strides = [1, 1]} : vector<4x192xf32> to vector<4x32xf32>
    %644 = arith.mulf %633, %643 : vector<4x32xf32>
    %645 = arith.addf %642, %644 : vector<4x32xf32>
    %646 = math.tanh %645 : vector<4x32xf32>
    %cst_181 = arith.constant 1.000000e+00 : f32
    %647 = vector.broadcast %cst_181 : f32 to vector<4x32xf32>
    %648 = arith.subf %647, %641 : vector<4x32xf32>
    %649 = arith.mulf %648, %646 : vector<4x32xf32>
    %650 = arith.mulf %641, %586 : vector<4x32xf32>
    %651 = arith.addf %649, %650 : vector<4x32xf32>
    %c9_182 = arith.constant 9 : index
    %c0_183 = arith.constant 0 : index
    %c0_184 = arith.constant 0 : index
    %652 = vector.load %arg6[%c9_182, %c0_183, %c0_184] : memref<10x4x64xf32, #tpu.memory_space<vmem>>, vector<1x4x32xf32>
    %653 = vector.shape_cast %652 : vector<1x4x32xf32> to vector<4x32xf32>
    %654 = vector.shape_cast %625 : vector<4x32xf32> to vector<1x4x32xf32>
    tpu.vector_store %arg6[%c9_182, %c0_183, %c0_184], %654 {strides = array<i32>} : memref<10x4x64xf32, #tpu.memory_space<vmem>>, vector<1x4x32xf32>,
    %c0_185 = arith.constant 0 : index
    %c0_186 = arith.constant 0 : index
    %c32_187 = arith.constant 32 : index
    %655 = vector.load %arg6[%c0_185, %c0_186, %c32_187] : memref<10x4x64xf32, #tpu.memory_space<vmem>>, vector<1x4x32xf32>
    %656 = vector.shape_cast %655 : vector<1x4x32xf32> to vector<4x32xf32>
    %657 = vector.shape_cast %651 : vector<4x32xf32> to vector<1x4x32xf32>
    tpu.vector_store %arg6[%c0_185, %c0_186, %c32_187], %657 {strides = array<i32>} : memref<10x4x64xf32, #tpu.memory_space<vmem>>, vector<1x4x32xf32>,
    %658 = tpu.concatenate %625, %651 in 1 : vector<4x32xf32>, vector<4x32xf32> -> vector<4x64xf32>
    %cst_188 = arith.constant -5.000000e+00 : f32
    %cst_189 = arith.constant 5.000000e+00 : f32
    %659 = vector.broadcast %cst_188 : f32 to vector<4x64xf32>
    %660 = arith.maximumf %659, %658 : vector<4x64xf32>
    %661 = vector.broadcast %cst_189 : f32 to vector<4x64xf32>
    %662 = arith.minimumf %661, %660 : vector<4x64xf32>
    %c0_190 = arith.constant 0 : index
    %c0_191 = arith.constant 0 : index
    %663 = vector.load %arg4[%c0_190, %c0_191] : memref<64x32xf32, #tpu.memory_space<vmem>>, vector<64x32xf32>
    %cst_192 = arith.constant dense<0.000000e+00> : vector<4x32xf32>
    %664 = tpu.matmul %662, %663, %cst_192 {dimension_numbers = #tpu.dot_dimension_numbers<[1], [0], [0], [1], [0, 0, 1, 1], [], []>} : vector<4x64xf32>, vector<64x32xf32>, vector<4x32xf32> -> vector<4x32xf32>
    %c0_193 = arith.constant 0 : index
    %c0_194 = arith.constant 0 : index
    %665 = vector.load %arg5[%c0_193, %c0_194] : memref<1x32xf32, #tpu.memory_space<vmem>>, vector<1x32xf32>
    %666 = vector.broadcast %665 : vector<1x32xf32> to vector<4x32xf32>
    %667 = arith.addf %664, %666 : vector<4x32xf32>
    %668 = vector.extract_strided_slice %667 {offsets = [0, 0], sizes = [4, 16], strides = [1, 1]} : vector<4x32xf32> to vector<4x16xf32>
    %c0_195 = arith.constant 0 : index
    %c0_196 = arith.constant 0 : index
    %669 = vector.load %arg7[%c0_195, %c0_196] : memref<4x16xf32, #tpu.memory_space<vmem>>, vector<4x16xf32>
    tpu.vector_store %arg7[%c0_195, %c0_196], %668 {strides = array<i32>} : memref<4x16xf32, #tpu.memory_space<vmem>>, vector<4x16xf32>,
    %670 = vector.extract_strided_slice %667 {offsets = [0, 16], sizes = [4, 16], strides = [1, 1]} : vector<4x32xf32> to vector<4x16xf32>
    %c0_197 = arith.constant 0 : index
    %c0_198 = arith.constant 0 : index
    %671 = vector.load %arg8[%c0_197, %c0_198] : memref<4x16xf32, #tpu.memory_space<vmem>>, vector<4x16xf32>
    tpu.vector_store %arg8[%c0_197, %c0_198], %670 {strides = array<i32>} : memref<4x16xf32, #tpu.memory_space<vmem>>, vector<4x16xf32>,
    return
  }
}

module attributes {stable_mosaic.version = 11 : i64} {
  func.func @_bigru_kernel(%arg0: memref<10x4x48xf32, #tpu.memory_space<vmem>>, %arg1: memref<2x4x8xf32, #tpu.memory_space<vmem>>, %arg2: memref<16x48xf32, #tpu.memory_space<vmem>>, %arg3: memref<1x48xf32, #tpu.memory_space<vmem>>, %arg4: memref<10x4x16xf32, #tpu.memory_space<vmem>>) attributes {dimension_semantics = [], scalar_prefetch = 0 : i64, scratch_operands = 0 : i64, tpu.core_type = #tpu.core_type<tc>} {
    %c0 = arith.constant 0 : index
    %c0_0 = arith.constant 0 : index
    %0 = vector.load %arg2[%c0, %c0_0] : memref<16x48xf32, #tpu.memory_space<vmem>>, vector<16x48xf32>
    %c0_1 = arith.constant 0 : index
    %c0_2 = arith.constant 0 : index
    %1 = vector.load %arg3[%c0_1, %c0_2] : memref<1x48xf32, #tpu.memory_space<vmem>>, vector<1x48xf32>
    %2 = vector.shape_cast %1 : vector<1x48xf32> to vector<1x48xf32>
    %3 = vector.broadcast %2 : vector<1x48xf32> to vector<4x48xf32>
    %c0_3 = arith.constant 0 : index
    %c0_4 = arith.constant 0 : index
    %c0_5 = arith.constant 0 : index
    %4 = vector.load %arg1[%c0_3, %c0_4, %c0_5] : memref<2x4x8xf32, #tpu.memory_space<vmem>>, vector<1x4x8xf32>
    %5 = vector.shape_cast %4 : vector<1x4x8xf32> to vector<4x8xf32>
    %c1 = arith.constant 1 : index
    %c0_6 = arith.constant 0 : index
    %c0_7 = arith.constant 0 : index
    %6 = vector.load %arg1[%c1, %c0_6, %c0_7] : memref<2x4x8xf32, #tpu.memory_space<vmem>>, vector<1x4x8xf32>
    %7 = vector.shape_cast %6 : vector<1x4x8xf32> to vector<4x8xf32>
    %8 = tpu.concatenate %5, %7 in 1 : vector<4x8xf32>, vector<4x8xf32> -> vector<4x16xf32>
    %cst = arith.constant dense<0.000000e+00> : vector<4x48xf32>
    %9 = tpu.matmul %8, %0, %cst {dimension_numbers = #tpu.dot_dimension_numbers<[1], [0], [0], [1], [0, 0, 1, 1], [], []>} : vector<4x16xf32>, vector<16x48xf32>, vector<4x48xf32> -> vector<4x48xf32>
    %10 = arith.addf %9, %3 : vector<4x48xf32>
    %c0_8 = arith.constant 0 : index
    %c0_9 = arith.constant 0 : index
    %c0_10 = arith.constant 0 : index
    %11 = vector.load %arg0[%c0_8, %c0_9, %c0_10] : memref<10x4x48xf32, #tpu.memory_space<vmem>>, vector<1x4x48xf32>
    %12 = vector.shape_cast %11 : vector<1x4x48xf32> to vector<4x48xf32>
    %c9 = arith.constant 9 : index
    %c0_11 = arith.constant 0 : index
    %c0_12 = arith.constant 0 : index
    %13 = vector.load %arg0[%c9, %c0_11, %c0_12] : memref<10x4x48xf32, #tpu.memory_space<vmem>>, vector<1x4x48xf32>
    %14 = vector.shape_cast %13 : vector<1x4x48xf32> to vector<4x48xf32>
    %15 = vector.extract_strided_slice %12 {offsets = [0, 0], sizes = [4, 8], strides = [1, 1]} : vector<4x48xf32> to vector<4x8xf32>
    %16 = vector.extract_strided_slice %10 {offsets = [0, 0], sizes = [4, 8], strides = [1, 1]} : vector<4x48xf32> to vector<4x8xf32>
    %17 = arith.addf %15, %16 : vector<4x8xf32>
    %18 = arith.negf %17 : vector<4x8xf32>
    %19 = math.exp %18 : vector<4x8xf32>
    %cst_13 = arith.constant 1.000000e+00 : f32
    %20 = vector.broadcast %cst_13 : f32 to vector<4x8xf32>
    %21 = arith.addf %20, %19 : vector<4x8xf32>
    %22 = arith.divf %20, %21 : vector<4x8xf32>
    %23 = vector.extract_strided_slice %12 {offsets = [0, 8], sizes = [4, 8], strides = [1, 1]} : vector<4x48xf32> to vector<4x8xf32>
    %24 = vector.extract_strided_slice %10 {offsets = [0, 8], sizes = [4, 8], strides = [1, 1]} : vector<4x48xf32> to vector<4x8xf32>
    %25 = arith.addf %23, %24 : vector<4x8xf32>
    %26 = arith.negf %25 : vector<4x8xf32>
    %27 = math.exp %26 : vector<4x8xf32>
    %cst_14 = arith.constant 1.000000e+00 : f32
    %28 = vector.broadcast %cst_14 : f32 to vector<4x8xf32>
    %29 = arith.addf %28, %27 : vector<4x8xf32>
    %30 = arith.divf %28, %29 : vector<4x8xf32>
    %31 = vector.extract_strided_slice %12 {offsets = [0, 16], sizes = [4, 8], strides = [1, 1]} : vector<4x48xf32> to vector<4x8xf32>
    %32 = vector.extract_strided_slice %10 {offsets = [0, 16], sizes = [4, 8], strides = [1, 1]} : vector<4x48xf32> to vector<4x8xf32>
    %33 = arith.mulf %22, %32 : vector<4x8xf32>
    %34 = arith.addf %31, %33 : vector<4x8xf32>
    %35 = math.tanh %34 : vector<4x8xf32>
    %cst_15 = arith.constant 1.000000e+00 : f32
    %36 = vector.broadcast %cst_15 : f32 to vector<4x8xf32>
    %37 = arith.subf %36, %30 : vector<4x8xf32>
    %38 = arith.mulf %37, %35 : vector<4x8xf32>
    %39 = arith.mulf %30, %5 : vector<4x8xf32>
    %40 = arith.addf %38, %39 : vector<4x8xf32>
    %41 = vector.extract_strided_slice %14 {offsets = [0, 24], sizes = [4, 8], strides = [1, 1]} : vector<4x48xf32> to vector<4x8xf32>
    %42 = vector.extract_strided_slice %10 {offsets = [0, 24], sizes = [4, 8], strides = [1, 1]} : vector<4x48xf32> to vector<4x8xf32>
    %43 = arith.addf %41, %42 : vector<4x8xf32>
    %44 = arith.negf %43 : vector<4x8xf32>
    %45 = math.exp %44 : vector<4x8xf32>
    %cst_16 = arith.constant 1.000000e+00 : f32
    %46 = vector.broadcast %cst_16 : f32 to vector<4x8xf32>
    %47 = arith.addf %46, %45 : vector<4x8xf32>
    %48 = arith.divf %46, %47 : vector<4x8xf32>
    %49 = vector.extract_strided_slice %14 {offsets = [0, 32], sizes = [4, 8], strides = [1, 1]} : vector<4x48xf32> to vector<4x8xf32>
    %50 = vector.extract_strided_slice %10 {offsets = [0, 32], sizes = [4, 8], strides = [1, 1]} : vector<4x48xf32> to vector<4x8xf32>
    %51 = arith.addf %49, %50 : vector<4x8xf32>
    %52 = arith.negf %51 : vector<4x8xf32>
    %53 = math.exp %52 : vector<4x8xf32>
    %cst_17 = arith.constant 1.000000e+00 : f32
    %54 = vector.broadcast %cst_17 : f32 to vector<4x8xf32>
    %55 = arith.addf %54, %53 : vector<4x8xf32>
    %56 = arith.divf %54, %55 : vector<4x8xf32>
    %57 = vector.extract_strided_slice %14 {offsets = [0, 40], sizes = [4, 8], strides = [1, 1]} : vector<4x48xf32> to vector<4x8xf32>
    %58 = vector.extract_strided_slice %10 {offsets = [0, 40], sizes = [4, 8], strides = [1, 1]} : vector<4x48xf32> to vector<4x8xf32>
    %59 = arith.mulf %48, %58 : vector<4x8xf32>
    %60 = arith.addf %57, %59 : vector<4x8xf32>
    %61 = math.tanh %60 : vector<4x8xf32>
    %cst_18 = arith.constant 1.000000e+00 : f32
    %62 = vector.broadcast %cst_18 : f32 to vector<4x8xf32>
    %63 = arith.subf %62, %56 : vector<4x8xf32>
    %64 = arith.mulf %63, %61 : vector<4x8xf32>
    %65 = arith.mulf %56, %7 : vector<4x8xf32>
    %66 = arith.addf %64, %65 : vector<4x8xf32>
    %cst_19 = arith.constant -5.000000e+00 : f32
    %cst_20 = arith.constant 5.000000e+00 : f32
    %67 = vector.broadcast %cst_19 : f32 to vector<4x8xf32>
    %68 = arith.maximumf %67, %40 : vector<4x8xf32>
    %69 = vector.broadcast %cst_20 : f32 to vector<4x8xf32>
    %70 = arith.minimumf %69, %68 : vector<4x8xf32>
    %cst_21 = arith.constant -5.000000e+00 : f32
    %cst_22 = arith.constant 5.000000e+00 : f32
    %71 = vector.broadcast %cst_21 : f32 to vector<4x8xf32>
    %72 = arith.maximumf %71, %66 : vector<4x8xf32>
    %73 = vector.broadcast %cst_22 : f32 to vector<4x8xf32>
    %74 = arith.minimumf %73, %72 : vector<4x8xf32>
    %c0_23 = arith.constant 0 : index
    %c0_24 = arith.constant 0 : index
    %c0_25 = arith.constant 0 : index
    %75 = vector.load %arg4[%c0_23, %c0_24, %c0_25] : memref<10x4x16xf32, #tpu.memory_space<vmem>>, vector<1x4x8xf32>
    %76 = vector.shape_cast %75 : vector<1x4x8xf32> to vector<4x8xf32>
    %77 = vector.shape_cast %70 : vector<4x8xf32> to vector<1x4x8xf32>
    tpu.vector_store %arg4[%c0_23, %c0_24, %c0_25], %77 {strides = array<i32>} : memref<10x4x16xf32, #tpu.memory_space<vmem>>, vector<1x4x8xf32>,
    %c9_26 = arith.constant 9 : index
    %c0_27 = arith.constant 0 : index
    %c8 = arith.constant 8 : index
    %78 = vector.load %arg4[%c9_26, %c0_27, %c8] : memref<10x4x16xf32, #tpu.memory_space<vmem>>, vector<1x4x8xf32>
    %79 = vector.shape_cast %78 : vector<1x4x8xf32> to vector<4x8xf32>
    %80 = vector.shape_cast %74 : vector<4x8xf32> to vector<1x4x8xf32>
    tpu.vector_store %arg4[%c9_26, %c0_27, %c8], %80 {strides = array<i32>} : memref<10x4x16xf32, #tpu.memory_space<vmem>>, vector<1x4x8xf32>,
    %81 = tpu.concatenate %40, %66 in 1 : vector<4x8xf32>, vector<4x8xf32> -> vector<4x16xf32>
    %cst_28 = arith.constant dense<0.000000e+00> : vector<4x48xf32>
    %82 = tpu.matmul %81, %0, %cst_28 {dimension_numbers = #tpu.dot_dimension_numbers<[1], [0], [0], [1], [0, 0, 1, 1], [], []>} : vector<4x16xf32>, vector<16x48xf32>, vector<4x48xf32> -> vector<4x48xf32>
    %83 = arith.addf %82, %3 : vector<4x48xf32>
    %c1_29 = arith.constant 1 : index
    %c0_30 = arith.constant 0 : index
    %c0_31 = arith.constant 0 : index
    %84 = vector.load %arg0[%c1_29, %c0_30, %c0_31] : memref<10x4x48xf32, #tpu.memory_space<vmem>>, vector<1x4x48xf32>
    %85 = vector.shape_cast %84 : vector<1x4x48xf32> to vector<4x48xf32>
    %c8_32 = arith.constant 8 : index
    %c0_33 = arith.constant 0 : index
    %c0_34 = arith.constant 0 : index
    %86 = vector.load %arg0[%c8_32, %c0_33, %c0_34] : memref<10x4x48xf32, #tpu.memory_space<vmem>>, vector<1x4x48xf32>
    %87 = vector.shape_cast %86 : vector<1x4x48xf32> to vector<4x48xf32>
    %88 = vector.extract_strided_slice %85 {offsets = [0, 0], sizes = [4, 8], strides = [1, 1]} : vector<4x48xf32> to vector<4x8xf32>
    %89 = vector.extract_strided_slice %83 {offsets = [0, 0], sizes = [4, 8], strides = [1, 1]} : vector<4x48xf32> to vector<4x8xf32>
    %90 = arith.addf %88, %89 : vector<4x8xf32>
    %91 = arith.negf %90 : vector<4x8xf32>
    %92 = math.exp %91 : vector<4x8xf32>
    %cst_35 = arith.constant 1.000000e+00 : f32
    %93 = vector.broadcast %cst_35 : f32 to vector<4x8xf32>
    %94 = arith.addf %93, %92 : vector<4x8xf32>
    %95 = arith.divf %93, %94 : vector<4x8xf32>
    %96 = vector.extract_strided_slice %85 {offsets = [0, 8], sizes = [4, 8], strides = [1, 1]} : vector<4x48xf32> to vector<4x8xf32>
    %97 = vector.extract_strided_slice %83 {offsets = [0, 8], sizes = [4, 8], strides = [1, 1]} : vector<4x48xf32> to vector<4x8xf32>
    %98 = arith.addf %96, %97 : vector<4x8xf32>
    %99 = arith.negf %98 : vector<4x8xf32>
    %100 = math.exp %99 : vector<4x8xf32>
    %cst_36 = arith.constant 1.000000e+00 : f32
    %101 = vector.broadcast %cst_36 : f32 to vector<4x8xf32>
    %102 = arith.addf %101, %100 : vector<4x8xf32>
    %103 = arith.divf %101, %102 : vector<4x8xf32>
    %104 = vector.extract_strided_slice %85 {offsets = [0, 16], sizes = [4, 8], strides = [1, 1]} : vector<4x48xf32> to vector<4x8xf32>
    %105 = vector.extract_strided_slice %83 {offsets = [0, 16], sizes = [4, 8], strides = [1, 1]} : vector<4x48xf32> to vector<4x8xf32>
    %106 = arith.mulf %95, %105 : vector<4x8xf32>
    %107 = arith.addf %104, %106 : vector<4x8xf32>
    %108 = math.tanh %107 : vector<4x8xf32>
    %cst_37 = arith.constant 1.000000e+00 : f32
    %109 = vector.broadcast %cst_37 : f32 to vector<4x8xf32>
    %110 = arith.subf %109, %103 : vector<4x8xf32>
    %111 = arith.mulf %110, %108 : vector<4x8xf32>
    %112 = arith.mulf %103, %40 : vector<4x8xf32>
    %113 = arith.addf %111, %112 : vector<4x8xf32>
    %114 = vector.extract_strided_slice %87 {offsets = [0, 24], sizes = [4, 8], strides = [1, 1]} : vector<4x48xf32> to vector<4x8xf32>
    %115 = vector.extract_strided_slice %83 {offsets = [0, 24], sizes = [4, 8], strides = [1, 1]} : vector<4x48xf32> to vector<4x8xf32>
    %116 = arith.addf %114, %115 : vector<4x8xf32>
    %117 = arith.negf %116 : vector<4x8xf32>
    %118 = math.exp %117 : vector<4x8xf32>
    %cst_38 = arith.constant 1.000000e+00 : f32
    %119 = vector.broadcast %cst_38 : f32 to vector<4x8xf32>
    %120 = arith.addf %119, %118 : vector<4x8xf32>
    %121 = arith.divf %119, %120 : vector<4x8xf32>
    %122 = vector.extract_strided_slice %87 {offsets = [0, 32], sizes = [4, 8], strides = [1, 1]} : vector<4x48xf32> to vector<4x8xf32>
    %123 = vector.extract_strided_slice %83 {offsets = [0, 32], sizes = [4, 8], strides = [1, 1]} : vector<4x48xf32> to vector<4x8xf32>
    %124 = arith.addf %122, %123 : vector<4x8xf32>
    %125 = arith.negf %124 : vector<4x8xf32>
    %126 = math.exp %125 : vector<4x8xf32>
    %cst_39 = arith.constant 1.000000e+00 : f32
    %127 = vector.broadcast %cst_39 : f32 to vector<4x8xf32>
    %128 = arith.addf %127, %126 : vector<4x8xf32>
    %129 = arith.divf %127, %128 : vector<4x8xf32>
    %130 = vector.extract_strided_slice %87 {offsets = [0, 40], sizes = [4, 8], strides = [1, 1]} : vector<4x48xf32> to vector<4x8xf32>
    %131 = vector.extract_strided_slice %83 {offsets = [0, 40], sizes = [4, 8], strides = [1, 1]} : vector<4x48xf32> to vector<4x8xf32>
    %132 = arith.mulf %121, %131 : vector<4x8xf32>
    %133 = arith.addf %130, %132 : vector<4x8xf32>
    %134 = math.tanh %133 : vector<4x8xf32>
    %cst_40 = arith.constant 1.000000e+00 : f32
    %135 = vector.broadcast %cst_40 : f32 to vector<4x8xf32>
    %136 = arith.subf %135, %129 : vector<4x8xf32>
    %137 = arith.mulf %136, %134 : vector<4x8xf32>
    %138 = arith.mulf %129, %66 : vector<4x8xf32>
    %139 = arith.addf %137, %138 : vector<4x8xf32>
    %cst_41 = arith.constant -5.000000e+00 : f32
    %cst_42 = arith.constant 5.000000e+00 : f32
    %140 = vector.broadcast %cst_41 : f32 to vector<4x8xf32>
    %141 = arith.maximumf %140, %113 : vector<4x8xf32>
    %142 = vector.broadcast %cst_42 : f32 to vector<4x8xf32>
    %143 = arith.minimumf %142, %141 : vector<4x8xf32>
    %cst_43 = arith.constant -5.000000e+00 : f32
    %cst_44 = arith.constant 5.000000e+00 : f32
    %144 = vector.broadcast %cst_43 : f32 to vector<4x8xf32>
    %145 = arith.maximumf %144, %139 : vector<4x8xf32>
    %146 = vector.broadcast %cst_44 : f32 to vector<4x8xf32>
    %147 = arith.minimumf %146, %145 : vector<4x8xf32>
    %c1_45 = arith.constant 1 : index
    %c0_46 = arith.constant 0 : index
    %c0_47 = arith.constant 0 : index
    %148 = vector.load %arg4[%c1_45, %c0_46, %c0_47] : memref<10x4x16xf32, #tpu.memory_space<vmem>>, vector<1x4x8xf32>
    %149 = vector.shape_cast %148 : vector<1x4x8xf32> to vector<4x8xf32>
    %150 = vector.shape_cast %143 : vector<4x8xf32> to vector<1x4x8xf32>
    tpu.vector_store %arg4[%c1_45, %c0_46, %c0_47], %150 {strides = array<i32>} : memref<10x4x16xf32, #tpu.memory_space<vmem>>, vector<1x4x8xf32>,
    %c8_48 = arith.constant 8 : index
    %c0_49 = arith.constant 0 : index
    %c8_50 = arith.constant 8 : index
    %151 = vector.load %arg4[%c8_48, %c0_49, %c8_50] : memref<10x4x16xf32, #tpu.memory_space<vmem>>, vector<1x4x8xf32>
    %152 = vector.shape_cast %151 : vector<1x4x8xf32> to vector<4x8xf32>
    %153 = vector.shape_cast %147 : vector<4x8xf32> to vector<1x4x8xf32>
    tpu.vector_store %arg4[%c8_48, %c0_49, %c8_50], %153 {strides = array<i32>} : memref<10x4x16xf32, #tpu.memory_space<vmem>>, vector<1x4x8xf32>,
    %154 = tpu.concatenate %113, %139 in 1 : vector<4x8xf32>, vector<4x8xf32> -> vector<4x16xf32>
    %cst_51 = arith.constant dense<0.000000e+00> : vector<4x48xf32>
    %155 = tpu.matmul %154, %0, %cst_51 {dimension_numbers = #tpu.dot_dimension_numbers<[1], [0], [0], [1], [0, 0, 1, 1], [], []>} : vector<4x16xf32>, vector<16x48xf32>, vector<4x48xf32> -> vector<4x48xf32>
    %156 = arith.addf %155, %3 : vector<4x48xf32>
    %c2 = arith.constant 2 : index
    %c0_52 = arith.constant 0 : index
    %c0_53 = arith.constant 0 : index
    %157 = vector.load %arg0[%c2, %c0_52, %c0_53] : memref<10x4x48xf32, #tpu.memory_space<vmem>>, vector<1x4x48xf32>
    %158 = vector.shape_cast %157 : vector<1x4x48xf32> to vector<4x48xf32>
    %c7 = arith.constant 7 : index
    %c0_54 = arith.constant 0 : index
    %c0_55 = arith.constant 0 : index
    %159 = vector.load %arg0[%c7, %c0_54, %c0_55] : memref<10x4x48xf32, #tpu.memory_space<vmem>>, vector<1x4x48xf32>
    %160 = vector.shape_cast %159 : vector<1x4x48xf32> to vector<4x48xf32>
    %161 = vector.extract_strided_slice %158 {offsets = [0, 0], sizes = [4, 8], strides = [1, 1]} : vector<4x48xf32> to vector<4x8xf32>
    %162 = vector.extract_strided_slice %156 {offsets = [0, 0], sizes = [4, 8], strides = [1, 1]} : vector<4x48xf32> to vector<4x8xf32>
    %163 = arith.addf %161, %162 : vector<4x8xf32>
    %164 = arith.negf %163 : vector<4x8xf32>
    %165 = math.exp %164 : vector<4x8xf32>
    %cst_56 = arith.constant 1.000000e+00 : f32
    %166 = vector.broadcast %cst_56 : f32 to vector<4x8xf32>
    %167 = arith.addf %166, %165 : vector<4x8xf32>
    %168 = arith.divf %166, %167 : vector<4x8xf32>
    %169 = vector.extract_strided_slice %158 {offsets = [0, 8], sizes = [4, 8], strides = [1, 1]} : vector<4x48xf32> to vector<4x8xf32>
    %170 = vector.extract_strided_slice %156 {offsets = [0, 8], sizes = [4, 8], strides = [1, 1]} : vector<4x48xf32> to vector<4x8xf32>
    %171 = arith.addf %169, %170 : vector<4x8xf32>
    %172 = arith.negf %171 : vector<4x8xf32>
    %173 = math.exp %172 : vector<4x8xf32>
    %cst_57 = arith.constant 1.000000e+00 : f32
    %174 = vector.broadcast %cst_57 : f32 to vector<4x8xf32>
    %175 = arith.addf %174, %173 : vector<4x8xf32>
    %176 = arith.divf %174, %175 : vector<4x8xf32>
    %177 = vector.extract_strided_slice %158 {offsets = [0, 16], sizes = [4, 8], strides = [1, 1]} : vector<4x48xf32> to vector<4x8xf32>
    %178 = vector.extract_strided_slice %156 {offsets = [0, 16], sizes = [4, 8], strides = [1, 1]} : vector<4x48xf32> to vector<4x8xf32>
    %179 = arith.mulf %168, %178 : vector<4x8xf32>
    %180 = arith.addf %177, %179 : vector<4x8xf32>
    %181 = math.tanh %180 : vector<4x8xf32>
    %cst_58 = arith.constant 1.000000e+00 : f32
    %182 = vector.broadcast %cst_58 : f32 to vector<4x8xf32>
    %183 = arith.subf %182, %176 : vector<4x8xf32>
    %184 = arith.mulf %183, %181 : vector<4x8xf32>
    %185 = arith.mulf %176, %113 : vector<4x8xf32>
    %186 = arith.addf %184, %185 : vector<4x8xf32>
    %187 = vector.extract_strided_slice %160 {offsets = [0, 24], sizes = [4, 8], strides = [1, 1]} : vector<4x48xf32> to vector<4x8xf32>
    %188 = vector.extract_strided_slice %156 {offsets = [0, 24], sizes = [4, 8], strides = [1, 1]} : vector<4x48xf32> to vector<4x8xf32>
    %189 = arith.addf %187, %188 : vector<4x8xf32>
    %190 = arith.negf %189 : vector<4x8xf32>
    %191 = math.exp %190 : vector<4x8xf32>
    %cst_59 = arith.constant 1.000000e+00 : f32
    %192 = vector.broadcast %cst_59 : f32 to vector<4x8xf32>
    %193 = arith.addf %192, %191 : vector<4x8xf32>
    %194 = arith.divf %192, %193 : vector<4x8xf32>
    %195 = vector.extract_strided_slice %160 {offsets = [0, 32], sizes = [4, 8], strides = [1, 1]} : vector<4x48xf32> to vector<4x8xf32>
    %196 = vector.extract_strided_slice %156 {offsets = [0, 32], sizes = [4, 8], strides = [1, 1]} : vector<4x48xf32> to vector<4x8xf32>
    %197 = arith.addf %195, %196 : vector<4x8xf32>
    %198 = arith.negf %197 : vector<4x8xf32>
    %199 = math.exp %198 : vector<4x8xf32>
    %cst_60 = arith.constant 1.000000e+00 : f32
    %200 = vector.broadcast %cst_60 : f32 to vector<4x8xf32>
    %201 = arith.addf %200, %199 : vector<4x8xf32>
    %202 = arith.divf %200, %201 : vector<4x8xf32>
    %203 = vector.extract_strided_slice %160 {offsets = [0, 40], sizes = [4, 8], strides = [1, 1]} : vector<4x48xf32> to vector<4x8xf32>
    %204 = vector.extract_strided_slice %156 {offsets = [0, 40], sizes = [4, 8], strides = [1, 1]} : vector<4x48xf32> to vector<4x8xf32>
    %205 = arith.mulf %194, %204 : vector<4x8xf32>
    %206 = arith.addf %203, %205 : vector<4x8xf32>
    %207 = math.tanh %206 : vector<4x8xf32>
    %cst_61 = arith.constant 1.000000e+00 : f32
    %208 = vector.broadcast %cst_61 : f32 to vector<4x8xf32>
    %209 = arith.subf %208, %202 : vector<4x8xf32>
    %210 = arith.mulf %209, %207 : vector<4x8xf32>
    %211 = arith.mulf %202, %139 : vector<4x8xf32>
    %212 = arith.addf %210, %211 : vector<4x8xf32>
    %cst_62 = arith.constant -5.000000e+00 : f32
    %cst_63 = arith.constant 5.000000e+00 : f32
    %213 = vector.broadcast %cst_62 : f32 to vector<4x8xf32>
    %214 = arith.maximumf %213, %186 : vector<4x8xf32>
    %215 = vector.broadcast %cst_63 : f32 to vector<4x8xf32>
    %216 = arith.minimumf %215, %214 : vector<4x8xf32>
    %cst_64 = arith.constant -5.000000e+00 : f32
    %cst_65 = arith.constant 5.000000e+00 : f32
    %217 = vector.broadcast %cst_64 : f32 to vector<4x8xf32>
    %218 = arith.maximumf %217, %212 : vector<4x8xf32>
    %219 = vector.broadcast %cst_65 : f32 to vector<4x8xf32>
    %220 = arith.minimumf %219, %218 : vector<4x8xf32>
    %c2_66 = arith.constant 2 : index
    %c0_67 = arith.constant 0 : index
    %c0_68 = arith.constant 0 : index
    %221 = vector.load %arg4[%c2_66, %c0_67, %c0_68] : memref<10x4x16xf32, #tpu.memory_space<vmem>>, vector<1x4x8xf32>
    %222 = vector.shape_cast %221 : vector<1x4x8xf32> to vector<4x8xf32>
    %223 = vector.shape_cast %216 : vector<4x8xf32> to vector<1x4x8xf32>
    tpu.vector_store %arg4[%c2_66, %c0_67, %c0_68], %223 {strides = array<i32>} : memref<10x4x16xf32, #tpu.memory_space<vmem>>, vector<1x4x8xf32>,
    %c7_69 = arith.constant 7 : index
    %c0_70 = arith.constant 0 : index
    %c8_71 = arith.constant 8 : index
    %224 = vector.load %arg4[%c7_69, %c0_70, %c8_71] : memref<10x4x16xf32, #tpu.memory_space<vmem>>, vector<1x4x8xf32>
    %225 = vector.shape_cast %224 : vector<1x4x8xf32> to vector<4x8xf32>
    %226 = vector.shape_cast %220 : vector<4x8xf32> to vector<1x4x8xf32>
    tpu.vector_store %arg4[%c7_69, %c0_70, %c8_71], %226 {strides = array<i32>} : memref<10x4x16xf32, #tpu.memory_space<vmem>>, vector<1x4x8xf32>,
    %227 = tpu.concatenate %186, %212 in 1 : vector<4x8xf32>, vector<4x8xf32> -> vector<4x16xf32>
    %cst_72 = arith.constant dense<0.000000e+00> : vector<4x48xf32>
    %228 = tpu.matmul %227, %0, %cst_72 {dimension_numbers = #tpu.dot_dimension_numbers<[1], [0], [0], [1], [0, 0, 1, 1], [], []>} : vector<4x16xf32>, vector<16x48xf32>, vector<4x48xf32> -> vector<4x48xf32>
    %229 = arith.addf %228, %3 : vector<4x48xf32>
    %c3 = arith.constant 3 : index
    %c0_73 = arith.constant 0 : index
    %c0_74 = arith.constant 0 : index
    %230 = vector.load %arg0[%c3, %c0_73, %c0_74] : memref<10x4x48xf32, #tpu.memory_space<vmem>>, vector<1x4x48xf32>
    %231 = vector.shape_cast %230 : vector<1x4x48xf32> to vector<4x48xf32>
    %c6 = arith.constant 6 : index
    %c0_75 = arith.constant 0 : index
    %c0_76 = arith.constant 0 : index
    %232 = vector.load %arg0[%c6, %c0_75, %c0_76] : memref<10x4x48xf32, #tpu.memory_space<vmem>>, vector<1x4x48xf32>
    %233 = vector.shape_cast %232 : vector<1x4x48xf32> to vector<4x48xf32>
    %234 = vector.extract_strided_slice %231 {offsets = [0, 0], sizes = [4, 8], strides = [1, 1]} : vector<4x48xf32> to vector<4x8xf32>
    %235 = vector.extract_strided_slice %229 {offsets = [0, 0], sizes = [4, 8], strides = [1, 1]} : vector<4x48xf32> to vector<4x8xf32>
    %236 = arith.addf %234, %235 : vector<4x8xf32>
    %237 = arith.negf %236 : vector<4x8xf32>
    %238 = math.exp %237 : vector<4x8xf32>
    %cst_77 = arith.constant 1.000000e+00 : f32
    %239 = vector.broadcast %cst_77 : f32 to vector<4x8xf32>
    %240 = arith.addf %239, %238 : vector<4x8xf32>
    %241 = arith.divf %239, %240 : vector<4x8xf32>
    %242 = vector.extract_strided_slice %231 {offsets = [0, 8], sizes = [4, 8], strides = [1, 1]} : vector<4x48xf32> to vector<4x8xf32>
    %243 = vector.extract_strided_slice %229 {offsets = [0, 8], sizes = [4, 8], strides = [1, 1]} : vector<4x48xf32> to vector<4x8xf32>
    %244 = arith.addf %242, %243 : vector<4x8xf32>
    %245 = arith.negf %244 : vector<4x8xf32>
    %246 = math.exp %245 : vector<4x8xf32>
    %cst_78 = arith.constant 1.000000e+00 : f32
    %247 = vector.broadcast %cst_78 : f32 to vector<4x8xf32>
    %248 = arith.addf %247, %246 : vector<4x8xf32>
    %249 = arith.divf %247, %248 : vector<4x8xf32>
    %250 = vector.extract_strided_slice %231 {offsets = [0, 16], sizes = [4, 8], strides = [1, 1]} : vector<4x48xf32> to vector<4x8xf32>
    %251 = vector.extract_strided_slice %229 {offsets = [0, 16], sizes = [4, 8], strides = [1, 1]} : vector<4x48xf32> to vector<4x8xf32>
    %252 = arith.mulf %241, %251 : vector<4x8xf32>
    %253 = arith.addf %250, %252 : vector<4x8xf32>
    %254 = math.tanh %253 : vector<4x8xf32>
    %cst_79 = arith.constant 1.000000e+00 : f32
    %255 = vector.broadcast %cst_79 : f32 to vector<4x8xf32>
    %256 = arith.subf %255, %249 : vector<4x8xf32>
    %257 = arith.mulf %256, %254 : vector<4x8xf32>
    %258 = arith.mulf %249, %186 : vector<4x8xf32>
    %259 = arith.addf %257, %258 : vector<4x8xf32>
    %260 = vector.extract_strided_slice %233 {offsets = [0, 24], sizes = [4, 8], strides = [1, 1]} : vector<4x48xf32> to vector<4x8xf32>
    %261 = vector.extract_strided_slice %229 {offsets = [0, 24], sizes = [4, 8], strides = [1, 1]} : vector<4x48xf32> to vector<4x8xf32>
    %262 = arith.addf %260, %261 : vector<4x8xf32>
    %263 = arith.negf %262 : vector<4x8xf32>
    %264 = math.exp %263 : vector<4x8xf32>
    %cst_80 = arith.constant 1.000000e+00 : f32
    %265 = vector.broadcast %cst_80 : f32 to vector<4x8xf32>
    %266 = arith.addf %265, %264 : vector<4x8xf32>
    %267 = arith.divf %265, %266 : vector<4x8xf32>
    %268 = vector.extract_strided_slice %233 {offsets = [0, 32], sizes = [4, 8], strides = [1, 1]} : vector<4x48xf32> to vector<4x8xf32>
    %269 = vector.extract_strided_slice %229 {offsets = [0, 32], sizes = [4, 8], strides = [1, 1]} : vector<4x48xf32> to vector<4x8xf32>
    %270 = arith.addf %268, %269 : vector<4x8xf32>
    %271 = arith.negf %270 : vector<4x8xf32>
    %272 = math.exp %271 : vector<4x8xf32>
    %cst_81 = arith.constant 1.000000e+00 : f32
    %273 = vector.broadcast %cst_81 : f32 to vector<4x8xf32>
    %274 = arith.addf %273, %272 : vector<4x8xf32>
    %275 = arith.divf %273, %274 : vector<4x8xf32>
    %276 = vector.extract_strided_slice %233 {offsets = [0, 40], sizes = [4, 8], strides = [1, 1]} : vector<4x48xf32> to vector<4x8xf32>
    %277 = vector.extract_strided_slice %229 {offsets = [0, 40], sizes = [4, 8], strides = [1, 1]} : vector<4x48xf32> to vector<4x8xf32>
    %278 = arith.mulf %267, %277 : vector<4x8xf32>
    %279 = arith.addf %276, %278 : vector<4x8xf32>
    %280 = math.tanh %279 : vector<4x8xf32>
    %cst_82 = arith.constant 1.000000e+00 : f32
    %281 = vector.broadcast %cst_82 : f32 to vector<4x8xf32>
    %282 = arith.subf %281, %275 : vector<4x8xf32>
    %283 = arith.mulf %282, %280 : vector<4x8xf32>
    %284 = arith.mulf %275, %212 : vector<4x8xf32>
    %285 = arith.addf %283, %284 : vector<4x8xf32>
    %cst_83 = arith.constant -5.000000e+00 : f32
    %cst_84 = arith.constant 5.000000e+00 : f32
    %286 = vector.broadcast %cst_83 : f32 to vector<4x8xf32>
    %287 = arith.maximumf %286, %259 : vector<4x8xf32>
    %288 = vector.broadcast %cst_84 : f32 to vector<4x8xf32>
    %289 = arith.minimumf %288, %287 : vector<4x8xf32>
    %cst_85 = arith.constant -5.000000e+00 : f32
    %cst_86 = arith.constant 5.000000e+00 : f32
    %290 = vector.broadcast %cst_85 : f32 to vector<4x8xf32>
    %291 = arith.maximumf %290, %285 : vector<4x8xf32>
    %292 = vector.broadcast %cst_86 : f32 to vector<4x8xf32>
    %293 = arith.minimumf %292, %291 : vector<4x8xf32>
    %c3_87 = arith.constant 3 : index
    %c0_88 = arith.constant 0 : index
    %c0_89 = arith.constant 0 : index
    %294 = vector.load %arg4[%c3_87, %c0_88, %c0_89] : memref<10x4x16xf32, #tpu.memory_space<vmem>>, vector<1x4x8xf32>
    %295 = vector.shape_cast %294 : vector<1x4x8xf32> to vector<4x8xf32>
    %296 = vector.shape_cast %289 : vector<4x8xf32> to vector<1x4x8xf32>
    tpu.vector_store %arg4[%c3_87, %c0_88, %c0_89], %296 {strides = array<i32>} : memref<10x4x16xf32, #tpu.memory_space<vmem>>, vector<1x4x8xf32>,
    %c6_90 = arith.constant 6 : index
    %c0_91 = arith.constant 0 : index
    %c8_92 = arith.constant 8 : index
    %297 = vector.load %arg4[%c6_90, %c0_91, %c8_92] : memref<10x4x16xf32, #tpu.memory_space<vmem>>, vector<1x4x8xf32>
    %298 = vector.shape_cast %297 : vector<1x4x8xf32> to vector<4x8xf32>
    %299 = vector.shape_cast %293 : vector<4x8xf32> to vector<1x4x8xf32>
    tpu.vector_store %arg4[%c6_90, %c0_91, %c8_92], %299 {strides = array<i32>} : memref<10x4x16xf32, #tpu.memory_space<vmem>>, vector<1x4x8xf32>,
    %300 = tpu.concatenate %259, %285 in 1 : vector<4x8xf32>, vector<4x8xf32> -> vector<4x16xf32>
    %cst_93 = arith.constant dense<0.000000e+00> : vector<4x48xf32>
    %301 = tpu.matmul %300, %0, %cst_93 {dimension_numbers = #tpu.dot_dimension_numbers<[1], [0], [0], [1], [0, 0, 1, 1], [], []>} : vector<4x16xf32>, vector<16x48xf32>, vector<4x48xf32> -> vector<4x48xf32>
    %302 = arith.addf %301, %3 : vector<4x48xf32>
    %c4 = arith.constant 4 : index
    %c0_94 = arith.constant 0 : index
    %c0_95 = arith.constant 0 : index
    %303 = vector.load %arg0[%c4, %c0_94, %c0_95] : memref<10x4x48xf32, #tpu.memory_space<vmem>>, vector<1x4x48xf32>
    %304 = vector.shape_cast %303 : vector<1x4x48xf32> to vector<4x48xf32>
    %c5 = arith.constant 5 : index
    %c0_96 = arith.constant 0 : index
    %c0_97 = arith.constant 0 : index
    %305 = vector.load %arg0[%c5, %c0_96, %c0_97] : memref<10x4x48xf32, #tpu.memory_space<vmem>>, vector<1x4x48xf32>
    %306 = vector.shape_cast %305 : vector<1x4x48xf32> to vector<4x48xf32>
    %307 = vector.extract_strided_slice %304 {offsets = [0, 0], sizes = [4, 8], strides = [1, 1]} : vector<4x48xf32> to vector<4x8xf32>
    %308 = vector.extract_strided_slice %302 {offsets = [0, 0], sizes = [4, 8], strides = [1, 1]} : vector<4x48xf32> to vector<4x8xf32>
    %309 = arith.addf %307, %308 : vector<4x8xf32>
    %310 = arith.negf %309 : vector<4x8xf32>
    %311 = math.exp %310 : vector<4x8xf32>
    %cst_98 = arith.constant 1.000000e+00 : f32
    %312 = vector.broadcast %cst_98 : f32 to vector<4x8xf32>
    %313 = arith.addf %312, %311 : vector<4x8xf32>
    %314 = arith.divf %312, %313 : vector<4x8xf32>
    %315 = vector.extract_strided_slice %304 {offsets = [0, 8], sizes = [4, 8], strides = [1, 1]} : vector<4x48xf32> to vector<4x8xf32>
    %316 = vector.extract_strided_slice %302 {offsets = [0, 8], sizes = [4, 8], strides = [1, 1]} : vector<4x48xf32> to vector<4x8xf32>
    %317 = arith.addf %315, %316 : vector<4x8xf32>
    %318 = arith.negf %317 : vector<4x8xf32>
    %319 = math.exp %318 : vector<4x8xf32>
    %cst_99 = arith.constant 1.000000e+00 : f32
    %320 = vector.broadcast %cst_99 : f32 to vector<4x8xf32>
    %321 = arith.addf %320, %319 : vector<4x8xf32>
    %322 = arith.divf %320, %321 : vector<4x8xf32>
    %323 = vector.extract_strided_slice %304 {offsets = [0, 16], sizes = [4, 8], strides = [1, 1]} : vector<4x48xf32> to vector<4x8xf32>
    %324 = vector.extract_strided_slice %302 {offsets = [0, 16], sizes = [4, 8], strides = [1, 1]} : vector<4x48xf32> to vector<4x8xf32>
    %325 = arith.mulf %314, %324 : vector<4x8xf32>
    %326 = arith.addf %323, %325 : vector<4x8xf32>
    %327 = math.tanh %326 : vector<4x8xf32>
    %cst_100 = arith.constant 1.000000e+00 : f32
    %328 = vector.broadcast %cst_100 : f32 to vector<4x8xf32>
    %329 = arith.subf %328, %322 : vector<4x8xf32>
    %330 = arith.mulf %329, %327 : vector<4x8xf32>
    %331 = arith.mulf %322, %259 : vector<4x8xf32>
    %332 = arith.addf %330, %331 : vector<4x8xf32>
    %333 = vector.extract_strided_slice %306 {offsets = [0, 24], sizes = [4, 8], strides = [1, 1]} : vector<4x48xf32> to vector<4x8xf32>
    %334 = vector.extract_strided_slice %302 {offsets = [0, 24], sizes = [4, 8], strides = [1, 1]} : vector<4x48xf32> to vector<4x8xf32>
    %335 = arith.addf %333, %334 : vector<4x8xf32>
    %336 = arith.negf %335 : vector<4x8xf32>
    %337 = math.exp %336 : vector<4x8xf32>
    %cst_101 = arith.constant 1.000000e+00 : f32
    %338 = vector.broadcast %cst_101 : f32 to vector<4x8xf32>
    %339 = arith.addf %338, %337 : vector<4x8xf32>
    %340 = arith.divf %338, %339 : vector<4x8xf32>
    %341 = vector.extract_strided_slice %306 {offsets = [0, 32], sizes = [4, 8], strides = [1, 1]} : vector<4x48xf32> to vector<4x8xf32>
    %342 = vector.extract_strided_slice %302 {offsets = [0, 32], sizes = [4, 8], strides = [1, 1]} : vector<4x48xf32> to vector<4x8xf32>
    %343 = arith.addf %341, %342 : vector<4x8xf32>
    %344 = arith.negf %343 : vector<4x8xf32>
    %345 = math.exp %344 : vector<4x8xf32>
    %cst_102 = arith.constant 1.000000e+00 : f32
    %346 = vector.broadcast %cst_102 : f32 to vector<4x8xf32>
    %347 = arith.addf %346, %345 : vector<4x8xf32>
    %348 = arith.divf %346, %347 : vector<4x8xf32>
    %349 = vector.extract_strided_slice %306 {offsets = [0, 40], sizes = [4, 8], strides = [1, 1]} : vector<4x48xf32> to vector<4x8xf32>
    %350 = vector.extract_strided_slice %302 {offsets = [0, 40], sizes = [4, 8], strides = [1, 1]} : vector<4x48xf32> to vector<4x8xf32>
    %351 = arith.mulf %340, %350 : vector<4x8xf32>
    %352 = arith.addf %349, %351 : vector<4x8xf32>
    %353 = math.tanh %352 : vector<4x8xf32>
    %cst_103 = arith.constant 1.000000e+00 : f32
    %354 = vector.broadcast %cst_103 : f32 to vector<4x8xf32>
    %355 = arith.subf %354, %348 : vector<4x8xf32>
    %356 = arith.mulf %355, %353 : vector<4x8xf32>
    %357 = arith.mulf %348, %285 : vector<4x8xf32>
    %358 = arith.addf %356, %357 : vector<4x8xf32>
    %cst_104 = arith.constant -5.000000e+00 : f32
    %cst_105 = arith.constant 5.000000e+00 : f32
    %359 = vector.broadcast %cst_104 : f32 to vector<4x8xf32>
    %360 = arith.maximumf %359, %332 : vector<4x8xf32>
    %361 = vector.broadcast %cst_105 : f32 to vector<4x8xf32>
    %362 = arith.minimumf %361, %360 : vector<4x8xf32>
    %cst_106 = arith.constant -5.000000e+00 : f32
    %cst_107 = arith.constant 5.000000e+00 : f32
    %363 = vector.broadcast %cst_106 : f32 to vector<4x8xf32>
    %364 = arith.maximumf %363, %358 : vector<4x8xf32>
    %365 = vector.broadcast %cst_107 : f32 to vector<4x8xf32>
    %366 = arith.minimumf %365, %364 : vector<4x8xf32>
    %c4_108 = arith.constant 4 : index
    %c0_109 = arith.constant 0 : index
    %c0_110 = arith.constant 0 : index
    %367 = vector.load %arg4[%c4_108, %c0_109, %c0_110] : memref<10x4x16xf32, #tpu.memory_space<vmem>>, vector<1x4x8xf32>
    %368 = vector.shape_cast %367 : vector<1x4x8xf32> to vector<4x8xf32>
    %369 = vector.shape_cast %362 : vector<4x8xf32> to vector<1x4x8xf32>
    tpu.vector_store %arg4[%c4_108, %c0_109, %c0_110], %369 {strides = array<i32>} : memref<10x4x16xf32, #tpu.memory_space<vmem>>, vector<1x4x8xf32>,
    %c5_111 = arith.constant 5 : index
    %c0_112 = arith.constant 0 : index
    %c8_113 = arith.constant 8 : index
    %370 = vector.load %arg4[%c5_111, %c0_112, %c8_113] : memref<10x4x16xf32, #tpu.memory_space<vmem>>, vector<1x4x8xf32>
    %371 = vector.shape_cast %370 : vector<1x4x8xf32> to vector<4x8xf32>
    %372 = vector.shape_cast %366 : vector<4x8xf32> to vector<1x4x8xf32>
    tpu.vector_store %arg4[%c5_111, %c0_112, %c8_113], %372 {strides = array<i32>} : memref<10x4x16xf32, #tpu.memory_space<vmem>>, vector<1x4x8xf32>,
    %373 = tpu.concatenate %332, %358 in 1 : vector<4x8xf32>, vector<4x8xf32> -> vector<4x16xf32>
    %cst_114 = arith.constant dense<0.000000e+00> : vector<4x48xf32>
    %374 = tpu.matmul %373, %0, %cst_114 {dimension_numbers = #tpu.dot_dimension_numbers<[1], [0], [0], [1], [0, 0, 1, 1], [], []>} : vector<4x16xf32>, vector<16x48xf32>, vector<4x48xf32> -> vector<4x48xf32>
    %375 = arith.addf %374, %3 : vector<4x48xf32>
    %c5_115 = arith.constant 5 : index
    %c0_116 = arith.constant 0 : index
    %c0_117 = arith.constant 0 : index
    %376 = vector.load %arg0[%c5_115, %c0_116, %c0_117] : memref<10x4x48xf32, #tpu.memory_space<vmem>>, vector<1x4x48xf32>
    %377 = vector.shape_cast %376 : vector<1x4x48xf32> to vector<4x48xf32>
    %c4_118 = arith.constant 4 : index
    %c0_119 = arith.constant 0 : index
    %c0_120 = arith.constant 0 : index
    %378 = vector.load %arg0[%c4_118, %c0_119, %c0_120] : memref<10x4x48xf32, #tpu.memory_space<vmem>>, vector<1x4x48xf32>
    %379 = vector.shape_cast %378 : vector<1x4x48xf32> to vector<4x48xf32>
    %380 = vector.extract_strided_slice %377 {offsets = [0, 0], sizes = [4, 8], strides = [1, 1]} : vector<4x48xf32> to vector<4x8xf32>
    %381 = vector.extract_strided_slice %375 {offsets = [0, 0], sizes = [4, 8], strides = [1, 1]} : vector<4x48xf32> to vector<4x8xf32>
    %382 = arith.addf %380, %381 : vector<4x8xf32>
    %383 = arith.negf %382 : vector<4x8xf32>
    %384 = math.exp %383 : vector<4x8xf32>
    %cst_121 = arith.constant 1.000000e+00 : f32
    %385 = vector.broadcast %cst_121 : f32 to vector<4x8xf32>
    %386 = arith.addf %385, %384 : vector<4x8xf32>
    %387 = arith.divf %385, %386 : vector<4x8xf32>
    %388 = vector.extract_strided_slice %377 {offsets = [0, 8], sizes = [4, 8], strides = [1, 1]} : vector<4x48xf32> to vector<4x8xf32>
    %389 = vector.extract_strided_slice %375 {offsets = [0, 8], sizes = [4, 8], strides = [1, 1]} : vector<4x48xf32> to vector<4x8xf32>
    %390 = arith.addf %388, %389 : vector<4x8xf32>
    %391 = arith.negf %390 : vector<4x8xf32>
    %392 = math.exp %391 : vector<4x8xf32>
    %cst_122 = arith.constant 1.000000e+00 : f32
    %393 = vector.broadcast %cst_122 : f32 to vector<4x8xf32>
    %394 = arith.addf %393, %392 : vector<4x8xf32>
    %395 = arith.divf %393, %394 : vector<4x8xf32>
    %396 = vector.extract_strided_slice %377 {offsets = [0, 16], sizes = [4, 8], strides = [1, 1]} : vector<4x48xf32> to vector<4x8xf32>
    %397 = vector.extract_strided_slice %375 {offsets = [0, 16], sizes = [4, 8], strides = [1, 1]} : vector<4x48xf32> to vector<4x8xf32>
    %398 = arith.mulf %387, %397 : vector<4x8xf32>
    %399 = arith.addf %396, %398 : vector<4x8xf32>
    %400 = math.tanh %399 : vector<4x8xf32>
    %cst_123 = arith.constant 1.000000e+00 : f32
    %401 = vector.broadcast %cst_123 : f32 to vector<4x8xf32>
    %402 = arith.subf %401, %395 : vector<4x8xf32>
    %403 = arith.mulf %402, %400 : vector<4x8xf32>
    %404 = arith.mulf %395, %332 : vector<4x8xf32>
    %405 = arith.addf %403, %404 : vector<4x8xf32>
    %406 = vector.extract_strided_slice %379 {offsets = [0, 24], sizes = [4, 8], strides = [1, 1]} : vector<4x48xf32> to vector<4x8xf32>
    %407 = vector.extract_strided_slice %375 {offsets = [0, 24], sizes = [4, 8], strides = [1, 1]} : vector<4x48xf32> to vector<4x8xf32>
    %408 = arith.addf %406, %407 : vector<4x8xf32>
    %409 = arith.negf %408 : vector<4x8xf32>
    %410 = math.exp %409 : vector<4x8xf32>
    %cst_124 = arith.constant 1.000000e+00 : f32
    %411 = vector.broadcast %cst_124 : f32 to vector<4x8xf32>
    %412 = arith.addf %411, %410 : vector<4x8xf32>
    %413 = arith.divf %411, %412 : vector<4x8xf32>
    %414 = vector.extract_strided_slice %379 {offsets = [0, 32], sizes = [4, 8], strides = [1, 1]} : vector<4x48xf32> to vector<4x8xf32>
    %415 = vector.extract_strided_slice %375 {offsets = [0, 32], sizes = [4, 8], strides = [1, 1]} : vector<4x48xf32> to vector<4x8xf32>
    %416 = arith.addf %414, %415 : vector<4x8xf32>
    %417 = arith.negf %416 : vector<4x8xf32>
    %418 = math.exp %417 : vector<4x8xf32>
    %cst_125 = arith.constant 1.000000e+00 : f32
    %419 = vector.broadcast %cst_125 : f32 to vector<4x8xf32>
    %420 = arith.addf %419, %418 : vector<4x8xf32>
    %421 = arith.divf %419, %420 : vector<4x8xf32>
    %422 = vector.extract_strided_slice %379 {offsets = [0, 40], sizes = [4, 8], strides = [1, 1]} : vector<4x48xf32> to vector<4x8xf32>
    %423 = vector.extract_strided_slice %375 {offsets = [0, 40], sizes = [4, 8], strides = [1, 1]} : vector<4x48xf32> to vector<4x8xf32>
    %424 = arith.mulf %413, %423 : vector<4x8xf32>
    %425 = arith.addf %422, %424 : vector<4x8xf32>
    %426 = math.tanh %425 : vector<4x8xf32>
    %cst_126 = arith.constant 1.000000e+00 : f32
    %427 = vector.broadcast %cst_126 : f32 to vector<4x8xf32>
    %428 = arith.subf %427, %421 : vector<4x8xf32>
    %429 = arith.mulf %428, %426 : vector<4x8xf32>
    %430 = arith.mulf %421, %358 : vector<4x8xf32>
    %431 = arith.addf %429, %430 : vector<4x8xf32>
    %cst_127 = arith.constant -5.000000e+00 : f32
    %cst_128 = arith.constant 5.000000e+00 : f32
    %432 = vector.broadcast %cst_127 : f32 to vector<4x8xf32>
    %433 = arith.maximumf %432, %405 : vector<4x8xf32>
    %434 = vector.broadcast %cst_128 : f32 to vector<4x8xf32>
    %435 = arith.minimumf %434, %433 : vector<4x8xf32>
    %cst_129 = arith.constant -5.000000e+00 : f32
    %cst_130 = arith.constant 5.000000e+00 : f32
    %436 = vector.broadcast %cst_129 : f32 to vector<4x8xf32>
    %437 = arith.maximumf %436, %431 : vector<4x8xf32>
    %438 = vector.broadcast %cst_130 : f32 to vector<4x8xf32>
    %439 = arith.minimumf %438, %437 : vector<4x8xf32>
    %c5_131 = arith.constant 5 : index
    %c0_132 = arith.constant 0 : index
    %c0_133 = arith.constant 0 : index
    %440 = vector.load %arg4[%c5_131, %c0_132, %c0_133] : memref<10x4x16xf32, #tpu.memory_space<vmem>>, vector<1x4x8xf32>
    %441 = vector.shape_cast %440 : vector<1x4x8xf32> to vector<4x8xf32>
    %442 = vector.shape_cast %435 : vector<4x8xf32> to vector<1x4x8xf32>
    tpu.vector_store %arg4[%c5_131, %c0_132, %c0_133], %442 {strides = array<i32>} : memref<10x4x16xf32, #tpu.memory_space<vmem>>, vector<1x4x8xf32>,
    %c4_134 = arith.constant 4 : index
    %c0_135 = arith.constant 0 : index
    %c8_136 = arith.constant 8 : index
    %443 = vector.load %arg4[%c4_134, %c0_135, %c8_136] : memref<10x4x16xf32, #tpu.memory_space<vmem>>, vector<1x4x8xf32>
    %444 = vector.shape_cast %443 : vector<1x4x8xf32> to vector<4x8xf32>
    %445 = vector.shape_cast %439 : vector<4x8xf32> to vector<1x4x8xf32>
    tpu.vector_store %arg4[%c4_134, %c0_135, %c8_136], %445 {strides = array<i32>} : memref<10x4x16xf32, #tpu.memory_space<vmem>>, vector<1x4x8xf32>,
    %446 = tpu.concatenate %405, %431 in 1 : vector<4x8xf32>, vector<4x8xf32> -> vector<4x16xf32>
    %cst_137 = arith.constant dense<0.000000e+00> : vector<4x48xf32>
    %447 = tpu.matmul %446, %0, %cst_137 {dimension_numbers = #tpu.dot_dimension_numbers<[1], [0], [0], [1], [0, 0, 1, 1], [], []>} : vector<4x16xf32>, vector<16x48xf32>, vector<4x48xf32> -> vector<4x48xf32>
    %448 = arith.addf %447, %3 : vector<4x48xf32>
    %c6_138 = arith.constant 6 : index
    %c0_139 = arith.constant 0 : index
    %c0_140 = arith.constant 0 : index
    %449 = vector.load %arg0[%c6_138, %c0_139, %c0_140] : memref<10x4x48xf32, #tpu.memory_space<vmem>>, vector<1x4x48xf32>
    %450 = vector.shape_cast %449 : vector<1x4x48xf32> to vector<4x48xf32>
    %c3_141 = arith.constant 3 : index
    %c0_142 = arith.constant 0 : index
    %c0_143 = arith.constant 0 : index
    %451 = vector.load %arg0[%c3_141, %c0_142, %c0_143] : memref<10x4x48xf32, #tpu.memory_space<vmem>>, vector<1x4x48xf32>
    %452 = vector.shape_cast %451 : vector<1x4x48xf32> to vector<4x48xf32>
    %453 = vector.extract_strided_slice %450 {offsets = [0, 0], sizes = [4, 8], strides = [1, 1]} : vector<4x48xf32> to vector<4x8xf32>
    %454 = vector.extract_strided_slice %448 {offsets = [0, 0], sizes = [4, 8], strides = [1, 1]} : vector<4x48xf32> to vector<4x8xf32>
    %455 = arith.addf %453, %454 : vector<4x8xf32>
    %456 = arith.negf %455 : vector<4x8xf32>
    %457 = math.exp %456 : vector<4x8xf32>
    %cst_144 = arith.constant 1.000000e+00 : f32
    %458 = vector.broadcast %cst_144 : f32 to vector<4x8xf32>
    %459 = arith.addf %458, %457 : vector<4x8xf32>
    %460 = arith.divf %458, %459 : vector<4x8xf32>
    %461 = vector.extract_strided_slice %450 {offsets = [0, 8], sizes = [4, 8], strides = [1, 1]} : vector<4x48xf32> to vector<4x8xf32>
    %462 = vector.extract_strided_slice %448 {offsets = [0, 8], sizes = [4, 8], strides = [1, 1]} : vector<4x48xf32> to vector<4x8xf32>
    %463 = arith.addf %461, %462 : vector<4x8xf32>
    %464 = arith.negf %463 : vector<4x8xf32>
    %465 = math.exp %464 : vector<4x8xf32>
    %cst_145 = arith.constant 1.000000e+00 : f32
    %466 = vector.broadcast %cst_145 : f32 to vector<4x8xf32>
    %467 = arith.addf %466, %465 : vector<4x8xf32>
    %468 = arith.divf %466, %467 : vector<4x8xf32>
    %469 = vector.extract_strided_slice %450 {offsets = [0, 16], sizes = [4, 8], strides = [1, 1]} : vector<4x48xf32> to vector<4x8xf32>
    %470 = vector.extract_strided_slice %448 {offsets = [0, 16], sizes = [4, 8], strides = [1, 1]} : vector<4x48xf32> to vector<4x8xf32>
    %471 = arith.mulf %460, %470 : vector<4x8xf32>
    %472 = arith.addf %469, %471 : vector<4x8xf32>
    %473 = math.tanh %472 : vector<4x8xf32>
    %cst_146 = arith.constant 1.000000e+00 : f32
    %474 = vector.broadcast %cst_146 : f32 to vector<4x8xf32>
    %475 = arith.subf %474, %468 : vector<4x8xf32>
    %476 = arith.mulf %475, %473 : vector<4x8xf32>
    %477 = arith.mulf %468, %405 : vector<4x8xf32>
    %478 = arith.addf %476, %477 : vector<4x8xf32>
    %479 = vector.extract_strided_slice %452 {offsets = [0, 24], sizes = [4, 8], strides = [1, 1]} : vector<4x48xf32> to vector<4x8xf32>
    %480 = vector.extract_strided_slice %448 {offsets = [0, 24], sizes = [4, 8], strides = [1, 1]} : vector<4x48xf32> to vector<4x8xf32>
    %481 = arith.addf %479, %480 : vector<4x8xf32>
    %482 = arith.negf %481 : vector<4x8xf32>
    %483 = math.exp %482 : vector<4x8xf32>
    %cst_147 = arith.constant 1.000000e+00 : f32
    %484 = vector.broadcast %cst_147 : f32 to vector<4x8xf32>
    %485 = arith.addf %484, %483 : vector<4x8xf32>
    %486 = arith.divf %484, %485 : vector<4x8xf32>
    %487 = vector.extract_strided_slice %452 {offsets = [0, 32], sizes = [4, 8], strides = [1, 1]} : vector<4x48xf32> to vector<4x8xf32>
    %488 = vector.extract_strided_slice %448 {offsets = [0, 32], sizes = [4, 8], strides = [1, 1]} : vector<4x48xf32> to vector<4x8xf32>
    %489 = arith.addf %487, %488 : vector<4x8xf32>
    %490 = arith.negf %489 : vector<4x8xf32>
    %491 = math.exp %490 : vector<4x8xf32>
    %cst_148 = arith.constant 1.000000e+00 : f32
    %492 = vector.broadcast %cst_148 : f32 to vector<4x8xf32>
    %493 = arith.addf %492, %491 : vector<4x8xf32>
    %494 = arith.divf %492, %493 : vector<4x8xf32>
    %495 = vector.extract_strided_slice %452 {offsets = [0, 40], sizes = [4, 8], strides = [1, 1]} : vector<4x48xf32> to vector<4x8xf32>
    %496 = vector.extract_strided_slice %448 {offsets = [0, 40], sizes = [4, 8], strides = [1, 1]} : vector<4x48xf32> to vector<4x8xf32>
    %497 = arith.mulf %486, %496 : vector<4x8xf32>
    %498 = arith.addf %495, %497 : vector<4x8xf32>
    %499 = math.tanh %498 : vector<4x8xf32>
    %cst_149 = arith.constant 1.000000e+00 : f32
    %500 = vector.broadcast %cst_149 : f32 to vector<4x8xf32>
    %501 = arith.subf %500, %494 : vector<4x8xf32>
    %502 = arith.mulf %501, %499 : vector<4x8xf32>
    %503 = arith.mulf %494, %431 : vector<4x8xf32>
    %504 = arith.addf %502, %503 : vector<4x8xf32>
    %cst_150 = arith.constant -5.000000e+00 : f32
    %cst_151 = arith.constant 5.000000e+00 : f32
    %505 = vector.broadcast %cst_150 : f32 to vector<4x8xf32>
    %506 = arith.maximumf %505, %478 : vector<4x8xf32>
    %507 = vector.broadcast %cst_151 : f32 to vector<4x8xf32>
    %508 = arith.minimumf %507, %506 : vector<4x8xf32>
    %cst_152 = arith.constant -5.000000e+00 : f32
    %cst_153 = arith.constant 5.000000e+00 : f32
    %509 = vector.broadcast %cst_152 : f32 to vector<4x8xf32>
    %510 = arith.maximumf %509, %504 : vector<4x8xf32>
    %511 = vector.broadcast %cst_153 : f32 to vector<4x8xf32>
    %512 = arith.minimumf %511, %510 : vector<4x8xf32>
    %c6_154 = arith.constant 6 : index
    %c0_155 = arith.constant 0 : index
    %c0_156 = arith.constant 0 : index
    %513 = vector.load %arg4[%c6_154, %c0_155, %c0_156] : memref<10x4x16xf32, #tpu.memory_space<vmem>>, vector<1x4x8xf32>
    %514 = vector.shape_cast %513 : vector<1x4x8xf32> to vector<4x8xf32>
    %515 = vector.shape_cast %508 : vector<4x8xf32> to vector<1x4x8xf32>
    tpu.vector_store %arg4[%c6_154, %c0_155, %c0_156], %515 {strides = array<i32>} : memref<10x4x16xf32, #tpu.memory_space<vmem>>, vector<1x4x8xf32>,
    %c3_157 = arith.constant 3 : index
    %c0_158 = arith.constant 0 : index
    %c8_159 = arith.constant 8 : index
    %516 = vector.load %arg4[%c3_157, %c0_158, %c8_159] : memref<10x4x16xf32, #tpu.memory_space<vmem>>, vector<1x4x8xf32>
    %517 = vector.shape_cast %516 : vector<1x4x8xf32> to vector<4x8xf32>
    %518 = vector.shape_cast %512 : vector<4x8xf32> to vector<1x4x8xf32>
    tpu.vector_store %arg4[%c3_157, %c0_158, %c8_159], %518 {strides = array<i32>} : memref<10x4x16xf32, #tpu.memory_space<vmem>>, vector<1x4x8xf32>,
    %519 = tpu.concatenate %478, %504 in 1 : vector<4x8xf32>, vector<4x8xf32> -> vector<4x16xf32>
    %cst_160 = arith.constant dense<0.000000e+00> : vector<4x48xf32>
    %520 = tpu.matmul %519, %0, %cst_160 {dimension_numbers = #tpu.dot_dimension_numbers<[1], [0], [0], [1], [0, 0, 1, 1], [], []>} : vector<4x16xf32>, vector<16x48xf32>, vector<4x48xf32> -> vector<4x48xf32>
    %521 = arith.addf %520, %3 : vector<4x48xf32>
    %c7_161 = arith.constant 7 : index
    %c0_162 = arith.constant 0 : index
    %c0_163 = arith.constant 0 : index
    %522 = vector.load %arg0[%c7_161, %c0_162, %c0_163] : memref<10x4x48xf32, #tpu.memory_space<vmem>>, vector<1x4x48xf32>
    %523 = vector.shape_cast %522 : vector<1x4x48xf32> to vector<4x48xf32>
    %c2_164 = arith.constant 2 : index
    %c0_165 = arith.constant 0 : index
    %c0_166 = arith.constant 0 : index
    %524 = vector.load %arg0[%c2_164, %c0_165, %c0_166] : memref<10x4x48xf32, #tpu.memory_space<vmem>>, vector<1x4x48xf32>
    %525 = vector.shape_cast %524 : vector<1x4x48xf32> to vector<4x48xf32>
    %526 = vector.extract_strided_slice %523 {offsets = [0, 0], sizes = [4, 8], strides = [1, 1]} : vector<4x48xf32> to vector<4x8xf32>
    %527 = vector.extract_strided_slice %521 {offsets = [0, 0], sizes = [4, 8], strides = [1, 1]} : vector<4x48xf32> to vector<4x8xf32>
    %528 = arith.addf %526, %527 : vector<4x8xf32>
    %529 = arith.negf %528 : vector<4x8xf32>
    %530 = math.exp %529 : vector<4x8xf32>
    %cst_167 = arith.constant 1.000000e+00 : f32
    %531 = vector.broadcast %cst_167 : f32 to vector<4x8xf32>
    %532 = arith.addf %531, %530 : vector<4x8xf32>
    %533 = arith.divf %531, %532 : vector<4x8xf32>
    %534 = vector.extract_strided_slice %523 {offsets = [0, 8], sizes = [4, 8], strides = [1, 1]} : vector<4x48xf32> to vector<4x8xf32>
    %535 = vector.extract_strided_slice %521 {offsets = [0, 8], sizes = [4, 8], strides = [1, 1]} : vector<4x48xf32> to vector<4x8xf32>
    %536 = arith.addf %534, %535 : vector<4x8xf32>
    %537 = arith.negf %536 : vector<4x8xf32>
    %538 = math.exp %537 : vector<4x8xf32>
    %cst_168 = arith.constant 1.000000e+00 : f32
    %539 = vector.broadcast %cst_168 : f32 to vector<4x8xf32>
    %540 = arith.addf %539, %538 : vector<4x8xf32>
    %541 = arith.divf %539, %540 : vector<4x8xf32>
    %542 = vector.extract_strided_slice %523 {offsets = [0, 16], sizes = [4, 8], strides = [1, 1]} : vector<4x48xf32> to vector<4x8xf32>
    %543 = vector.extract_strided_slice %521 {offsets = [0, 16], sizes = [4, 8], strides = [1, 1]} : vector<4x48xf32> to vector<4x8xf32>
    %544 = arith.mulf %533, %543 : vector<4x8xf32>
    %545 = arith.addf %542, %544 : vector<4x8xf32>
    %546 = math.tanh %545 : vector<4x8xf32>
    %cst_169 = arith.constant 1.000000e+00 : f32
    %547 = vector.broadcast %cst_169 : f32 to vector<4x8xf32>
    %548 = arith.subf %547, %541 : vector<4x8xf32>
    %549 = arith.mulf %548, %546 : vector<4x8xf32>
    %550 = arith.mulf %541, %478 : vector<4x8xf32>
    %551 = arith.addf %549, %550 : vector<4x8xf32>
    %552 = vector.extract_strided_slice %525 {offsets = [0, 24], sizes = [4, 8], strides = [1, 1]} : vector<4x48xf32> to vector<4x8xf32>
    %553 = vector.extract_strided_slice %521 {offsets = [0, 24], sizes = [4, 8], strides = [1, 1]} : vector<4x48xf32> to vector<4x8xf32>
    %554 = arith.addf %552, %553 : vector<4x8xf32>
    %555 = arith.negf %554 : vector<4x8xf32>
    %556 = math.exp %555 : vector<4x8xf32>
    %cst_170 = arith.constant 1.000000e+00 : f32
    %557 = vector.broadcast %cst_170 : f32 to vector<4x8xf32>
    %558 = arith.addf %557, %556 : vector<4x8xf32>
    %559 = arith.divf %557, %558 : vector<4x8xf32>
    %560 = vector.extract_strided_slice %525 {offsets = [0, 32], sizes = [4, 8], strides = [1, 1]} : vector<4x48xf32> to vector<4x8xf32>
    %561 = vector.extract_strided_slice %521 {offsets = [0, 32], sizes = [4, 8], strides = [1, 1]} : vector<4x48xf32> to vector<4x8xf32>
    %562 = arith.addf %560, %561 : vector<4x8xf32>
    %563 = arith.negf %562 : vector<4x8xf32>
    %564 = math.exp %563 : vector<4x8xf32>
    %cst_171 = arith.constant 1.000000e+00 : f32
    %565 = vector.broadcast %cst_171 : f32 to vector<4x8xf32>
    %566 = arith.addf %565, %564 : vector<4x8xf32>
    %567 = arith.divf %565, %566 : vector<4x8xf32>
    %568 = vector.extract_strided_slice %525 {offsets = [0, 40], sizes = [4, 8], strides = [1, 1]} : vector<4x48xf32> to vector<4x8xf32>
    %569 = vector.extract_strided_slice %521 {offsets = [0, 40], sizes = [4, 8], strides = [1, 1]} : vector<4x48xf32> to vector<4x8xf32>
    %570 = arith.mulf %559, %569 : vector<4x8xf32>
    %571 = arith.addf %568, %570 : vector<4x8xf32>
    %572 = math.tanh %571 : vector<4x8xf32>
    %cst_172 = arith.constant 1.000000e+00 : f32
    %573 = vector.broadcast %cst_172 : f32 to vector<4x8xf32>
    %574 = arith.subf %573, %567 : vector<4x8xf32>
    %575 = arith.mulf %574, %572 : vector<4x8xf32>
    %576 = arith.mulf %567, %504 : vector<4x8xf32>
    %577 = arith.addf %575, %576 : vector<4x8xf32>
    %cst_173 = arith.constant -5.000000e+00 : f32
    %cst_174 = arith.constant 5.000000e+00 : f32
    %578 = vector.broadcast %cst_173 : f32 to vector<4x8xf32>
    %579 = arith.maximumf %578, %551 : vector<4x8xf32>
    %580 = vector.broadcast %cst_174 : f32 to vector<4x8xf32>
    %581 = arith.minimumf %580, %579 : vector<4x8xf32>
    %cst_175 = arith.constant -5.000000e+00 : f32
    %cst_176 = arith.constant 5.000000e+00 : f32
    %582 = vector.broadcast %cst_175 : f32 to vector<4x8xf32>
    %583 = arith.maximumf %582, %577 : vector<4x8xf32>
    %584 = vector.broadcast %cst_176 : f32 to vector<4x8xf32>
    %585 = arith.minimumf %584, %583 : vector<4x8xf32>
    %c7_177 = arith.constant 7 : index
    %c0_178 = arith.constant 0 : index
    %c0_179 = arith.constant 0 : index
    %586 = vector.load %arg4[%c7_177, %c0_178, %c0_179] : memref<10x4x16xf32, #tpu.memory_space<vmem>>, vector<1x4x8xf32>
    %587 = vector.shape_cast %586 : vector<1x4x8xf32> to vector<4x8xf32>
    %588 = vector.shape_cast %581 : vector<4x8xf32> to vector<1x4x8xf32>
    tpu.vector_store %arg4[%c7_177, %c0_178, %c0_179], %588 {strides = array<i32>} : memref<10x4x16xf32, #tpu.memory_space<vmem>>, vector<1x4x8xf32>,
    %c2_180 = arith.constant 2 : index
    %c0_181 = arith.constant 0 : index
    %c8_182 = arith.constant 8 : index
    %589 = vector.load %arg4[%c2_180, %c0_181, %c8_182] : memref<10x4x16xf32, #tpu.memory_space<vmem>>, vector<1x4x8xf32>
    %590 = vector.shape_cast %589 : vector<1x4x8xf32> to vector<4x8xf32>
    %591 = vector.shape_cast %585 : vector<4x8xf32> to vector<1x4x8xf32>
    tpu.vector_store %arg4[%c2_180, %c0_181, %c8_182], %591 {strides = array<i32>} : memref<10x4x16xf32, #tpu.memory_space<vmem>>, vector<1x4x8xf32>,
    %592 = tpu.concatenate %551, %577 in 1 : vector<4x8xf32>, vector<4x8xf32> -> vector<4x16xf32>
    %cst_183 = arith.constant dense<0.000000e+00> : vector<4x48xf32>
    %593 = tpu.matmul %592, %0, %cst_183 {dimension_numbers = #tpu.dot_dimension_numbers<[1], [0], [0], [1], [0, 0, 1, 1], [], []>} : vector<4x16xf32>, vector<16x48xf32>, vector<4x48xf32> -> vector<4x48xf32>
    %594 = arith.addf %593, %3 : vector<4x48xf32>
    %c8_184 = arith.constant 8 : index
    %c0_185 = arith.constant 0 : index
    %c0_186 = arith.constant 0 : index
    %595 = vector.load %arg0[%c8_184, %c0_185, %c0_186] : memref<10x4x48xf32, #tpu.memory_space<vmem>>, vector<1x4x48xf32>
    %596 = vector.shape_cast %595 : vector<1x4x48xf32> to vector<4x48xf32>
    %c1_187 = arith.constant 1 : index
    %c0_188 = arith.constant 0 : index
    %c0_189 = arith.constant 0 : index
    %597 = vector.load %arg0[%c1_187, %c0_188, %c0_189] : memref<10x4x48xf32, #tpu.memory_space<vmem>>, vector<1x4x48xf32>
    %598 = vector.shape_cast %597 : vector<1x4x48xf32> to vector<4x48xf32>
    %599 = vector.extract_strided_slice %596 {offsets = [0, 0], sizes = [4, 8], strides = [1, 1]} : vector<4x48xf32> to vector<4x8xf32>
    %600 = vector.extract_strided_slice %594 {offsets = [0, 0], sizes = [4, 8], strides = [1, 1]} : vector<4x48xf32> to vector<4x8xf32>
    %601 = arith.addf %599, %600 : vector<4x8xf32>
    %602 = arith.negf %601 : vector<4x8xf32>
    %603 = math.exp %602 : vector<4x8xf32>
    %cst_190 = arith.constant 1.000000e+00 : f32
    %604 = vector.broadcast %cst_190 : f32 to vector<4x8xf32>
    %605 = arith.addf %604, %603 : vector<4x8xf32>
    %606 = arith.divf %604, %605 : vector<4x8xf32>
    %607 = vector.extract_strided_slice %596 {offsets = [0, 8], sizes = [4, 8], strides = [1, 1]} : vector<4x48xf32> to vector<4x8xf32>
    %608 = vector.extract_strided_slice %594 {offsets = [0, 8], sizes = [4, 8], strides = [1, 1]} : vector<4x48xf32> to vector<4x8xf32>
    %609 = arith.addf %607, %608 : vector<4x8xf32>
    %610 = arith.negf %609 : vector<4x8xf32>
    %611 = math.exp %610 : vector<4x8xf32>
    %cst_191 = arith.constant 1.000000e+00 : f32
    %612 = vector.broadcast %cst_191 : f32 to vector<4x8xf32>
    %613 = arith.addf %612, %611 : vector<4x8xf32>
    %614 = arith.divf %612, %613 : vector<4x8xf32>
    %615 = vector.extract_strided_slice %596 {offsets = [0, 16], sizes = [4, 8], strides = [1, 1]} : vector<4x48xf32> to vector<4x8xf32>
    %616 = vector.extract_strided_slice %594 {offsets = [0, 16], sizes = [4, 8], strides = [1, 1]} : vector<4x48xf32> to vector<4x8xf32>
    %617 = arith.mulf %606, %616 : vector<4x8xf32>
    %618 = arith.addf %615, %617 : vector<4x8xf32>
    %619 = math.tanh %618 : vector<4x8xf32>
    %cst_192 = arith.constant 1.000000e+00 : f32
    %620 = vector.broadcast %cst_192 : f32 to vector<4x8xf32>
    %621 = arith.subf %620, %614 : vector<4x8xf32>
    %622 = arith.mulf %621, %619 : vector<4x8xf32>
    %623 = arith.mulf %614, %551 : vector<4x8xf32>
    %624 = arith.addf %622, %623 : vector<4x8xf32>
    %625 = vector.extract_strided_slice %598 {offsets = [0, 24], sizes = [4, 8], strides = [1, 1]} : vector<4x48xf32> to vector<4x8xf32>
    %626 = vector.extract_strided_slice %594 {offsets = [0, 24], sizes = [4, 8], strides = [1, 1]} : vector<4x48xf32> to vector<4x8xf32>
    %627 = arith.addf %625, %626 : vector<4x8xf32>
    %628 = arith.negf %627 : vector<4x8xf32>
    %629 = math.exp %628 : vector<4x8xf32>
    %cst_193 = arith.constant 1.000000e+00 : f32
    %630 = vector.broadcast %cst_193 : f32 to vector<4x8xf32>
    %631 = arith.addf %630, %629 : vector<4x8xf32>
    %632 = arith.divf %630, %631 : vector<4x8xf32>
    %633 = vector.extract_strided_slice %598 {offsets = [0, 32], sizes = [4, 8], strides = [1, 1]} : vector<4x48xf32> to vector<4x8xf32>
    %634 = vector.extract_strided_slice %594 {offsets = [0, 32], sizes = [4, 8], strides = [1, 1]} : vector<4x48xf32> to vector<4x8xf32>
    %635 = arith.addf %633, %634 : vector<4x8xf32>
    %636 = arith.negf %635 : vector<4x8xf32>
    %637 = math.exp %636 : vector<4x8xf32>
    %cst_194 = arith.constant 1.000000e+00 : f32
    %638 = vector.broadcast %cst_194 : f32 to vector<4x8xf32>
    %639 = arith.addf %638, %637 : vector<4x8xf32>
    %640 = arith.divf %638, %639 : vector<4x8xf32>
    %641 = vector.extract_strided_slice %598 {offsets = [0, 40], sizes = [4, 8], strides = [1, 1]} : vector<4x48xf32> to vector<4x8xf32>
    %642 = vector.extract_strided_slice %594 {offsets = [0, 40], sizes = [4, 8], strides = [1, 1]} : vector<4x48xf32> to vector<4x8xf32>
    %643 = arith.mulf %632, %642 : vector<4x8xf32>
    %644 = arith.addf %641, %643 : vector<4x8xf32>
    %645 = math.tanh %644 : vector<4x8xf32>
    %cst_195 = arith.constant 1.000000e+00 : f32
    %646 = vector.broadcast %cst_195 : f32 to vector<4x8xf32>
    %647 = arith.subf %646, %640 : vector<4x8xf32>
    %648 = arith.mulf %647, %645 : vector<4x8xf32>
    %649 = arith.mulf %640, %577 : vector<4x8xf32>
    %650 = arith.addf %648, %649 : vector<4x8xf32>
    %cst_196 = arith.constant -5.000000e+00 : f32
    %cst_197 = arith.constant 5.000000e+00 : f32
    %651 = vector.broadcast %cst_196 : f32 to vector<4x8xf32>
    %652 = arith.maximumf %651, %624 : vector<4x8xf32>
    %653 = vector.broadcast %cst_197 : f32 to vector<4x8xf32>
    %654 = arith.minimumf %653, %652 : vector<4x8xf32>
    %cst_198 = arith.constant -5.000000e+00 : f32
    %cst_199 = arith.constant 5.000000e+00 : f32
    %655 = vector.broadcast %cst_198 : f32 to vector<4x8xf32>
    %656 = arith.maximumf %655, %650 : vector<4x8xf32>
    %657 = vector.broadcast %cst_199 : f32 to vector<4x8xf32>
    %658 = arith.minimumf %657, %656 : vector<4x8xf32>
    %c8_200 = arith.constant 8 : index
    %c0_201 = arith.constant 0 : index
    %c0_202 = arith.constant 0 : index
    %659 = vector.load %arg4[%c8_200, %c0_201, %c0_202] : memref<10x4x16xf32, #tpu.memory_space<vmem>>, vector<1x4x8xf32>
    %660 = vector.shape_cast %659 : vector<1x4x8xf32> to vector<4x8xf32>
    %661 = vector.shape_cast %654 : vector<4x8xf32> to vector<1x4x8xf32>
    tpu.vector_store %arg4[%c8_200, %c0_201, %c0_202], %661 {strides = array<i32>} : memref<10x4x16xf32, #tpu.memory_space<vmem>>, vector<1x4x8xf32>,
    %c1_203 = arith.constant 1 : index
    %c0_204 = arith.constant 0 : index
    %c8_205 = arith.constant 8 : index
    %662 = vector.load %arg4[%c1_203, %c0_204, %c8_205] : memref<10x4x16xf32, #tpu.memory_space<vmem>>, vector<1x4x8xf32>
    %663 = vector.shape_cast %662 : vector<1x4x8xf32> to vector<4x8xf32>
    %664 = vector.shape_cast %658 : vector<4x8xf32> to vector<1x4x8xf32>
    tpu.vector_store %arg4[%c1_203, %c0_204, %c8_205], %664 {strides = array<i32>} : memref<10x4x16xf32, #tpu.memory_space<vmem>>, vector<1x4x8xf32>,
    %665 = tpu.concatenate %624, %650 in 1 : vector<4x8xf32>, vector<4x8xf32> -> vector<4x16xf32>
    %cst_206 = arith.constant dense<0.000000e+00> : vector<4x48xf32>
    %666 = tpu.matmul %665, %0, %cst_206 {dimension_numbers = #tpu.dot_dimension_numbers<[1], [0], [0], [1], [0, 0, 1, 1], [], []>} : vector<4x16xf32>, vector<16x48xf32>, vector<4x48xf32> -> vector<4x48xf32>
    %667 = arith.addf %666, %3 : vector<4x48xf32>
    %c9_207 = arith.constant 9 : index
    %c0_208 = arith.constant 0 : index
    %c0_209 = arith.constant 0 : index
    %668 = vector.load %arg0[%c9_207, %c0_208, %c0_209] : memref<10x4x48xf32, #tpu.memory_space<vmem>>, vector<1x4x48xf32>
    %669 = vector.shape_cast %668 : vector<1x4x48xf32> to vector<4x48xf32>
    %c0_210 = arith.constant 0 : index
    %c0_211 = arith.constant 0 : index
    %c0_212 = arith.constant 0 : index
    %670 = vector.load %arg0[%c0_210, %c0_211, %c0_212] : memref<10x4x48xf32, #tpu.memory_space<vmem>>, vector<1x4x48xf32>
    %671 = vector.shape_cast %670 : vector<1x4x48xf32> to vector<4x48xf32>
    %672 = vector.extract_strided_slice %669 {offsets = [0, 0], sizes = [4, 8], strides = [1, 1]} : vector<4x48xf32> to vector<4x8xf32>
    %673 = vector.extract_strided_slice %667 {offsets = [0, 0], sizes = [4, 8], strides = [1, 1]} : vector<4x48xf32> to vector<4x8xf32>
    %674 = arith.addf %672, %673 : vector<4x8xf32>
    %675 = arith.negf %674 : vector<4x8xf32>
    %676 = math.exp %675 : vector<4x8xf32>
    %cst_213 = arith.constant 1.000000e+00 : f32
    %677 = vector.broadcast %cst_213 : f32 to vector<4x8xf32>
    %678 = arith.addf %677, %676 : vector<4x8xf32>
    %679 = arith.divf %677, %678 : vector<4x8xf32>
    %680 = vector.extract_strided_slice %669 {offsets = [0, 8], sizes = [4, 8], strides = [1, 1]} : vector<4x48xf32> to vector<4x8xf32>
    %681 = vector.extract_strided_slice %667 {offsets = [0, 8], sizes = [4, 8], strides = [1, 1]} : vector<4x48xf32> to vector<4x8xf32>
    %682 = arith.addf %680, %681 : vector<4x8xf32>
    %683 = arith.negf %682 : vector<4x8xf32>
    %684 = math.exp %683 : vector<4x8xf32>
    %cst_214 = arith.constant 1.000000e+00 : f32
    %685 = vector.broadcast %cst_214 : f32 to vector<4x8xf32>
    %686 = arith.addf %685, %684 : vector<4x8xf32>
    %687 = arith.divf %685, %686 : vector<4x8xf32>
    %688 = vector.extract_strided_slice %669 {offsets = [0, 16], sizes = [4, 8], strides = [1, 1]} : vector<4x48xf32> to vector<4x8xf32>
    %689 = vector.extract_strided_slice %667 {offsets = [0, 16], sizes = [4, 8], strides = [1, 1]} : vector<4x48xf32> to vector<4x8xf32>
    %690 = arith.mulf %679, %689 : vector<4x8xf32>
    %691 = arith.addf %688, %690 : vector<4x8xf32>
    %692 = math.tanh %691 : vector<4x8xf32>
    %cst_215 = arith.constant 1.000000e+00 : f32
    %693 = vector.broadcast %cst_215 : f32 to vector<4x8xf32>
    %694 = arith.subf %693, %687 : vector<4x8xf32>
    %695 = arith.mulf %694, %692 : vector<4x8xf32>
    %696 = arith.mulf %687, %624 : vector<4x8xf32>
    %697 = arith.addf %695, %696 : vector<4x8xf32>
    %698 = vector.extract_strided_slice %671 {offsets = [0, 24], sizes = [4, 8], strides = [1, 1]} : vector<4x48xf32> to vector<4x8xf32>
    %699 = vector.extract_strided_slice %667 {offsets = [0, 24], sizes = [4, 8], strides = [1, 1]} : vector<4x48xf32> to vector<4x8xf32>
    %700 = arith.addf %698, %699 : vector<4x8xf32>
    %701 = arith.negf %700 : vector<4x8xf32>
    %702 = math.exp %701 : vector<4x8xf32>
    %cst_216 = arith.constant 1.000000e+00 : f32
    %703 = vector.broadcast %cst_216 : f32 to vector<4x8xf32>
    %704 = arith.addf %703, %702 : vector<4x8xf32>
    %705 = arith.divf %703, %704 : vector<4x8xf32>
    %706 = vector.extract_strided_slice %671 {offsets = [0, 32], sizes = [4, 8], strides = [1, 1]} : vector<4x48xf32> to vector<4x8xf32>
    %707 = vector.extract_strided_slice %667 {offsets = [0, 32], sizes = [4, 8], strides = [1, 1]} : vector<4x48xf32> to vector<4x8xf32>
    %708 = arith.addf %706, %707 : vector<4x8xf32>
    %709 = arith.negf %708 : vector<4x8xf32>
    %710 = math.exp %709 : vector<4x8xf32>
    %cst_217 = arith.constant 1.000000e+00 : f32
    %711 = vector.broadcast %cst_217 : f32 to vector<4x8xf32>
    %712 = arith.addf %711, %710 : vector<4x8xf32>
    %713 = arith.divf %711, %712 : vector<4x8xf32>
    %714 = vector.extract_strided_slice %671 {offsets = [0, 40], sizes = [4, 8], strides = [1, 1]} : vector<4x48xf32> to vector<4x8xf32>
    %715 = vector.extract_strided_slice %667 {offsets = [0, 40], sizes = [4, 8], strides = [1, 1]} : vector<4x48xf32> to vector<4x8xf32>
    %716 = arith.mulf %705, %715 : vector<4x8xf32>
    %717 = arith.addf %714, %716 : vector<4x8xf32>
    %718 = math.tanh %717 : vector<4x8xf32>
    %cst_218 = arith.constant 1.000000e+00 : f32
    %719 = vector.broadcast %cst_218 : f32 to vector<4x8xf32>
    %720 = arith.subf %719, %713 : vector<4x8xf32>
    %721 = arith.mulf %720, %718 : vector<4x8xf32>
    %722 = arith.mulf %713, %650 : vector<4x8xf32>
    %723 = arith.addf %721, %722 : vector<4x8xf32>
    %cst_219 = arith.constant -5.000000e+00 : f32
    %cst_220 = arith.constant 5.000000e+00 : f32
    %724 = vector.broadcast %cst_219 : f32 to vector<4x8xf32>
    %725 = arith.maximumf %724, %697 : vector<4x8xf32>
    %726 = vector.broadcast %cst_220 : f32 to vector<4x8xf32>
    %727 = arith.minimumf %726, %725 : vector<4x8xf32>
    %cst_221 = arith.constant -5.000000e+00 : f32
    %cst_222 = arith.constant 5.000000e+00 : f32
    %728 = vector.broadcast %cst_221 : f32 to vector<4x8xf32>
    %729 = arith.maximumf %728, %723 : vector<4x8xf32>
    %730 = vector.broadcast %cst_222 : f32 to vector<4x8xf32>
    %731 = arith.minimumf %730, %729 : vector<4x8xf32>
    %c9_223 = arith.constant 9 : index
    %c0_224 = arith.constant 0 : index
    %c0_225 = arith.constant 0 : index
    %732 = vector.load %arg4[%c9_223, %c0_224, %c0_225] : memref<10x4x16xf32, #tpu.memory_space<vmem>>, vector<1x4x8xf32>
    %733 = vector.shape_cast %732 : vector<1x4x8xf32> to vector<4x8xf32>
    %734 = vector.shape_cast %727 : vector<4x8xf32> to vector<1x4x8xf32>
    tpu.vector_store %arg4[%c9_223, %c0_224, %c0_225], %734 {strides = array<i32>} : memref<10x4x16xf32, #tpu.memory_space<vmem>>, vector<1x4x8xf32>,
    %c0_226 = arith.constant 0 : index
    %c0_227 = arith.constant 0 : index
    %c8_228 = arith.constant 8 : index
    %735 = vector.load %arg4[%c0_226, %c0_227, %c8_228] : memref<10x4x16xf32, #tpu.memory_space<vmem>>, vector<1x4x8xf32>
    %736 = vector.shape_cast %735 : vector<1x4x8xf32> to vector<4x8xf32>
    %737 = vector.shape_cast %731 : vector<4x8xf32> to vector<1x4x8xf32>
    tpu.vector_store %arg4[%c0_226, %c0_227, %c8_228], %737 {strides = array<i32>} : memref<10x4x16xf32, #tpu.memory_space<vmem>>, vector<1x4x8xf32>,
    return
  }
}

</mosaic_0001>

<llo_original>
// kernel: lfads_encoder_forward.2
$region0: #{lfads_encoder_forward.2}
  #allocation0 [shape = 'u32[]', space=smem, size = 0x4, offset = 0x4, fixed_abs, tag = 'smem constant byte address 0x4 - core index']
  #allocation1 [shape = 'u32[144,128]{1,0:T(1,128)}', space=vmem, size = 0x12000, scoped, tag = 'internal scratch']
  %s0 = inlined_call_operand.vmem [shape: f32[10,4,192], index: 0, kind: input, shape index: {}]
  %s1 = inlined_call_operand.vmem [shape: f32[2,4,32], index: 1, kind: input, shape index: {}]
  %s2 = inlined_call_operand.vmem [shape: f32[64,192], index: 2, kind: input, shape index: {}]
  %s3 = inlined_call_operand.vmem [shape: f32[1,192], index: 3, kind: input, shape index: {}]
  %s4 = inlined_call_operand.vmem [shape: f32[64,32], index: 4, kind: input, shape index: {}]
  %s5 = inlined_call_operand.vmem [shape: f32[1,32], index: 5, kind: input, shape index: {}]
  %s6 = inlined_call_operand.hbm [shape: f32[10,4,64], index: 6, kind: output, shape index: {0}]
  %s7 = inlined_call_operand.hbm [shape: f32[4,16], index: 7, kind: output, shape index: {1}]
  %s8 = inlined_call_operand.hbm [shape: f32[4,16], index: 8, kind: output, shape index: {2}]
  %9 = xla_tuple %s6, %s7, %s8
  %s10 = sld [smem:[#allocation0]]
  $region50: #{lfads_encoder_forward.2} parent=0
    _
  %s12 = ssub.s32 1, %s10
  %s13 = scalar_select 0, %s12, %s10
  $region1: #{lfads_encoder_forward.2} parent=0
    #allocation2 [shape = 'u8[20480]{0}', space=vmem, size = 0x5000, scoped, tag = 'output window, operand 0, single buffered']
    #allocation3 [shape = 's32[1]{0}', space=sflag, size = 0x4, scoped, tag = 'scoped memory for lfads_encoder_forward.2']
    #allocation4 [shape = 'u8[2048]{0}', space=vmem, size = 0x800, scoped, tag = 'output window, operand 1, single buffered']
    #allocation5 [shape = 's32[1]{0}', space=sflag, size = 0x4, scoped, tag = 'scoped memory for lfads_encoder_forward.2']
    #allocation6 [shape = 'u8[2048]{0}', space=vmem, size = 0x800, scoped, tag = 'output window, operand 2, single buffered']
    %14 = vsyncpa [#allocation3], 0
    %15 = vsyncpa [#allocation5], 0
    // Predicated region
    $region2: #{lfads_encoder_forward.2} parent=1 // pred_check
      _
    $region3: #{lfads_encoder_forward.2} parent=1 // pred_check_branch
      %17 = sbr.rel (0) target = $region5
    $region4: #{lfads_encoder_forward.2} parent=1 // pred_region
      _
    $region5: #{lfads_encoder_forward.2} parent=1 // pred_fallthru
      _
    // Predicated region
    $region6: #{lfads_encoder_forward.2} parent=1 // pred_check
      _
    $region7: #{lfads_encoder_forward.2} parent=1 // pred_check_branch
      %19 = sbr.rel (0) target = $region9
    $region8: #{lfads_encoder_forward.2} parent=1 // pred_region
      _
    $region9: #{lfads_encoder_forward.2} parent=1 // pred_fallthru
      _
    // Predicated region
    $region10: #{lfads_encoder_forward.2} parent=1 // pred_check
      _
    $region11: #{lfads_encoder_forward.2} parent=1 // pred_check_branch
      %21 = sbr.rel (0) target = $region13
    $region12: #{lfads_encoder_forward.2} parent=1 // pred_region
      _
    $region13: #{lfads_encoder_forward.2} parent=1 // pred_fallthru
      _
    // Predicated region
    $region14: #{lfads_encoder_forward.2} parent=1 // pred_check
      _
    $region15: #{lfads_encoder_forward.2} parent=1 // pred_check_branch
      %23 = sbr.rel (0) target = $region17
    $region16: #{lfads_encoder_forward.2} parent=1 // pred_region
      _
    $region17: #{lfads_encoder_forward.2} parent=1 // pred_fallthru
      _
    // Predicated region
    $region18: #{lfads_encoder_forward.2} parent=1 // pred_check
      _
    $region19: #{lfads_encoder_forward.2} parent=1 // pred_check_branch
      %25 = sbr.rel (0) target = $region21
    $region20: #{lfads_encoder_forward.2} parent=1 // pred_region
      _
    $region21: #{lfads_encoder_forward.2} parent=1 // pred_fallthru
      _
    // Predicated region
    $region22: #{lfads_encoder_forward.2} parent=1 // pred_check
      _
    $region23: #{lfads_encoder_forward.2} parent=1 // pred_check_branch
      %27 = sbr.rel (0) target = $region25
    $region24: #{lfads_encoder_forward.2} parent=1 // pred_region
      _
    $region25: #{lfads_encoder_forward.2} parent=1 // pred_fallthru
      _
    %v28 = vld [vmem:[%s2] sm:$0xff]
    %v29 = vld [vmem:[%s2 + $0x8] sm:$0xff]
    %v30 = vld [vmem:[%s2 + $0x10] sm:$0xff]
    %v31 = vld [vmem:[%s2 + $0x18] sm:$0xff]
    %v32 = vld [vmem:[%s2 + $0x20] sm:$0xff]
    %v33 = vld [vmem:[%s2 + $0x28] sm:$0xff]
    %v34 = vld [vmem:[%s2 + $0x30] sm:$0xff]
    %v35 = vld [vmem:[%s2 + $0x38] sm:$0xff]
    %v36 = vld [vmem:[%s2 + $0x40] sm:$0xff]
    %v37 = vld [vmem:[%s2 + $0x48] sm:$0xff]
    %v38 = vld [vmem:[%s2 + $0x50] sm:$0xff]
    %v39 = vld [vmem:[%s2 + $0x58] sm:$0xff]
    %v40 = vld [vmem:[%s2 + $0x60] sm:$0xff]
    %v41 = vld [vmem:[%s2 + $0x68] sm:$0xff]
    %v42 = vld [vmem:[%s2 + $0x70] sm:$0xff]
    %v43 = vld [vmem:[%s2 + $0x78] sm:$0xff]
    %v44 = vld [vmem:[%s3] sm:$0x3]
    %v46 = vlaneseq
    %v47 = vshrl.u32 %v46, 7
    %v48 = vsub.s32 0, %v47
    %v49 = vrot.slane %v44, %v48
    %v50 = vlaneseq
    %v51 = vshrl.u32 %v50, 7
    %v52 = vsub.s32 1, %v51
    %v53 = vrot.slane %v44, %v52
    %v56 = vld [vmem:[%s1] sm:$0xf]
    %s57 = scalar_lea.vmem %s1, 4
    %v58 = vld [vmem:[%s57] sm:$0xf]
    %60 = vrot.lane.b32.xlu0 %v58, 32
    %v61 = vpop.permute.xlu0 %60
    %vm63 = vcmask 261120
    %v64 = vsel %vm63, %v56, %v61
    %vm65 = vcmask 523264
    %v67 = vsel %vm65, %v64, 0
    %69 = vmatprep.subr.mxu0 %v29
    %70 = vmatpush1.msra.mxu0 %v28
    %71 = vmatprep.subr.mxu0 %v31
    %72 = vmatpush1.msra.mxu0 %v30
    %73 = vmatprep.subr.mxu0 %v33
    %74 = vmatpush1.msra.mxu0 %v32
    %75 = vmatprep.subr.mxu0 %v35
    %76 = vmatpush1.msra.mxu0 %v34
    %77 = vmatprep.subr.mxu0 %v37
    %78 = vmatpush1.msra.mxu0 %v36
    %79 = vmatprep.subr.mxu0 %v39
    %80 = vmatpush1.msra.mxu0 %v38
    %81 = vmatprep.subr.mxu0 %v41
    %82 = vmatpush1.msra.mxu0 %v40
    %83 = vmatprep.subr.mxu0 %v43
    %84 = vmatpush1.msra.mxu0 %v42
    %85 = vmatprep.subr.mxu0 0.0
    %86 = vmatpush1.msra.mxu0 0.0
    %87 = vmatprep.subr.mxu0 0.0
    %88 = vmatpush1.msra.mxu0 0.0
    %89 = vmatprep.subr.mxu0 0.0
    %90 = vmatpush1.msra.mxu0 0.0
    %91 = vmatprep.subr.mxu0 0.0
    %92 = vmatpush1.msra.mxu0 0.0
    %93 = vmatprep.subr.mxu0 0.0
    %94 = vmatpush1.msra.mxu0 0.0
    %95 = vmatprep.subr.mxu0 0.0
    %96 = vmatpush1.msra.mxu0 0.0
    %97 = vmatprep.subr.mxu0 0.0
    %98 = vmatpush1.msra.mxu0 0.0
    %99 = vmatprep.subr.mxu0 0.0
    %100 = vmatpush1.msra.mxu0 0.0
    %101 = vmatprep.subr.mxu0 0.0
    %102 = vmatpush1.msra.mxu0 0.0
    %103 = vmatprep.subr.mxu0 0.0
    %104 = vmatpush1.msra.mxu0 0.0
    %105 = vmatprep.subr.mxu0 0.0
    %106 = vmatpush1.msra.mxu0 0.0
    %107 = vmatprep.subr.mxu0 0.0
    %108 = vmatpush1.msra.mxu0 0.0
    %109 = vmatprep.subr.mxu0 0.0
    %110 = vmatpush1.msra.mxu0 0.0
    %111 = vmatprep.subr.mxu0 0.0
    %112 = vmatpush1.msra.mxu0 0.0
    %113 = vmatprep.subr.mxu0 0.0
    %114 = vmatpush1.msra.mxu0 0.0
    %115 = vmatprep.subr.mxu0 0.0
    %116 = vmatpush1.msra.mxu0 0.0
    %117 = vmatprep.subr.mxu0 0.0
    %118 = vmatpush1.msra.mxu0 0.0
    %119 = vmatprep.subr.mxu0 0.0
    %120 = vmatpush1.msra.mxu0 0.0
    %121 = vmatprep.subr.mxu0 0.0
    %122 = vmatpush1.msra.mxu0 0.0
    %123 = vmatprep.subr.mxu0 0.0
    %124 = vmatpush1.msra.mxu0 0.0
    %125 = vmatprep.subr.mxu0 0.0
    %126 = vmatpush1.msra.mxu0 0.0
    %127 = vmatprep.subr.mxu0 0.0
    %128 = vmatpush1.msra.mxu0 0.0
    %129 = vmatprep.subr.mxu0 0.0
    %130 = vmatpush1.msra.mxu0 0.0
    %131 = vmatprep.subr.mxu0 0.0
    %132 = vmatpush1.msra.mxu0 0.0
    %133 = vmatprep.mubr.f32.mxu0 0.0
    %134 = vmatmul.mubr.f32.gmra.mrb[0].mxu0 %v67
    %v135 = vpop.f32.mrb[0].mxu0
    %v136 = vadd.f32 %v49, %v135
    %v137 = vpop.f32.mrb[0].mxu0
    %v138 = vadd.f32 %v53, %v137
    %139 = vdwg.mxu0
    %v140 = vld [vmem:[%s0] sm:$0xff]
    %s141 = scalar_lea.vmem %s0, 72
    %v142 = vld [vmem:[%s141] sm:$0xff]
    %v143 = vadd.f32 %v140, %v136
    %v144 = vxor.u32 %v143, 2147483648
    %v145 = vmul.f32 %v144, 1.442695
    %v146 = vpow.pop %v145
    %v147 = vadd.f32 %v146, 1.0
    %v148 = vrcp.pop %v147
    %v149 = vmul.f32 1.0, %v148
    %151 = vrot.lane.b32.xlu0 %v136, 64
    %v152 = vpop.permute.xlu0 %151
    %v154 = vmul.f32 %v149, %v152
    %156 = vrot.lane.b32.xlu0 %v154, 64
    %v157 = vpop.permute.xlu0 %156
    %v159 = vadd.f32 %v140, %v157
    %v160 = vtanh.pop %v159
    %v161 = vsub.f32 1.0, %v149
    %163 = vrot.lane.b32.xlu0 %v160, 96
    %v164 = vpop.permute.xlu0 %163
    %v166 = vmul.f32 %v161, %v164
    %168 = vrot.lane.b32.xlu0 %v56, 32
    %v169 = vpop.permute.xlu0 %168
    %v171 = vmul.f32 %v149, %v169
    %v172 = vadd.f32 %v166, %v171
    %v173 = vadd.f32 %v142, %v136
    %v174 = vxor.u32 %v173, 2147483648
    %v175 = vmul.f32 %v174, 1.442695
    %v176 = vpow.pop %v175
    %v177 = vadd.f32 %v176, 1.0
    %v178 = vrcp.pop %v177
    %v179 = vmul.f32 1.0, %v178
    %v181 = vrot.slane %v142, 4
    %v183 = vadd.f32 %v181, %v138
    %v184 = vxor.u32 %v183, 2147483648
    %v185 = vmul.f32 %v184, 1.442695
    %v186 = vpow.pop %v185
    %v187 = vadd.f32 %v186, 1.0
    %v188 = vrcp.pop %v187
    %v189 = vmul.f32 1.0, %v188
    %191 = vrot.lane.b32.xlu0 %v138, 64
    %v192 = vpop.permute.xlu0 %191
    %v194 = vmul.f32 %v179, %v192
    %195 = vrot.lane.b32.xlu0 %v142, 96
    %v196 = vpop.permute.xlu0 %195
    %v197 = vrot.slane %v196, 4
    %200 = vrot.lane.b32.xlu0 %v194, 32
    %v201 = vpop.permute.xlu0 %200
    %v203 = vadd.f32 %v197, %v201
    %v204 = vtanh.pop %v203
    %v205 = vsub.f32 1.0, %v189
    %v206 = vmul.f32 %v205, %v204
    %v207 = vmul.f32 %v189, %v58
    %v208 = vadd.f32 %v206, %v207
    %210 = vrot.lane.b32.xlu0 %v172, 96
    %v211 = vpop.permute.xlu0 %210
    %vm213 = vcmask 257024
    %214 = vst.msk [vmem:[#allocation2] sm:$0xf] %vm213, %v211
    %216 = vrot.lane.b32.xlu0 %v208, 32
    %v217 = vpop.permute.xlu0 %216
    %s219 = scalar_lea.vmem [#allocation2], 36
    %vm220 = vcmask 519424
    %221 = vst.msk [vmem:[%s219] sm:$0xf] %vm220, %v217
    %v222 = vsel %vm63, %v211, %v217
    %v224 = vsel %vm65, %v222, 0
    %226 = vmatprep.subr.mxu0 %v29
    %227 = vmatpush1.msra.mxu0 %v28
    %228 = vmatprep.subr.mxu0 %v31
    %229 = vmatpush1.msra.mxu0 %v30
    %230 = vmatprep.subr.mxu0 %v33
    %231 = vmatpush1.msra.mxu0 %v32
    %232 = vmatprep.subr.mxu0 %v35
    %233 = vmatpush1.msra.mxu0 %v34
    %234 = vmatprep.subr.mxu0 %v37
    %235 = vmatpush1.msra.mxu0 %v36
    %236 = vmatprep.subr.mxu0 %v39
    %237 = vmatpush1.msra.mxu0 %v38
    %238 = vmatprep.subr.mxu0 %v41
    %239 = vmatpush1.msra.mxu0 %v40
    %240 = vmatprep.subr.mxu0 %v43
    %241 = vmatpush1.msra.mxu0 %v42
    %242 = vmatprep.subr.mxu0 0.0
    %243 = vmatpush1.msra.mxu0 0.0
    %244 = vmatprep.subr.mxu0 0.0
    %245 = vmatpush1.msra.mxu0 0.0
    %246 = vmatprep.subr.mxu0 0.0
    %247 = vmatpush1.msra.mxu0 0.0
    %248 = vmatprep.subr.mxu0 0.0
    %249 = vmatpush1.msra.mxu0 0.0
    %250 = vmatprep.subr.mxu0 0.0
    %251 = vmatpush1.msra.mxu0 0.0
    %252 = vmatprep.subr.mxu0 0.0
    %253 = vmatpush1.msra.mxu0 0.0
    %254 = vmatprep.subr.mxu0 0.0
    %255 = vmatpush1.msra.mxu0 0.0
    %256 = vmatprep.subr.mxu0 0.0
    %257 = vmatpush1.msra.mxu0 0.0
    %258 = vmatprep.subr.mxu0 0.0
    %259 = vmatpush1.msra.mxu0 0.0
    %260 = vmatprep.subr.mxu0 0.0
    %261 = vmatpush1.msra.mxu0 0.0
    %262 = vmatprep.subr.mxu0 0.0
    %263 = vmatpush1.msra.mxu0 0.0
    %264 = vmatprep.subr.mxu0 0.0
    %265 = vmatpush1.msra.mxu0 0.0
    %266 = vmatprep.subr.mxu0 0.0
    %267 = vmatpush1.msra.mxu0 0.0
    %268 = vmatprep.subr.mxu0 0.0
    %269 = vmatpush1.msra.mxu0 0.0
    %270 = vmatprep.subr.mxu0 0.0
    %271 = vmatpush1.msra.mxu0 0.0
    %272 = vmatprep.subr.mxu0 0.0
    %273 = vmatpush1.msra.mxu0 0.0
    %274 = vmatprep.subr.mxu0 0.0
    %275 = vmatpush1.msra.mxu0 0.0
    %276 = vmatprep.subr.mxu0 0.0
    %277 = vmatpush1.msra.mxu0 0.0
    %278 = vmatprep.subr.mxu0 0.0
    %279 = vmatpush1.msra.mxu0 0.0
    %280 = vmatprep.subr.mxu0 0.0
    %281 = vmatpush1.msra.mxu0 0.0
    %282 = vmatprep.subr.mxu0 0.0
    %283 = vmatpush1.msra.mxu0 0.0
    %284 = vmatprep.subr.mxu0 0.0
    %285 = vmatpush1.msra.mxu0 0.0
    %286 = vmatprep.subr.mxu0 0.0
    %287 = vmatpush1.msra.mxu0 0.0
    %288 = vmatprep.subr.mxu0 0.0
    %289 = vmatpush1.msra.mxu0 0.0
    %290 = vmatprep.mubr.f32.mxu0 0.0
    %291 = vmatmul.mubr.f32.gmra.mrb[0].mxu0 %v224
    %v292 = vpop.f32.mrb[0].mxu0
    %v293 = vadd.f32 %v49, %v292
    %v294 = vpop.f32.mrb[0].mxu0
    %v295 = vadd.f32 %v53, %v294
    %296 = vdwg.mxu0
    %s297 = scalar_lea.vmem %s0, 8
    %v298 = vld [vmem:[%s297] sm:$0xff]
    %s299 = scalar_lea.vmem %s0, 64
    %v300 = vld [vmem:[%s299] sm:$0xff]
    %v301 = vadd.f32 %v298, %v293
    %v302 = vxor.u32 %v301, 2147483648
    %v303 = vmul.f32 %v302, 1.442695
    %v304 = vpow.pop %v303
    %v305 = vadd.f32 %v304, 1.0
    %v306 = vrcp.pop %v305
    %v307 = vmul.f32 1.0, %v306
    %309 = vrot.lane.b32.xlu0 %v293, 64
    %v310 = vpop.permute.xlu0 %309
    %v312 = vmul.f32 %v307, %v310
    %314 = vrot.lane.b32.xlu0 %v312, 64
    %v315 = vpop.permute.xlu0 %314
    %v317 = vadd.f32 %v298, %v315
    %v318 = vtanh.pop %v317
    %v319 = vsub.f32 1.0, %v307
    %321 = vrot.lane.b32.xlu0 %v318, 96
    %v322 = vpop.permute.xlu0 %321
    %v324 = vmul.f32 %v319, %v322
    %v325 = vmul.f32 %v307, %v172
    %v326 = vadd.f32 %v324, %v325
    %v327 = vadd.f32 %v300, %v293
    %v328 = vxor.u32 %v327, 2147483648
    %v329 = vmul.f32 %v328, 1.442695
    %v330 = vpow.pop %v329
    %v331 = vadd.f32 %v330, 1.0
    %v332 = vrcp.pop %v331
    %v333 = vmul.f32 1.0, %v332
    %v335 = vrot.slane %v300, 4
    %v337 = vadd.f32 %v335, %v295
    %v338 = vxor.u32 %v337, 2147483648
    %v339 = vmul.f32 %v338, 1.442695
    %v340 = vpow.pop %v339
    %v341 = vadd.f32 %v340, 1.0
    %v342 = vrcp.pop %v341
    %v343 = vmul.f32 1.0, %v342
    %345 = vrot.lane.b32.xlu0 %v295, 64
    %v346 = vpop.permute.xlu0 %345
    %v348 = vmul.f32 %v333, %v346
    %349 = vrot.lane.b32.xlu0 %v300, 96
    %v350 = vpop.permute.xlu0 %349
    %v351 = vrot.slane %v350, 4
    %354 = vrot.lane.b32.xlu0 %v348, 32
    %v355 = vpop.permute.xlu0 %354
    %v357 = vadd.f32 %v351, %v355
    %v358 = vtanh.pop %v357
    %v359 = vsub.f32 1.0, %v343
    %v360 = vmul.f32 %v359, %v358
    %v361 = vmul.f32 %v343, %v208
    %v362 = vadd.f32 %v360, %v361
    %364 = vrot.lane.b32.xlu0 %v326, 96
    %v365 = vpop.permute.xlu0 %364
    %s367 = scalar_lea.vmem [#allocation2], 4
    %368 = vst.msk [vmem:[%s367] sm:$0xf] %vm213, %v365
    %370 = vrot.lane.b32.xlu0 %v362, 32
    %v371 = vpop.permute.xlu0 %370
    %s373 = scalar_lea.vmem [#allocation2], 32
    %374 = vst.msk [vmem:[%s373] sm:$0xf] %vm220, %v371
    %v375 = vsel %vm63, %v365, %v371
    %v377 = vsel %vm65, %v375, 0
    %379 = vmatprep.subr.mxu0 %v29
    %380 = vmatpush1.msra.mxu0 %v28
    %381 = vmatprep.subr.mxu0 %v31
    %382 = vmatpush1.msra.mxu0 %v30
    %383 = vmatprep.subr.mxu0 %v33
    %384 = vmatpush1.msra.mxu0 %v32
    %385 = vmatprep.subr.mxu0 %v35
    %386 = vmatpush1.msra.mxu0 %v34
    %387 = vmatprep.subr.mxu0 %v37
    %388 = vmatpush1.msra.mxu0 %v36
    %389 = vmatprep.subr.mxu0 %v39
    %390 = vmatpush1.msra.mxu0 %v38
    %391 = vmatprep.subr.mxu0 %v41
    %392 = vmatpush1.msra.mxu0 %v40
    %393 = vmatprep.subr.mxu0 %v43
    %394 = vmatpush1.msra.mxu0 %v42
    %395 = vmatprep.subr.mxu0 0.0
    %396 = vmatpush1.msra.mxu0 0.0
    %397 = vmatprep.subr.mxu0 0.0
    %398 = vmatpush1.msra.mxu0 0.0
    %399 = vmatprep.subr.mxu0 0.0
    %400 = vmatpush1.msra.mxu0 0.0
    %401 = vmatprep.subr.mxu0 0.0
    %402 = vmatpush1.msra.mxu0 0.0
    %403 = vmatprep.subr.mxu0 0.0
    %404 = vmatpush1.msra.mxu0 0.0
    %405 = vmatprep.subr.mxu0 0.0
    %406 = vmatpush1.msra.mxu0 0.0
    %407 = vmatprep.subr.mxu0 0.0
    %408 = vmatpush1.msra.mxu0 0.0
    %409 = vmatprep.subr.mxu0 0.0
    %410 = vmatpush1.msra.mxu0 0.0
    %411 = vmatprep.subr.mxu0 0.0
    %412 = vmatpush1.msra.mxu0 0.0
    %413 = vmatprep.subr.mxu0 0.0
    %414 = vmatpush1.msra.mxu0 0.0
    %415 = vmatprep.subr.mxu0 0.0
    %416 = vmatpush1.msra.mxu0 0.0
    %417 = vmatprep.subr.mxu0 0.0
    %418 = vmatpush1.msra.mxu0 0.0
    %419 = vmatprep.subr.mxu0 0.0
    %420 = vmatpush1.msra.mxu0 0.0
    %421 = vmatprep.subr.mxu0 0.0
    %422 = vmatpush1.msra.mxu0 0.0
    %423 = vmatprep.subr.mxu0 0.0
    %424 = vmatpush1.msra.mxu0 0.0
    %425 = vmatprep.subr.mxu0 0.0
    %426 = vmatpush1.msra.mxu0 0.0
    %427 = vmatprep.subr.mxu0 0.0
    %428 = vmatpush1.msra.mxu0 0.0
    %429 = vmatprep.subr.mxu0 0.0
    %430 = vmatpush1.msra.mxu0 0.0
    %431 = vmatprep.subr.mxu0 0.0
    %432 = vmatpush1.msra.mxu0 0.0
    %433 = vmatprep.subr.mxu0 0.0
    %434 = vmatpush1.msra.mxu0 0.0
    %435 = vmatprep.subr.mxu0 0.0
    %436 = vmatpush1.msra.mxu0 0.0
    %437 = vmatprep.subr.mxu0 0.0
    %438 = vmatpush1.msra.mxu0 0.0
    %439 = vmatprep.subr.mxu0 0.0
    %440 = vmatpush1.msra.mxu0 0.0
    %441 = vmatprep.subr.mxu0 0.0
    %442 = vmatpush1.msra.mxu0 0.0
    %443 = vmatprep.mubr.f32.mxu0 0.0
    %444 = vmatmul.mubr.f32.gmra.mrb[0].mxu0 %v377
    %v445 = vpop.f32.mrb[0].mxu0
    %v446 = vadd.f32 %v49, %v445
    %v447 = vpop.f32.mrb[0].mxu0
    %v448 = vadd.f32 %v53, %v447
    %449 = vdwg.mxu0
    %s450 = scalar_lea.vmem %s0, 16
    %v451 = vld [vmem:[%s450] sm:$0xff]
    %s452 = scalar_lea.vmem %s0, 56
    %v453 = vld [vmem:[%s452] sm:$0xff]
    %v454 = vadd.f32 %v451, %v446
    %v455 = vxor.u32 %v454, 2147483648
    %v456 = vmul.f32 %v455, 1.442695
    %v457 = vpow.pop %v456
    %v458 = vadd.f32 %v457, 1.0
    %v459 = vrcp.pop %v458
    %v460 = vmul.f32 1.0, %v459
    %462 = vrot.lane.b32.xlu0 %v446, 64
    %v463 = vpop.permute.xlu0 %462
    %v465 = vmul.f32 %v460, %v463
    %467 = vrot.lane.b32.xlu0 %v465, 64
    %v468 = vpop.permute.xlu0 %467
    %v470 = vadd.f32 %v451, %v468
    %v471 = vtanh.pop %v470
    %v472 = vsub.f32 1.0, %v460
    %474 = vrot.lane.b32.xlu0 %v471, 96
    %v475 = vpop.permute.xlu0 %474
    %v477 = vmul.f32 %v472, %v475
    %v478 = vmul.f32 %v460, %v326
    %v479 = vadd.f32 %v477, %v478
    %v480 = vadd.f32 %v453, %v446
    %v481 = vxor.u32 %v480, 2147483648
    %v482 = vmul.f32 %v481, 1.442695
    %v483 = vpow.pop %v482
    %v484 = vadd.f32 %v483, 1.0
    %v485 = vrcp.pop %v484
    %v486 = vmul.f32 1.0, %v485
    %v488 = vrot.slane %v453, 4
    %v490 = vadd.f32 %v488, %v448
    %v491 = vxor.u32 %v490, 2147483648
    %v492 = vmul.f32 %v491, 1.442695
    %v493 = vpow.pop %v492
    %v494 = vadd.f32 %v493, 1.0
    %v495 = vrcp.pop %v494
    %v496 = vmul.f32 1.0, %v495
    %498 = vrot.lane.b32.xlu0 %v448, 64
    %v499 = vpop.permute.xlu0 %498
    %v501 = vmul.f32 %v486, %v499
    %502 = vrot.lane.b32.xlu0 %v453, 96
    %v503 = vpop.permute.xlu0 %502
    %v504 = vrot.slane %v503, 4
    %507 = vrot.lane.b32.xlu0 %v501, 32
    %v508 = vpop.permute.xlu0 %507
    %v510 = vadd.f32 %v504, %v508
    %v511 = vtanh.pop %v510
    %v512 = vsub.f32 1.0, %v496
    %v513 = vmul.f32 %v512, %v511
    %v514 = vmul.f32 %v496, %v362
    %v515 = vadd.f32 %v513, %v514
    %517 = vrot.lane.b32.xlu0 %v479, 96
    %v518 = vpop.permute.xlu0 %517
    %s520 = scalar_lea.vmem [#allocation2], 8
    %521 = vst.msk [vmem:[%s520] sm:$0xf] %vm213, %v518
    %523 = vrot.lane.b32.xlu0 %v515, 32
    %v524 = vpop.permute.xlu0 %523
    %s526 = scalar_lea.vmem [#allocation2], 28
    %527 = vst.msk [vmem:[%s526] sm:$0xf] %vm220, %v524
    %v528 = vsel %vm63, %v518, %v524
    %v530 = vsel %vm65, %v528, 0
    %532 = vmatprep.subr.mxu0 %v29
    %533 = vmatpush1.msra.mxu0 %v28
    %534 = vmatprep.subr.mxu0 %v31
    %535 = vmatpush1.msra.mxu0 %v30
    %536 = vmatprep.subr.mxu0 %v33
    %537 = vmatpush1.msra.mxu0 %v32
    %538 = vmatprep.subr.mxu0 %v35
    %539 = vmatpush1.msra.mxu0 %v34
    %540 = vmatprep.subr.mxu0 %v37
    %541 = vmatpush1.msra.mxu0 %v36
    %542 = vmatprep.subr.mxu0 %v39
    %543 = vmatpush1.msra.mxu0 %v38
    %544 = vmatprep.subr.mxu0 %v41
    %545 = vmatpush1.msra.mxu0 %v40
    %546 = vmatprep.subr.mxu0 %v43
    %547 = vmatpush1.msra.mxu0 %v42
    %548 = vmatprep.subr.mxu0 0.0
    %549 = vmatpush1.msra.mxu0 0.0
    %550 = vmatprep.subr.mxu0 0.0
    %551 = vmatpush1.msra.mxu0 0.0
    %552 = vmatprep.subr.mxu0 0.0
    %553 = vmatpush1.msra.mxu0 0.0
    %554 = vmatprep.subr.mxu0 0.0
    %555 = vmatpush1.msra.mxu0 0.0
    %556 = vmatprep.subr.mxu0 0.0
    %557 = vmatpush1.msra.mxu0 0.0
    %558 = vmatprep.subr.mxu0 0.0
    %559 = vmatpush1.msra.mxu0 0.0
    %560 = vmatprep.subr.mxu0 0.0
    %561 = vmatpush1.msra.mxu0 0.0
    %562 = vmatprep.subr.mxu0 0.0
    %563 = vmatpush1.msra.mxu0 0.0
    %564 = vmatprep.subr.mxu0 0.0
    %565 = vmatpush1.msra.mxu0 0.0
    %566 = vmatprep.subr.mxu0 0.0
    %567 = vmatpush1.msra.mxu0 0.0
    %568 = vmatprep.subr.mxu0 0.0
    %569 = vmatpush1.msra.mxu0 0.0
    %570 = vmatprep.subr.mxu0 0.0
    %571 = vmatpush1.msra.mxu0 0.0
    %572 = vmatprep.subr.mxu0 0.0
    %573 = vmatpush1.msra.mxu0 0.0
    %574 = vmatprep.subr.mxu0 0.0
    %575 = vmatpush1.msra.mxu0 0.0
    %576 = vmatprep.subr.mxu0 0.0
    %577 = vmatpush1.msra.mxu0 0.0
    %578 = vmatprep.subr.mxu0 0.0
    %579 = vmatpush1.msra.mxu0 0.0
    %580 = vmatprep.subr.mxu0 0.0
    %581 = vmatpush1.msra.mxu0 0.0
    %582 = vmatprep.subr.mxu0 0.0
    %583 = vmatpush1.msra.mxu0 0.0
    %584 = vmatprep.subr.mxu0 0.0
    %585 = vmatpush1.msra.mxu0 0.0
    %586 = vmatprep.subr.mxu0 0.0
    %587 = vmatpush1.msra.mxu0 0.0
    %588 = vmatprep.subr.mxu0 0.0
    %589 = vmatpush1.msra.mxu0 0.0
    %590 = vmatprep.subr.mxu0 0.0
    %591 = vmatpush1.msra.mxu0 0.0
    %592 = vmatprep.subr.mxu0 0.0
    %593 = vmatpush1.msra.mxu0 0.0
    %594 = vmatprep.subr.mxu0 0.0
    %595 = vmatpush1.msra.mxu0 0.0
    %596 = vmatprep.mubr.f32.mxu0 0.0
    %597 = vmatmul.mubr.f32.gmra.mrb[0].mxu0 %v530
    %v598 = vpop.f32.mrb[0].mxu0
    %v599 = vadd.f32 %v49, %v598
    %v600 = vpop.f32.mrb[0].mxu0
    %v601 = vadd.f32 %v53, %v600
    %602 = vdwg.mxu0
    %s603 = scalar_lea.vmem %s0, 24
    %v604 = vld [vmem:[%s603] sm:$0xff]
    %s605 = scalar_lea.vmem %s0, 48
    %v606 = vld [vmem:[%s605] sm:$0xff]
    %v607 = vadd.f32 %v604, %v599
    %v608 = vxor.u32 %v607, 2147483648
    %v609 = vmul.f32 %v608, 1.442695
    %v610 = vpow.pop %v609
    %v611 = vadd.f32 %v610, 1.0
    %v612 = vrcp.pop %v611
    %v613 = vmul.f32 1.0, %v612
    %615 = vrot.lane.b32.xlu0 %v599, 64
    %v616 = vpop.permute.xlu0 %615
    %v618 = vmul.f32 %v613, %v616
    %620 = vrot.lane.b32.xlu0 %v618, 64
    %v621 = vpop.permute.xlu0 %620
    %v623 = vadd.f32 %v604, %v621
    %v624 = vtanh.pop %v623
    %v625 = vsub.f32 1.0, %v613
    %627 = vrot.lane.b32.xlu0 %v624, 96
    %v628 = vpop.permute.xlu0 %627
    %v630 = vmul.f32 %v625, %v628
    %v631 = vmul.f32 %v613, %v479
    %v632 = vadd.f32 %v630, %v631
    %v633 = vadd.f32 %v606, %v599
    %v634 = vxor.u32 %v633, 2147483648
    %v635 = vmul.f32 %v634, 1.442695
    %v636 = vpow.pop %v635
    %v637 = vadd.f32 %v636, 1.0
    %v638 = vrcp.pop %v637
    %v639 = vmul.f32 1.0, %v638
    %v641 = vrot.slane %v606, 4
    %v643 = vadd.f32 %v641, %v601
    %v644 = vxor.u32 %v643, 2147483648
    %v645 = vmul.f32 %v644, 1.442695
    %v646 = vpow.pop %v645
    %v647 = vadd.f32 %v646, 1.0
    %v648 = vrcp.pop %v647
    %v649 = vmul.f32 1.0, %v648
    %651 = vrot.lane.b32.xlu0 %v601, 64
    %v652 = vpop.permute.xlu0 %651
    %v654 = vmul.f32 %v639, %v652
    %655 = vrot.lane.b32.xlu0 %v606, 96
    %v656 = vpop.permute.xlu0 %655
    %v657 = vrot.slane %v656, 4
    %660 = vrot.lane.b32.xlu0 %v654, 32
    %v661 = vpop.permute.xlu0 %660
    %v663 = vadd.f32 %v657, %v661
    %v664 = vtanh.pop %v663
    %v665 = vsub.f32 1.0, %v649
    %v666 = vmul.f32 %v665, %v664
    %v667 = vmul.f32 %v649, %v515
    %v668 = vadd.f32 %v666, %v667
    %670 = vrot.lane.b32.xlu0 %v632, 96
    %v671 = vpop.permute.xlu0 %670
    %s673 = scalar_lea.vmem [#allocation2], 12
    %674 = vst.msk [vmem:[%s673] sm:$0xf] %vm213, %v671
    %676 = vrot.lane.b32.xlu0 %v668, 32
    %v677 = vpop.permute.xlu0 %676
    %s679 = scalar_lea.vmem [#allocation2], 24
    %680 = vst.msk [vmem:[%s679] sm:$0xf] %vm220, %v677
    %v681 = vsel %vm63, %v671, %v677
    %v683 = vsel %vm65, %v681, 0
    %685 = vmatprep.subr.mxu0 %v29
    %686 = vmatpush1.msra.mxu0 %v28
    %687 = vmatprep.subr.mxu0 %v31
    %688 = vmatpush1.msra.mxu0 %v30
    %689 = vmatprep.subr.mxu0 %v33
    %690 = vmatpush1.msra.mxu0 %v32
    %691 = vmatprep.subr.mxu0 %v35
    %692 = vmatpush1.msra.mxu0 %v34
    %693 = vmatprep.subr.mxu0 %v37
    %694 = vmatpush1.msra.mxu0 %v36
    %695 = vmatprep.subr.mxu0 %v39
    %696 = vmatpush1.msra.mxu0 %v38
    %697 = vmatprep.subr.mxu0 %v41
    %698 = vmatpush1.msra.mxu0 %v40
    %699 = vmatprep.subr.mxu0 %v43
    %700 = vmatpush1.msra.mxu0 %v42
    %701 = vmatprep.subr.mxu0 0.0
    %702 = vmatpush1.msra.mxu0 0.0
    %703 = vmatprep.subr.mxu0 0.0
    %704 = vmatpush1.msra.mxu0 0.0
    %705 = vmatprep.subr.mxu0 0.0
    %706 = vmatpush1.msra.mxu0 0.0
    %707 = vmatprep.subr.mxu0 0.0
    %708 = vmatpush1.msra.mxu0 0.0
    %709 = vmatprep.subr.mxu0 0.0
    %710 = vmatpush1.msra.mxu0 0.0
    %711 = vmatprep.subr.mxu0 0.0
    %712 = vmatpush1.msra.mxu0 0.0
    %713 = vmatprep.subr.mxu0 0.0
    %714 = vmatpush1.msra.mxu0 0.0
    %715 = vmatprep.subr.mxu0 0.0
    %716 = vmatpush1.msra.mxu0 0.0
    %717 = vmatprep.subr.mxu0 0.0
    %718 = vmatpush1.msra.mxu0 0.0
    %719 = vmatprep.subr.mxu0 0.0
    %720 = vmatpush1.msra.mxu0 0.0
    %721 = vmatprep.subr.mxu0 0.0
    %722 = vmatpush1.msra.mxu0 0.0
    %723 = vmatprep.subr.mxu0 0.0
    %724 = vmatpush1.msra.mxu0 0.0
    %725 = vmatprep.subr.mxu0 0.0
    %726 = vmatpush1.msra.mxu0 0.0
    %727 = vmatprep.subr.mxu0 0.0
    %728 = vmatpush1.msra.mxu0 0.0
    %729 = vmatprep.subr.mxu0 0.0
    %730 = vmatpush1.msra.mxu0 0.0
    %731 = vmatprep.subr.mxu0 0.0
    %732 = vmatpush1.msra.mxu0 0.0
    %733 = vmatprep.subr.mxu0 0.0
    %734 = vmatpush1.msra.mxu0 0.0
    %735 = vmatprep.subr.mxu0 0.0
    %736 = vmatpush1.msra.mxu0 0.0
    %737 = vmatprep.subr.mxu0 0.0
    %738 = vmatpush1.msra.mxu0 0.0
    %739 = vmatprep.subr.mxu0 0.0
    %740 = vmatpush1.msra.mxu0 0.0
    %741 = vmatprep.subr.mxu0 0.0
    %742 = vmatpush1.msra.mxu0 0.0
    %743 = vmatprep.subr.mxu0 0.0
    %744 = vmatpush1.msra.mxu0 0.0
    %745 = vmatprep.subr.mxu0 0.0
    %746 = vmatpush1.msra.mxu0 0.0
    %747 = vmatprep.subr.mxu0 0.0
    %748 = vmatpush1.msra.mxu0 0.0
    %749 = vmatprep.mubr.f32.mxu0 0.0
    %750 = vmatmul.mubr.f32.gmra.mrb[0].mxu0 %v683
    %v751 = vpop.f32.mrb[0].mxu0
    %v752 = vadd.f32 %v49, %v751
    %v753 = vpop.f32.mrb[0].mxu0
    %v754 = vadd.f32 %v53, %v753
    %755 = vdwg.mxu0
    %s756 = scalar_lea.vmem %s0, 32
    %v757 = vld [vmem:[%s756] sm:$0xff]
    %s758 = scalar_lea.vmem %s0, 40
    %v759 = vld [vmem:[%s758] sm:$0xff]
    %v760 = vadd.f32 %v757, %v752
    %v761 = vxor.u32 %v760, 2147483648
    %v762 = vmul.f32 %v761, 1.442695
    %v763 = vpow.pop %v762
    %v764 = vadd.f32 %v763, 1.0
    %v765 = vrcp.pop %v764
    %v766 = vmul.f32 1.0, %v765
    %768 = vrot.lane.b32.xlu0 %v752, 64
    %v769 = vpop.permute.xlu0 %768
    %v771 = vmul.f32 %v766, %v769
    %773 = vrot.lane.b32.xlu0 %v771, 64
    %v774 = vpop.permute.xlu0 %773
    %v776 = vadd.f32 %v757, %v774
    %v777 = vtanh.pop %v776
    %v778 = vsub.f32 1.0, %v766
    %780 = vrot.lane.b32.xlu0 %v777, 96
    %v781 = vpop.permute.xlu0 %780
    %v783 = vmul.f32 %v778, %v781
    %v784 = vmul.f32 %v766, %v632
    %v785 = vadd.f32 %v783, %v784
    %v786 = vadd.f32 %v759, %v752
    %v787 = vxor.u32 %v786, 2147483648
    %v788 = vmul.f32 %v787, 1.442695
    %v789 = vpow.pop %v788
    %v790 = vadd.f32 %v789, 1.0
    %v791 = vrcp.pop %v790
    %v792 = vmul.f32 1.0, %v791
    %v794 = vrot.slane %v759, 4
    %v796 = vadd.f32 %v794, %v754
    %v797 = vxor.u32 %v796, 2147483648
    %v798 = vmul.f32 %v797, 1.442695
    %v799 = vpow.pop %v798
    %v800 = vadd.f32 %v799, 1.0
    %v801 = vrcp.pop %v800
    %v802 = vmul.f32 1.0, %v801
    %804 = vrot.lane.b32.xlu0 %v754, 64
    %v805 = vpop.permute.xlu0 %804
    %v807 = vmul.f32 %v792, %v805
    %808 = vrot.lane.b32.xlu0 %v759, 96
    %v809 = vpop.permute.xlu0 %808
    %v810 = vrot.slane %v809, 4
    %813 = vrot.lane.b32.xlu0 %v807, 32
    %v814 = vpop.permute.xlu0 %813
    %v816 = vadd.f32 %v810, %v814
    %v817 = vtanh.pop %v816
    %v818 = vsub.f32 1.0, %v802
    %v819 = vmul.f32 %v818, %v817
    %v820 = vmul.f32 %v802, %v668
    %v821 = vadd.f32 %v819, %v820
    %823 = vrot.lane.b32.xlu0 %v785, 96
    %v824 = vpop.permute.xlu0 %823
    %s826 = scalar_lea.vmem [#allocation2], 16
    %827 = vst.msk [vmem:[%s826] sm:$0xf] %vm213, %v824
    %829 = vrot.lane.b32.xlu0 %v821, 32
    %v830 = vpop.permute.xlu0 %829
    %s832 = scalar_lea.vmem [#allocation2], 20
    %833 = vst.msk [vmem:[%s832] sm:$0xf] %vm220, %v830
    %v834 = vsel %vm63, %v824, %v830
    %v836 = vsel %vm65, %v834, 0
    %838 = vmatprep.subr.mxu0 %v29
    %839 = vmatpush1.msra.mxu0 %v28
    %840 = vmatprep.subr.mxu0 %v31
    %841 = vmatpush1.msra.mxu0 %v30
    %842 = vmatprep.subr.mxu0 %v33
    %843 = vmatpush1.msra.mxu0 %v32
    %844 = vmatprep.subr.mxu0 %v35
    %845 = vmatpush1.msra.mxu0 %v34
    %846 = vmatprep.subr.mxu0 %v37
    %847 = vmatpush1.msra.mxu0 %v36
    %848 = vmatprep.subr.mxu0 %v39
    %849 = vmatpush1.msra.mxu0 %v38
    %850 = vmatprep.subr.mxu0 %v41
    %851 = vmatpush1.msra.mxu0 %v40
    %852 = vmatprep.subr.mxu0 %v43
    %853 = vmatpush1.msra.mxu0 %v42
    %854 = vmatprep.subr.mxu0 0.0
    %855 = vmatpush1.msra.mxu0 0.0
    %856 = vmatprep.subr.mxu0 0.0
    %857 = vmatpush1.msra.mxu0 0.0
    %858 = vmatprep.subr.mxu0 0.0
    %859 = vmatpush1.msra.mxu0 0.0
    %860 = vmatprep.subr.mxu0 0.0
    %861 = vmatpush1.msra.mxu0 0.0
    %862 = vmatprep.subr.mxu0 0.0
    %863 = vmatpush1.msra.mxu0 0.0
    %864 = vmatprep.subr.mxu0 0.0
    %865 = vmatpush1.msra.mxu0 0.0
    %866 = vmatprep.subr.mxu0 0.0
    %867 = vmatpush1.msra.mxu0 0.0
    %868 = vmatprep.subr.mxu0 0.0
    %869 = vmatpush1.msra.mxu0 0.0
    %870 = vmatprep.subr.mxu0 0.0
    %871 = vmatpush1.msra.mxu0 0.0
    %872 = vmatprep.subr.mxu0 0.0
    %873 = vmatpush1.msra.mxu0 0.0
    %874 = vmatprep.subr.mxu0 0.0
    %875 = vmatpush1.msra.mxu0 0.0
    %876 = vmatprep.subr.mxu0 0.0
    %877 = vmatpush1.msra.mxu0 0.0
    %878 = vmatprep.subr.mxu0 0.0
    %879 = vmatpush1.msra.mxu0 0.0
    %880 = vmatprep.subr.mxu0 0.0
    %881 = vmatpush1.msra.mxu0 0.0
    %882 = vmatprep.subr.mxu0 0.0
    %883 = vmatpush1.msra.mxu0 0.0
    %884 = vmatprep.subr.mxu0 0.0
    %885 = vmatpush1.msra.mxu0 0.0
    %886 = vmatprep.subr.mxu0 0.0
    %887 = vmatpush1.msra.mxu0 0.0
    %888 = vmatprep.subr.mxu0 0.0
    %889 = vmatpush1.msra.mxu0 0.0
    %890 = vmatprep.subr.mxu0 0.0
    %891 = vmatpush1.msra.mxu0 0.0
    %892 = vmatprep.subr.mxu0 0.0
    %893 = vmatpush1.msra.mxu0 0.0
    %894 = vmatprep.subr.mxu0 0.0
    %895 = vmatpush1.msra.mxu0 0.0
    %896 = vmatprep.subr.mxu0 0.0
    %897 = vmatpush1.msra.mxu0 0.0
    %898 = vmatprep.subr.mxu0 0.0
    %899 = vmatpush1.msra.mxu0 0.0
    %900 = vmatprep.subr.mxu0 0.0
    %901 = vmatpush1.msra.mxu0 0.0
    %902 = vmatprep.mubr.f32.mxu0 0.0
    %903 = vmatmul.mubr.f32.gmra.mrb[0].mxu0 %v836
    %v904 = vpop.f32.mrb[0].mxu0
    %v905 = vadd.f32 %v49, %v904
    %v906 = vpop.f32.mrb[0].mxu0
    %v907 = vadd.f32 %v53, %v906
    %908 = vdwg.mxu0
    %v909 = vld [vmem:[%s758] sm:$0xff]
    %v910 = vld [vmem:[%s756] sm:$0xff]
    %v911 = vadd.f32 %v909, %v905
    %v912 = vxor.u32 %v911, 2147483648
    %v913 = vmul.f32 %v912, 1.442695
    %v914 = vpow.pop %v913
    %v915 = vadd.f32 %v914, 1.0
    %v916 = vrcp.pop %v915
    %v917 = vmul.f32 1.0, %v916
    %919 = vrot.lane.b32.xlu0 %v905, 64
    %v920 = vpop.permute.xlu0 %919
    %v922 = vmul.f32 %v917, %v920
    %924 = vrot.lane.b32.xlu0 %v922, 64
    %v925 = vpop.permute.xlu0 %924
    %v927 = vadd.f32 %v909, %v925
    %v928 = vtanh.pop %v927
    %v929 = vsub.f32 1.0, %v917
    %931 = vrot.lane.b32.xlu0 %v928, 96
    %v932 = vpop.permute.xlu0 %931
    %v934 = vmul.f32 %v929, %v932
    %v935 = vmul.f32 %v917, %v785
    %v936 = vadd.f32 %v934, %v935
    %v937 = vadd.f32 %v910, %v905
    %v938 = vxor.u32 %v937, 2147483648
    %v939 = vmul.f32 %v938, 1.442695
    %v940 = vpow.pop %v939
    %v941 = vadd.f32 %v940, 1.0
    %v942 = vrcp.pop %v941
    %v943 = vmul.f32 1.0, %v942
    %v945 = vrot.slane %v910, 4
    %v947 = vadd.f32 %v945, %v907
    %v948 = vxor.u32 %v947, 2147483648
    %v949 = vmul.f32 %v948, 1.442695
    %v950 = vpow.pop %v949
    %v951 = vadd.f32 %v950, 1.0
    %v952 = vrcp.pop %v951
    %v953 = vmul.f32 1.0, %v952
    %955 = vrot.lane.b32.xlu0 %v907, 64
    %v956 = vpop.permute.xlu0 %955
    %v958 = vmul.f32 %v943, %v956
    %959 = vrot.lane.b32.xlu0 %v910, 96
    %v960 = vpop.permute.xlu0 %959
    %v961 = vrot.slane %v960, 4
    %964 = vrot.lane.b32.xlu0 %v958, 32
    %v965 = vpop.permute.xlu0 %964
    %v967 = vadd.f32 %v961, %v965
    %v968 = vtanh.pop %v967
    %v969 = vsub.f32 1.0, %v953
    %v970 = vmul.f32 %v969, %v968
    %v971 = vmul.f32 %v953, %v821
    %v972 = vadd.f32 %v970, %v971
    %974 = vrot.lane.b32.xlu0 %v936, 96
    %v975 = vpop.permute.xlu0 %974
    %977 = vst.msk [vmem:[%s832] sm:$0xf] %vm213, %v975
    %979 = vrot.lane.b32.xlu0 %v972, 32
    %v980 = vpop.permute.xlu0 %979
    %982 = vst.msk [vmem:[%s826] sm:$0xf] %vm220, %v980
    %v983 = vsel %vm63, %v975, %v980
    %v985 = vsel %vm65, %v983, 0
    %987 = vmatprep.subr.mxu0 %v29
    %988 = vmatpush1.msra.mxu0 %v28
    %989 = vmatprep.subr.mxu0 %v31
    %990 = vmatpush1.msra.mxu0 %v30
    %991 = vmatprep.subr.mxu0 %v33
    %992 = vmatpush1.msra.mxu0 %v32
    %993 = vmatprep.subr.mxu0 %v35
    %994 = vmatpush1.msra.mxu0 %v34
    %995 = vmatprep.subr.mxu0 %v37
    %996 = vmatpush1.msra.mxu0 %v36
    %997 = vmatprep.subr.mxu0 %v39
    %998 = vmatpush1.msra.mxu0 %v38
    %999 = vmatprep.subr.mxu0 %v41
    %1000 = vmatpush1.msra.mxu0 %v40
    %1001 = vmatprep.subr.mxu0 %v43
    %1002 = vmatpush1.msra.mxu0 %v42
    %1003 = vmatprep.subr.mxu0 0.0
    %1004 = vmatpush1.msra.mxu0 0.0
    %1005 = vmatprep.subr.mxu0 0.0
    %1006 = vmatpush1.msra.mxu0 0.0
    %1007 = vmatprep.subr.mxu0 0.0
    %1008 = vmatpush1.msra.mxu0 0.0
    %1009 = vmatprep.subr.mxu0 0.0
    %1010 = vmatpush1.msra.mxu0 0.0
    %1011 = vmatprep.subr.mxu0 0.0
    %1012 = vmatpush1.msra.mxu0 0.0
    %1013 = vmatprep.subr.mxu0 0.0
    %1014 = vmatpush1.msra.mxu0 0.0
    %1015 = vmatprep.subr.mxu0 0.0
    %1016 = vmatpush1.msra.mxu0 0.0
    %1017 = vmatprep.subr.mxu0 0.0
    %1018 = vmatpush1.msra.mxu0 0.0
    %1019 = vmatprep.subr.mxu0 0.0
    %1020 = vmatpush1.msra.mxu0 0.0
    %1021 = vmatprep.subr.mxu0 0.0
    %1022 = vmatpush1.msra.mxu0 0.0
    %1023 = vmatprep.subr.mxu0 0.0
    %1024 = vmatpush1.msra.mxu0 0.0
    %1025 = vmatprep.subr.mxu0 0.0
    %1026 = vmatpush1.msra.mxu0 0.0
    %1027 = vmatprep.subr.mxu0 0.0
    %1028 = vmatpush1.msra.mxu0 0.0
    %1029 = vmatprep.subr.mxu0 0.0
    %1030 = vmatpush1.msra.mxu0 0.0
    %1031 = vmatprep.subr.mxu0 0.0
    %1032 = vmatpush1.msra.mxu0 0.0
    %1033 = vmatprep.subr.mxu0 0.0
    %1034 = vmatpush1.msra.mxu0 0.0
    %1035 = vmatprep.subr.mxu0 0.0
    %1036 = vmatpush1.msra.mxu0 0.0
    %1037 = vmatprep.subr.mxu0 0.0
    %1038 = vmatpush1.msra.mxu0 0.0
    %1039 = vmatprep.subr.mxu0 0.0
    %1040 = vmatpush1.msra.mxu0 0.0
    %1041 = vmatprep.subr.mxu0 0.0
    %1042 = vmatpush1.msra.mxu0 0.0
    %1043 = vmatprep.subr.mxu0 0.0
    %1044 = vmatpush1.msra.mxu0 0.0
    %1045 = vmatprep.subr.mxu0 0.0
    %1046 = vmatpush1.msra.mxu0 0.0
    %1047 = vmatprep.subr.mxu0 0.0
    %1048 = vmatpush1.msra.mxu0 0.0
    %1049 = vmatprep.subr.mxu0 0.0
    %1050 = vmatpush1.msra.mxu0 0.0
    %1051 = vmatprep.mubr.f32.mxu0 0.0
    %1052 = vmatmul.mubr.f32.gmra.mrb[0].mxu0 %v985
    %v1053 = vpop.f32.mrb[0].mxu0
    %v1054 = vadd.f32 %v49, %v1053
    %v1055 = vpop.f32.mrb[0].mxu0
    %v1056 = vadd.f32 %v53, %v1055
    %1057 = vdwg.mxu0
    %v1058 = vld [vmem:[%s605] sm:$0xff]
    %v1059 = vld [vmem:[%s603] sm:$0xff]
    %v1060 = vadd.f32 %v1058, %v1054
    %v1061 = vxor.u32 %v1060, 2147483648
    %v1062 = vmul.f32 %v1061, 1.442695
    %v1063 = vpow.pop %v1062
    %v1064 = vadd.f32 %v1063, 1.0
    %v1065 = vrcp.pop %v1064
    %v1066 = vmul.f32 1.0, %v1065
    %1068 = vrot.lane.b32.xlu0 %v1054, 64
    %v1069 = vpop.permute.xlu0 %1068
    %v1071 = vmul.f32 %v1066, %v1069
    %1073 = vrot.lane.b32.xlu0 %v1071, 64
    %v1074 = vpop.permute.xlu0 %1073
    %v1076 = vadd.f32 %v1058, %v1074
    %v1077 = vtanh.pop %v1076
    %v1078 = vsub.f32 1.0, %v1066
    %1080 = vrot.lane.b32.xlu0 %v1077, 96
    %v1081 = vpop.permute.xlu0 %1080
    %v1083 = vmul.f32 %v1078, %v1081
    %v1084 = vmul.f32 %v1066, %v936
    %v1085 = vadd.f32 %v1083, %v1084
    %v1086 = vadd.f32 %v1059, %v1054
    %v1087 = vxor.u32 %v1086, 2147483648
    %v1088 = vmul.f32 %v1087, 1.442695
    %v1089 = vpow.pop %v1088
    %v1090 = vadd.f32 %v1089, 1.0
    %v1091 = vrcp.pop %v1090
    %v1092 = vmul.f32 1.0, %v1091
    %v1094 = vrot.slane %v1059, 4
    %v1096 = vadd.f32 %v1094, %v1056
    %v1097 = vxor.u32 %v1096, 2147483648
    %v1098 = vmul.f32 %v1097, 1.442695
    %v1099 = vpow.pop %v1098
    %v1100 = vadd.f32 %v1099, 1.0
    %v1101 = vrcp.pop %v1100
    %v1102 = vmul.f32 1.0, %v1101
    %1104 = vrot.lane.b32.xlu0 %v1056, 64
    %v1105 = vpop.permute.xlu0 %1104
    %v1107 = vmul.f32 %v1092, %v1105
    %1108 = vrot.lane.b32.xlu0 %v1059, 96
    %v1109 = vpop.permute.xlu0 %1108
    %v1110 = vrot.slane %v1109, 4
    %1113 = vrot.lane.b32.xlu0 %v1107, 32
    %v1114 = vpop.permute.xlu0 %1113
    %v1116 = vadd.f32 %v1110, %v1114
    %v1117 = vtanh.pop %v1116
    %v1118 = vsub.f32 1.0, %v1102
    %v1119 = vmul.f32 %v1118, %v1117
    %v1120 = vmul.f32 %v1102, %v972
    %v1121 = vadd.f32 %v1119, %v1120
    %1123 = vrot.lane.b32.xlu0 %v1085, 96
    %v1124 = vpop.permute.xlu0 %1123
    %1126 = vst.msk [vmem:[%s679] sm:$0xf] %vm213, %v1124
    %1128 = vrot.lane.b32.xlu0 %v1121, 32
    %v1129 = vpop.permute.xlu0 %1128
    %1131 = vst.msk [vmem:[%s673] sm:$0xf] %vm220, %v1129
    %v1132 = vsel %vm63, %v1124, %v1129
    %v1134 = vsel %vm65, %v1132, 0
    %1136 = vmatprep.subr.mxu0 %v29
    %1137 = vmatpush1.msra.mxu0 %v28
    %1138 = vmatprep.subr.mxu0 %v31
    %1139 = vmatpush1.msra.mxu0 %v30
    %1140 = vmatprep.subr.mxu0 %v33
    %1141 = vmatpush1.msra.mxu0 %v32
    %1142 = vmatprep.subr.mxu0 %v35
    %1143 = vmatpush1.msra.mxu0 %v34
    %1144 = vmatprep.subr.mxu0 %v37
    %1145 = vmatpush1.msra.mxu0 %v36
    %1146 = vmatprep.subr.mxu0 %v39
    %1147 = vmatpush1.msra.mxu0 %v38
    %1148 = vmatprep.subr.mxu0 %v41
    %1149 = vmatpush1.msra.mxu0 %v40
    %1150 = vmatprep.subr.mxu0 %v43
    %1151 = vmatpush1.msra.mxu0 %v42
    %1152 = vmatprep.subr.mxu0 0.0
    %1153 = vmatpush1.msra.mxu0 0.0
    %1154 = vmatprep.subr.mxu0 0.0
    %1155 = vmatpush1.msra.mxu0 0.0
    %1156 = vmatprep.subr.mxu0 0.0
    %1157 = vmatpush1.msra.mxu0 0.0
    %1158 = vmatprep.subr.mxu0 0.0
    %1159 = vmatpush1.msra.mxu0 0.0
    %1160 = vmatprep.subr.mxu0 0.0
    %1161 = vmatpush1.msra.mxu0 0.0
    %1162 = vmatprep.subr.mxu0 0.0
    %1163 = vmatpush1.msra.mxu0 0.0
    %1164 = vmatprep.subr.mxu0 0.0
    %1165 = vmatpush1.msra.mxu0 0.0
    %1166 = vmatprep.subr.mxu0 0.0
    %1167 = vmatpush1.msra.mxu0 0.0
    %1168 = vmatprep.subr.mxu0 0.0
    %1169 = vmatpush1.msra.mxu0 0.0
    %1170 = vmatprep.subr.mxu0 0.0
    %1171 = vmatpush1.msra.mxu0 0.0
    %1172 = vmatprep.subr.mxu0 0.0
    %1173 = vmatpush1.msra.mxu0 0.0
    %1174 = vmatprep.subr.mxu0 0.0
    %1175 = vmatpush1.msra.mxu0 0.0
    %1176 = vmatprep.subr.mxu0 0.0
    %1177 = vmatpush1.msra.mxu0 0.0
    %1178 = vmatprep.subr.mxu0 0.0
    %1179 = vmatpush1.msra.mxu0 0.0
    %1180 = vmatprep.subr.mxu0 0.0
    %1181 = vmatpush1.msra.mxu0 0.0
    %1182 = vmatprep.subr.mxu0 0.0
    %1183 = vmatpush1.msra.mxu0 0.0
    %1184 = vmatprep.subr.mxu0 0.0
    %1185 = vmatpush1.msra.mxu0 0.0
    %1186 = vmatprep.subr.mxu0 0.0
    %1187 = vmatpush1.msra.mxu0 0.0
    %1188 = vmatprep.subr.mxu0 0.0
    %1189 = vmatpush1.msra.mxu0 0.0
    %1190 = vmatprep.subr.mxu0 0.0
    %1191 = vmatpush1.msra.mxu0 0.0
    %1192 = vmatprep.subr.mxu0 0.0
    %1193 = vmatpush1.msra.mxu0 0.0
    %1194 = vmatprep.subr.mxu0 0.0
    %1195 = vmatpush1.msra.mxu0 0.0
    %1196 = vmatprep.subr.mxu0 0.0
    %1197 = vmatpush1.msra.mxu0 0.0
    %1198 = vmatprep.subr.mxu0 0.0
    %1199 = vmatpush1.msra.mxu0 0.0
    %1200 = vmatprep.mubr.f32.mxu0 0.0
    %1201 = vmatmul.mubr.f32.gmra.mrb[0].mxu0 %v1134
    %v1202 = vpop.f32.mrb[0].mxu0
    %v1203 = vadd.f32 %v49, %v1202
    %v1204 = vpop.f32.mrb[0].mxu0
    %v1205 = vadd.f32 %v53, %v1204
    %1206 = vdwg.mxu0
    %v1207 = vld [vmem:[%s452] sm:$0xff]
    %v1208 = vld [vmem:[%s450] sm:$0xff]
    %v1209 = vadd.f32 %v1207, %v1203
    %v1210 = vxor.u32 %v1209, 2147483648
    %v1211 = vmul.f32 %v1210, 1.442695
    %v1212 = vpow.pop %v1211
    %v1213 = vadd.f32 %v1212, 1.0
    %v1214 = vrcp.pop %v1213
    %v1215 = vmul.f32 1.0, %v1214
    %1217 = vrot.lane.b32.xlu0 %v1203, 64
    %v1218 = vpop.permute.xlu0 %1217
    %v1220 = vmul.f32 %v1215, %v1218
    %1222 = vrot.lane.b32.xlu0 %v1220, 64
    %v1223 = vpop.permute.xlu0 %1222
    %v1225 = vadd.f32 %v1207, %v1223
    %v1226 = vtanh.pop %v1225
    %v1227 = vsub.f32 1.0, %v1215
    %1229 = vrot.lane.b32.xlu0 %v1226, 96
    %v1230 = vpop.permute.xlu0 %1229
    %v1232 = vmul.f32 %v1227, %v1230
    %v1233 = vmul.f32 %v1215, %v1085
    %v1234 = vadd.f32 %v1232, %v1233
    %v1235 = vadd.f32 %v1208, %v1203
    %v1236 = vxor.u32 %v1235, 2147483648
    %v1237 = vmul.f32 %v1236, 1.442695
    %v1238 = vpow.pop %v1237
    %v1239 = vadd.f32 %v1238, 1.0
    %v1240 = vrcp.pop %v1239
    %v1241 = vmul.f32 1.0, %v1240
    %v1243 = vrot.slane %v1208, 4
    %v1245 = vadd.f32 %v1243, %v1205
    %v1246 = vxor.u32 %v1245, 2147483648
    %v1247 = vmul.f32 %v1246, 1.442695
    %v1248 = vpow.pop %v1247
    %v1249 = vadd.f32 %v1248, 1.0
    %v1250 = vrcp.pop %v1249
    %v1251 = vmul.f32 1.0, %v1250
    %1253 = vrot.lane.b32.xlu0 %v1205, 64
    %v1254 = vpop.permute.xlu0 %1253
    %v1256 = vmul.f32 %v1241, %v1254
    %1257 = vrot.lane.b32.xlu0 %v1208, 96
    %v1258 = vpop.permute.xlu0 %1257
    %v1259 = vrot.slane %v1258, 4
    %1262 = vrot.lane.b32.xlu0 %v1256, 32
    %v1263 = vpop.permute.xlu0 %1262
    %v1265 = vadd.f32 %v1259, %v1263
    %v1266 = vtanh.pop %v1265
    %v1267 = vsub.f32 1.0, %v1251
    %v1268 = vmul.f32 %v1267, %v1266
    %v1269 = vmul.f32 %v1251, %v1121
    %v1270 = vadd.f32 %v1268, %v1269
    %1272 = vrot.lane.b32.xlu0 %v1234, 96
    %v1273 = vpop.permute.xlu0 %1272
    %1275 = vst.msk [vmem:[%s526] sm:$0xf] %vm213, %v1273
    %1277 = vrot.lane.b32.xlu0 %v1270, 32
    %v1278 = vpop.permute.xlu0 %1277
    %1280 = vst.msk [vmem:[%s520] sm:$0xf] %vm220, %v1278
    %v1281 = vsel %vm63, %v1273, %v1278
    %v1283 = vsel %vm65, %v1281, 0
    %1285 = vmatprep.subr.mxu0 %v29
    %1286 = vmatpush1.msra.mxu0 %v28
    %1287 = vmatprep.subr.mxu0 %v31
    %1288 = vmatpush1.msra.mxu0 %v30
    %1289 = vmatprep.subr.mxu0 %v33
    %1290 = vmatpush1.msra.mxu0 %v32
    %1291 = vmatprep.subr.mxu0 %v35
    %1292 = vmatpush1.msra.mxu0 %v34
    %1293 = vmatprep.subr.mxu0 %v37
    %1294 = vmatpush1.msra.mxu0 %v36
    %1295 = vmatprep.subr.mxu0 %v39
    %1296 = vmatpush1.msra.mxu0 %v38
    %1297 = vmatprep.subr.mxu0 %v41
    %1298 = vmatpush1.msra.mxu0 %v40
    %1299 = vmatprep.subr.mxu0 %v43
    %1300 = vmatpush1.msra.mxu0 %v42
    %1301 = vmatprep.subr.mxu0 0.0
    %1302 = vmatpush1.msra.mxu0 0.0
    %1303 = vmatprep.subr.mxu0 0.0
    %1304 = vmatpush1.msra.mxu0 0.0
    %1305 = vmatprep.subr.mxu0 0.0
    %1306 = vmatpush1.msra.mxu0 0.0
    %1307 = vmatprep.subr.mxu0 0.0
    %1308 = vmatpush1.msra.mxu0 0.0
    %1309 = vmatprep.subr.mxu0 0.0
    %1310 = vmatpush1.msra.mxu0 0.0
    %1311 = vmatprep.subr.mxu0 0.0
    %1312 = vmatpush1.msra.mxu0 0.0
    %1313 = vmatprep.subr.mxu0 0.0
    %1314 = vmatpush1.msra.mxu0 0.0
    %1315 = vmatprep.subr.mxu0 0.0
    %1316 = vmatpush1.msra.mxu0 0.0
    %1317 = vmatprep.subr.mxu0 0.0
    %1318 = vmatpush1.msra.mxu0 0.0
    %1319 = vmatprep.subr.mxu0 0.0
    %1320 = vmatpush1.msra.mxu0 0.0
    %1321 = vmatprep.subr.mxu0 0.0
    %1322 = vmatpush1.msra.mxu0 0.0
    %1323 = vmatprep.subr.mxu0 0.0
    %1324 = vmatpush1.msra.mxu0 0.0
    %1325 = vmatprep.subr.mxu0 0.0
    %1326 = vmatpush1.msra.mxu0 0.0
    %1327 = vmatprep.subr.mxu0 0.0
    %1328 = vmatpush1.msra.mxu0 0.0
    %1329 = vmatprep.subr.mxu0 0.0
    %1330 = vmatpush1.msra.mxu0 0.0
    %1331 = vmatprep.subr.mxu0 0.0
    %1332 = vmatpush1.msra.mxu0 0.0
    %1333 = vmatprep.subr.mxu0 0.0
    %1334 = vmatpush1.msra.mxu0 0.0
    %1335 = vmatprep.subr.mxu0 0.0
    %1336 = vmatpush1.msra.mxu0 0.0
    %1337 = vmatprep.subr.mxu0 0.0
    %1338 = vmatpush1.msra.mxu0 0.0
    %1339 = vmatprep.subr.mxu0 0.0
    %1340 = vmatpush1.msra.mxu0 0.0
    %1341 = vmatprep.subr.mxu0 0.0
    %1342 = vmatpush1.msra.mxu0 0.0
    %1343 = vmatprep.subr.mxu0 0.0
    %1344 = vmatpush1.msra.mxu0 0.0
    %1345 = vmatprep.subr.mxu0 0.0
    %1346 = vmatpush1.msra.mxu0 0.0
    %1347 = vmatprep.subr.mxu0 0.0
    %1348 = vmatpush1.msra.mxu0 0.0
    %1349 = vmatprep.mubr.f32.mxu0 0.0
    %1350 = vmatmul.mubr.f32.gmra.mrb[0].mxu0 %v1283
    %v1351 = vpop.f32.mrb[0].mxu0
    %v1352 = vadd.f32 %v49, %v1351
    %v1353 = vpop.f32.mrb[0].mxu0
    %v1354 = vadd.f32 %v53, %v1353
    %1355 = vdwg.mxu0
    %v1356 = vld [vmem:[%s299] sm:$0xff]
    %v1357 = vld [vmem:[%s297] sm:$0xff]
    %v1358 = vadd.f32 %v1356, %v1352
    %v1359 = vxor.u32 %v1358, 2147483648
    %v1360 = vmul.f32 %v1359, 1.442695
    %v1361 = vpow.pop %v1360
    %v1362 = vadd.f32 %v1361, 1.0
    %v1363 = vrcp.pop %v1362
    %v1364 = vmul.f32 1.0, %v1363
    %1366 = vrot.lane.b32.xlu0 %v1352, 64
    %v1367 = vpop.permute.xlu0 %1366
    %v1369 = vmul.f32 %v1364, %v1367
    %1371 = vrot.lane.b32.xlu0 %v1369, 64
    %v1372 = vpop.permute.xlu0 %1371
    %v1374 = vadd.f32 %v1356, %v1372
    %v1375 = vtanh.pop %v1374
    %v1376 = vsub.f32 1.0, %v1364
    %1378 = vrot.lane.b32.xlu0 %v1375, 96
    %v1379 = vpop.permute.xlu0 %1378
    %v1381 = vmul.f32 %v1376, %v1379
    %v1382 = vmul.f32 %v1364, %v1234
    %v1383 = vadd.f32 %v1381, %v1382
    %v1384 = vadd.f32 %v1357, %v1352
    %v1385 = vxor.u32 %v1384, 2147483648
    %v1386 = vmul.f32 %v1385, 1.442695
    %v1387 = vpow.pop %v1386
    %v1388 = vadd.f32 %v1387, 1.0
    %v1389 = vrcp.pop %v1388
    %v1390 = vmul.f32 1.0, %v1389
    %v1392 = vrot.slane %v1357, 4
    %v1394 = vadd.f32 %v1392, %v1354
    %v1395 = vxor.u32 %v1394, 2147483648
    %v1396 = vmul.f32 %v1395, 1.442695
    %v1397 = vpow.pop %v1396
    %v1398 = vadd.f32 %v1397, 1.0
    %v1399 = vrcp.pop %v1398
    %v1400 = vmul.f32 1.0, %v1399
    %1402 = vrot.lane.b32.xlu0 %v1354, 64
    %v1403 = vpop.permute.xlu0 %1402
    %v1405 = vmul.f32 %v1390, %v1403
    %1406 = vrot.lane.b32.xlu0 %v1357, 96
    %v1407 = vpop.permute.xlu0 %1406
    %v1408 = vrot.slane %v1407, 4
    %1411 = vrot.lane.b32.xlu0 %v1405, 32
    %v1412 = vpop.permute.xlu0 %1411
    %v1414 = vadd.f32 %v1408, %v1412
    %v1415 = vtanh.pop %v1414
    %v1416 = vsub.f32 1.0, %v1400
    %v1417 = vmul.f32 %v1416, %v1415
    %v1418 = vmul.f32 %v1400, %v1270
    %v1419 = vadd.f32 %v1417, %v1418
    %1421 = vrot.lane.b32.xlu0 %v1383, 96
    %v1422 = vpop.permute.xlu0 %1421
    %1424 = vst.msk [vmem:[%s373] sm:$0xf] %vm213, %v1422
    %1426 = vrot.lane.b32.xlu0 %v1419, 32
    %v1427 = vpop.permute.xlu0 %1426
    %1429 = vst.msk [vmem:[%s367] sm:$0xf] %vm220, %v1427
    %v1430 = vsel %vm63, %v1422, %v1427
    %v1432 = vsel %vm65, %v1430, 0
    %1434 = vmatprep.subr.mxu0 %v29
    %1435 = vmatpush1.msra.mxu0 %v28
    %1436 = vmatprep.subr.mxu0 %v31
    %1437 = vmatpush1.msra.mxu0 %v30
    %1438 = vmatprep.subr.mxu0 %v33
    %1439 = vmatpush1.msra.mxu0 %v32
    %1440 = vmatprep.subr.mxu0 %v35
    %1441 = vmatpush1.msra.mxu0 %v34
    %1442 = vmatprep.subr.mxu0 %v37
    %1443 = vmatpush1.msra.mxu0 %v36
    %1444 = vmatprep.subr.mxu0 %v39
    %1445 = vmatpush1.msra.mxu0 %v38
    %1446 = vmatprep.subr.mxu0 %v41
    %1447 = vmatpush1.msra.mxu0 %v40
    %1448 = vmatprep.subr.mxu0 %v43
    %1449 = vmatpush1.msra.mxu0 %v42
    %1450 = vmatprep.subr.mxu0 0.0
    %1451 = vmatpush1.msra.mxu0 0.0
    %1452 = vmatprep.subr.mxu0 0.0
    %1453 = vmatpush1.msra.mxu0 0.0
    %1454 = vmatprep.subr.mxu0 0.0
    %1455 = vmatpush1.msra.mxu0 0.0
    %1456 = vmatprep.subr.mxu0 0.0
    %1457 = vmatpush1.msra.mxu0 0.0
    %1458 = vmatprep.subr.mxu0 0.0
    %1459 = vmatpush1.msra.mxu0 0.0
    %1460 = vmatprep.subr.mxu0 0.0
    %1461 = vmatpush1.msra.mxu0 0.0
    %1462 = vmatprep.subr.mxu0 0.0
    %1463 = vmatpush1.msra.mxu0 0.0
    %1464 = vmatprep.subr.mxu0 0.0
    %1465 = vmatpush1.msra.mxu0 0.0
    %1466 = vmatprep.subr.mxu0 0.0
    %1467 = vmatpush1.msra.mxu0 0.0
    %1468 = vmatprep.subr.mxu0 0.0
    %1469 = vmatpush1.msra.mxu0 0.0
    %1470 = vmatprep.subr.mxu0 0.0
    %1471 = vmatpush1.msra.mxu0 0.0
    %1472 = vmatprep.subr.mxu0 0.0
    %1473 = vmatpush1.msra.mxu0 0.0
    %1474 = vmatprep.subr.mxu0 0.0
    %1475 = vmatpush1.msra.mxu0 0.0
    %1476 = vmatprep.subr.mxu0 0.0
    %1477 = vmatpush1.msra.mxu0 0.0
    %1478 = vmatprep.subr.mxu0 0.0
    %1479 = vmatpush1.msra.mxu0 0.0
    %1480 = vmatprep.subr.mxu0 0.0
    %1481 = vmatpush1.msra.mxu0 0.0
    %1482 = vmatprep.subr.mxu0 0.0
    %1483 = vmatpush1.msra.mxu0 0.0
    %1484 = vmatprep.subr.mxu0 0.0
    %1485 = vmatpush1.msra.mxu0 0.0
    %1486 = vmatprep.subr.mxu0 0.0
    %1487 = vmatpush1.msra.mxu0 0.0
    %1488 = vmatprep.subr.mxu0 0.0
    %1489 = vmatpush1.msra.mxu0 0.0
    %1490 = vmatprep.subr.mxu0 0.0
    %1491 = vmatpush1.msra.mxu0 0.0
    %1492 = vmatprep.subr.mxu0 0.0
    %1493 = vmatpush1.msra.mxu0 0.0
    %1494 = vmatprep.subr.mxu0 0.0
    %1495 = vmatpush1.msra.mxu0 0.0
    %1496 = vmatprep.subr.mxu0 0.0
    %1497 = vmatpush1.msra.mxu0 0.0
    %1498 = vmatprep.mubr.f32.mxu0 0.0
    %1499 = vmatmul.mubr.f32.gmra.mrb[0].mxu0 %v1432
    %v1500 = vpop.f32.mrb[0].mxu0
    %v1501 = vadd.f32 %v49, %v1500
    %v1502 = vpop.f32.mrb[0].mxu0
    %v1503 = vadd.f32 %v53, %v1502
    %1504 = vdwg.mxu0
    %v1505 = vld [vmem:[%s141] sm:$0xff]
    %v1506 = vld [vmem:[%s0] sm:$0xff]
    %v1507 = vadd.f32 %v1505, %v1501
    %v1508 = vxor.u32 %v1507, 2147483648
    %v1509 = vmul.f32 %v1508, 1.442695
    %v1510 = vpow.pop %v1509
    %v1511 = vadd.f32 %v1510, 1.0
    %v1512 = vrcp.pop %v1511
    %v1513 = vmul.f32 1.0, %v1512
    %1515 = vrot.lane.b32.xlu0 %v1501, 64
    %v1516 = vpop.permute.xlu0 %1515
    %v1518 = vmul.f32 %v1513, %v1516
    %1520 = vrot.lane.b32.xlu0 %v1518, 64
    %v1521 = vpop.permute.xlu0 %1520
    %v1523 = vadd.f32 %v1505, %v1521
    %v1524 = vtanh.pop %v1523
    %v1525 = vsub.f32 1.0, %v1513
    %1527 = vrot.lane.b32.xlu0 %v1524, 96
    %v1528 = vpop.permute.xlu0 %1527
    %v1530 = vmul.f32 %v1525, %v1528
    %v1531 = vmul.f32 %v1513, %v1383
    %v1532 = vadd.f32 %v1530, %v1531
    %v1533 = vadd.f32 %v1506, %v1501
    %v1534 = vxor.u32 %v1533, 2147483648
    %v1535 = vmul.f32 %v1534, 1.442695
    %v1536 = vpow.pop %v1535
    %v1537 = vadd.f32 %v1536, 1.0
    %v1538 = vrcp.pop %v1537
    %v1539 = vmul.f32 1.0, %v1538
    %v1541 = vrot.slane %v1506, 4
    %v1543 = vadd.f32 %v1541, %v1503
    %v1544 = vxor.u32 %v1543, 2147483648
    %v1545 = vmul.f32 %v1544, 1.442695
    %v1546 = vpow.pop %v1545
    %v1547 = vadd.f32 %v1546, 1.0
    %v1548 = vrcp.pop %v1547
    %v1549 = vmul.f32 1.0, %v1548
    %1551 = vrot.lane.b32.xlu0 %v1503, 64
    %v1552 = vpop.permute.xlu0 %1551
    %v1554 = vmul.f32 %v1539, %v1552
    %1555 = vrot.lane.b32.xlu0 %v1506, 96
    %v1556 = vpop.permute.xlu0 %1555
    %v1557 = vrot.slane %v1556, 4
    %1560 = vrot.lane.b32.xlu0 %v1554, 32
    %v1561 = vpop.permute.xlu0 %1560
    %v1563 = vadd.f32 %v1557, %v1561
    %v1564 = vtanh.pop %v1563
    %v1565 = vsub.f32 1.0, %v1549
    %v1566 = vmul.f32 %v1565, %v1564
    %v1567 = vmul.f32 %v1549, %v1419
    %v1568 = vadd.f32 %v1566, %v1567
    %1570 = vrot.lane.b32.xlu0 %v1532, 96
    %v1571 = vpop.permute.xlu0 %1570
    %1573 = vst.msk [vmem:[%s219] sm:$0xf] %vm213, %v1571
    %1575 = vrot.lane.b32.xlu0 %v1568, 32
    %v1576 = vpop.permute.xlu0 %1575
    %1578 = vst.msk [vmem:[#allocation2] sm:$0xf] %vm220, %v1576
    %v1579 = vsel %vm63, %v1571, %v1576
    %v1580 = vmax.f32 %v1579, -5.0
    %v1581 = vmin.f32 %v1580, 5.0
    %v1582 = vld [vmem:[%s4] sm:$0xff]
    %v1583 = vld [vmem:[%s4 + $0x8] sm:$0xff]
    %v1584 = vld [vmem:[%s4 + $0x10] sm:$0xff]
    %v1585 = vld [vmem:[%s4 + $0x18] sm:$0xff]
    %v1586 = vld [vmem:[%s4 + $0x20] sm:$0xff]
    %v1587 = vld [vmem:[%s4 + $0x28] sm:$0xff]
    %v1588 = vld [vmem:[%s4 + $0x30] sm:$0xff]
    %v1589 = vld [vmem:[%s4 + $0x38] sm:$0xff]
    %v1590 = vld [vmem:[%s5] sm:$0x1]
    %v1592 = vlaneseq
    %v1593 = vshrl.u32 %v1592, 7
    %v1594 = vsub.s32 0, %v1593
    %v1595 = vrot.slane %v1590, %v1594
    %v1598 = vsel %vm65, %v1581, 0
    %1600 = vmatprep.subr.mxu0 0.0
    %1601 = vmatpush1.msra.mxu0 %v1582
    %1602 = vmatprep.subr.mxu0 0.0
    %1603 = vmatpush1.msra.mxu0 %v1583
    %1604 = vmatprep.subr.mxu0 0.0
    %1605 = vmatpush1.msra.mxu0 %v1584
    %1606 = vmatprep.subr.mxu0 0.0
    %1607 = vmatpush1.msra.mxu0 %v1585
    %1608 = vmatprep.subr.mxu0 0.0
    %1609 = vmatpush1.msra.mxu0 %v1586
    %1610 = vmatprep.subr.mxu0 0.0
    %1611 = vmatpush1.msra.mxu0 %v1587
    %1612 = vmatprep.subr.mxu0 0.0
    %1613 = vmatpush1.msra.mxu0 %v1588
    %1614 = vmatprep.subr.mxu0 0.0
    %1615 = vmatpush1.msra.mxu0 %v1589
    %1616 = vmatprep.subr.mxu0 0.0
    %1617 = vmatpush1.msra.mxu0 0.0
    %1618 = vmatprep.subr.mxu0 0.0
    %1619 = vmatpush1.msra.mxu0 0.0
    %1620 = vmatprep.subr.mxu0 0.0
    %1621 = vmatpush1.msra.mxu0 0.0
    %1622 = vmatprep.subr.mxu0 0.0
    %1623 = vmatpush1.msra.mxu0 0.0
    %1624 = vmatprep.subr.mxu0 0.0
    %1625 = vmatpush1.msra.mxu0 0.0
    %1626 = vmatprep.subr.mxu0 0.0
    %1627 = vmatpush1.msra.mxu0 0.0
    %1628 = vmatprep.subr.mxu0 0.0
    %1629 = vmatpush1.msra.mxu0 0.0
    %1630 = vmatprep.subr.mxu0 0.0
    %1631 = vmatpush1.msra.mxu0 0.0
    %1632 = vmatprep.subr.mxu0 0.0
    %1633 = vmatpush1.msra.mxu0 0.0
    %1634 = vmatprep.subr.mxu0 0.0
    %1635 = vmatpush1.msra.mxu0 0.0
    %1636 = vmatprep.subr.mxu0 0.0
    %1637 = vmatpush1.msra.mxu0 0.0
    %1638 = vmatprep.subr.mxu0 0.0
    %1639 = vmatpush1.msra.mxu0 0.0
    %1640 = vmatprep.subr.mxu0 0.0
    %1641 = vmatpush1.msra.mxu0 0.0
    %1642 = vmatprep.subr.mxu0 0.0
    %1643 = vmatpush1.msra.mxu0 0.0
    %1644 = vmatprep.subr.mxu0 0.0
    %1645 = vmatpush1.msra.mxu0 0.0
    %1646 = vmatprep.subr.mxu0 0.0
    %1647 = vmatpush1.msra.mxu0 0.0
    %1648 = vmatprep.subr.mxu0 0.0
    %1649 = vmatpush1.msra.mxu0 0.0
    %1650 = vmatprep.subr.mxu0 0.0
    %1651 = vmatpush1.msra.mxu0 0.0
    %1652 = vmatprep.subr.mxu0 0.0
    %1653 = vmatpush1.msra.mxu0 0.0
    %1654 = vmatprep.subr.mxu0 0.0
    %1655 = vmatpush1.msra.mxu0 0.0
    %1656 = vmatprep.subr.mxu0 0.0
    %1657 = vmatpush1.msra.mxu0 0.0
    %1658 = vmatprep.subr.mxu0 0.0
    %1659 = vmatpush1.msra.mxu0 0.0
    %1660 = vmatprep.subr.mxu0 0.0
    %1661 = vmatpush1.msra.mxu0 0.0
    %1662 = vmatprep.subr.mxu0 0.0
    %1663 = vmatpush1.msra.mxu0 0.0
    %1664 = vmatprep.mubr.f32.mxu0 0.0
    %1665 = vmatmul.mubr.f32.gmra.mrb[0].mxu0 %v1598
    %v1666 = vpop.f32.mrb[0].mxu0
    %v1667 = vadd.f32 %v1595, %v1666
    %v1668 = vpop.f32.mrb[0].mxu0
    %1669 = vdwg.mxu0
    %vm1670 = vcmask 125952
    %1671 = vst.msk [vmem:[#allocation4] sm:$0xf] %vm1670, %v1667
    %1673 = vrot.lane.b32.xlu0 %v1667, 112
    %v1674 = vpop.permute.xlu0 %1673
    %1676 = vst.msk [vmem:[#allocation6] sm:$0xf] %vm1670, %v1674
    // Predicated region
    $region26: #{lfads_encoder_forward.2} parent=1 // pred_check
      _
    $region27: #{lfads_encoder_forward.2} parent=1 // pred_check_branch
      %1678 = sbr.rel (0) target = $region29
    $region28: #{lfads_encoder_forward.2} parent=1 // pred_region
      %s1680 = ssub.s32 640, 640
      %1681 = vsyncadd [#allocation3], %s1680
      %s1682 = sshll.u32 [#allocation2], 4
      %s1683 = int_to_ptr.vmem [resolvable:$true] %s1682
      %1688 = dma.vmem_to_hbm [thread:$0]  %s1683, 640, %s6, [#allocation3], 64, 64, 4
    $region29: #{lfads_encoder_forward.2} parent=1 // pred_fallthru
      _
    // Predicated region
    $region30: #{lfads_encoder_forward.2} parent=1 // pred_check
      _
    $region31: #{lfads_encoder_forward.2} parent=1 // pred_check_branch
      %1690 = sbr.rel (0) target = $region33
    $region32: #{lfads_encoder_forward.2} parent=1 // pred_region
      %s1692 = ssub.s32 64, 64
      %1693 = vsyncadd [#allocation5], %s1692
      %s1695 = sshll.u32 [#allocation4], 4
      %s1696 = int_to_ptr.vmem [resolvable:$true] %s1695
      %1698 = dma.vmem_to_hbm [thread:$0]  %s1696, 64, %s7, [#allocation5]
    $region33: #{lfads_encoder_forward.2} parent=1 // pred_fallthru
      _
    // Predicated region
    $region34: #{lfads_encoder_forward.2} parent=1 // pred_check
      _
    $region35: #{lfads_encoder_forward.2} parent=1 // pred_check_branch
      %1700 = sbr.rel (0) target = $region37
    $region36: #{lfads_encoder_forward.2} parent=1 // pred_region
      %s1702 = ssub.s32 64, 64
      %1703 = vsyncadd [#allocation5], %s1702
      %s1705 = sshll.u32 [#allocation6], 4
      %s1706 = int_to_ptr.vmem [resolvable:$true] %s1705
      %1708 = dma.vmem_to_hbm [thread:$0]  %s1706, 64, %s8, [#allocation5]
    $region37: #{lfads_encoder_forward.2} parent=1 // pred_fallthru
      _
    // Predicated region
    $region38: #{lfads_encoder_forward.2} parent=1 // pred_check
      _
    $region39: #{lfads_encoder_forward.2} parent=1 // pred_check_branch
      %1710 = sbr.rel (0) target = $region41
    $region40: #{lfads_encoder_forward.2} parent=1 // pred_region
      %1711 = dma.done [#allocation3], 640
    $region41: #{lfads_encoder_forward.2} parent=1 // pred_fallthru
      _
    // Predicated region
    $region42: #{lfads_encoder_forward.2} parent=1 // pred_check
      _
    $region43: #{lfads_encoder_forward.2} parent=1 // pred_check_branch
      %1713 = sbr.rel (0) target = $region45
    $region44: #{lfads_encoder_forward.2} parent=1 // pred_region
      %1714 = dma.done [#allocation5], 64
    $region45: #{lfads_encoder_forward.2} parent=1 // pred_fallthru
      _
    // Predicated region
    $region46: #{lfads_encoder_forward.2} parent=1 // pred_check
      _
    $region47: #{lfads_encoder_forward.2} parent=1 // pred_check_branch
      %1716 = sbr.rel (0) target = $region49
    $region48: #{lfads_encoder_forward.2} parent=1 // pred_region
      %1717 = dma.done [#allocation5], 64
    $region49: #{lfads_encoder_forward.2} parent=1 // pred_fallthru
      _
    %1718 = vsyncpa [#allocation3], 1
    %1719 = vsyncpa [#allocation5], 1

// kernel: lfads_encoder_forward.3
$region0: #{lfads_encoder_forward.3}
  #allocation0 [shape = 'u32[]', space=smem, size = 0x4, offset = 0x4, fixed_abs, tag = 'smem constant byte address 0x4 - core index']
  #allocation1 [shape = 'u32[144,128]{1,0:T(1,128)}', space=vmem, size = 0x12000, scoped, tag = 'internal scratch']
  %s0 = inlined_call_operand.vmem [shape: f32[10,4,48], index: 0, kind: input, shape index: {}]
  %s1 = inlined_call_operand.vmem [shape: f32[2,4,8], index: 1, kind: input, shape index: {}]
  %s2 = inlined_call_operand.vmem [shape: f32[16,48], index: 2, kind: input, shape index: {}]
  %s3 = inlined_call_operand.vmem [shape: f32[1,48], index: 3, kind: input, shape index: {}]
  %s4 = inlined_call_operand.hbm [shape: f32[10,4,16], index: 4, kind: output, shape index: {}]
  %s5 = sld [smem:[#allocation0]]
  $region26: #{lfads_encoder_forward.3} parent=0
    _
  %s7 = ssub.s32 1, %s5
  %s8 = scalar_select 0, %s7, %s5
  $region1: #{lfads_encoder_forward.3} parent=0
    #allocation2 [shape = 'u8[20480]{0}', space=vmem, size = 0x5000, scoped, tag = 'output window, operand 0, single buffered']
    #allocation3 [shape = 's32[1]{0}', space=sflag, size = 0x4, scoped, tag = 'scoped memory for lfads_encoder_forward.3']
    %9 = vsyncpa [#allocation3], 0
    // Predicated region
    $region2: #{lfads_encoder_forward.3} parent=1 // pred_check
      _
    $region3: #{lfads_encoder_forward.3} parent=1 // pred_check_branch
      %11 = sbr.rel (0) target = $region5
    $region4: #{lfads_encoder_forward.3} parent=1 // pred_region
      _
    $region5: #{lfads_encoder_forward.3} parent=1 // pred_fallthru
      _
    // Predicated region
    $region6: #{lfads_encoder_forward.3} parent=1 // pred_check
      _
    $region7: #{lfads_encoder_forward.3} parent=1 // pred_check_branch
      %13 = sbr.rel (0) target = $region9
    $region8: #{lfads_encoder_forward.3} parent=1 // pred_region
      _
    $region9: #{lfads_encoder_forward.3} parent=1 // pred_fallthru
      _
    // Predicated region
    $region10: #{lfads_encoder_forward.3} parent=1 // pred_check
      _
    $region11: #{lfads_encoder_forward.3} parent=1 // pred_check_branch
      %15 = sbr.rel (0) target = $region13
    $region12: #{lfads_encoder_forward.3} parent=1 // pred_region
      _
    $region13: #{lfads_encoder_forward.3} parent=1 // pred_fallthru
      _
    // Predicated region
    $region14: #{lfads_encoder_forward.3} parent=1 // pred_check
      _
    $region15: #{lfads_encoder_forward.3} parent=1 // pred_check_branch
      %17 = sbr.rel (0) target = $region17
    $region16: #{lfads_encoder_forward.3} parent=1 // pred_region
      _
    $region17: #{lfads_encoder_forward.3} parent=1 // pred_fallthru
      _
    %v18 = vld [vmem:[%s2] sm:$0xff]
    %v19 = vld [vmem:[%s2 + $0x8] sm:$0xff]
    %v20 = vld [vmem:[%s3] sm:$0x1]
    %v22 = vlaneseq
    %v23 = vshrl.u32 %v22, 7
    %v24 = vsub.s32 0, %v23
    %v25 = vrot.slane %v20, %v24
    %v27 = vld [vmem:[%s1] sm:$0xf]
    %s28 = scalar_lea.vmem %s1, 4
    %v29 = vld [vmem:[%s28] sm:$0xf]
    %31 = vrot.lane.b32.xlu0 %v29, 8
    %v32 = vpop.permute.xlu0 %31
    %vm34 = vcmask 64512
    %v35 = vsel %vm34, %v27, %v32
    %vm36 = vcmask 130048
    %v38 = vsel %vm36, %v35, 0
    %40 = vmatprep.subr.mxu0 0.0
    %41 = vmatpush1.msra.mxu0 %v18
    %42 = vmatprep.subr.mxu0 0.0
    %43 = vmatpush1.msra.mxu0 %v19
    %44 = vmatprep.subr.mxu0 0.0
    %45 = vmatpush1.msra.mxu0 0.0
    %46 = vmatprep.subr.mxu0 0.0
    %47 = vmatpush1.msra.mxu0 0.0
    %48 = vmatprep.subr.mxu0 0.0
    %49 = vmatpush1.msra.mxu0 0.0
    %50 = vmatprep.subr.mxu0 0.0
    %51 = vmatpush1.msra.mxu0 0.0
    %52 = vmatprep.subr.mxu0 0.0
    %53 = vmatpush1.msra.mxu0 0.0
    %54 = vmatprep.subr.mxu0 0.0
    %55 = vmatpush1.msra.mxu0 0.0
    %56 = vmatprep.subr.mxu0 0.0
    %57 = vmatpush1.msra.mxu0 0.0
    %58 = vmatprep.subr.mxu0 0.0
    %59 = vmatpush1.msra.mxu0 0.0
    %60 = vmatprep.subr.mxu0 0.0
    %61 = vmatpush1.msra.mxu0 0.0
    %62 = vmatprep.subr.mxu0 0.0
    %63 = vmatpush1.msra.mxu0 0.0
    %64 = vmatprep.subr.mxu0 0.0
    %65 = vmatpush1.msra.mxu0 0.0
    %66 = vmatprep.subr.mxu0 0.0
    %67 = vmatpush1.msra.mxu0 0.0
    %68 = vmatprep.subr.mxu0 0.0
    %69 = vmatpush1.msra.mxu0 0.0
    %70 = vmatprep.subr.mxu0 0.0
    %71 = vmatpush1.msra.mxu0 0.0
    %72 = vmatprep.subr.mxu0 0.0
    %73 = vmatpush1.msra.mxu0 0.0
    %74 = vmatprep.subr.mxu0 0.0
    %75 = vmatpush1.msra.mxu0 0.0
    %76 = vmatprep.subr.mxu0 0.0
    %77 = vmatpush1.msra.mxu0 0.0
    %78 = vmatprep.subr.mxu0 0.0
    %79 = vmatpush1.msra.mxu0 0.0
    %80 = vmatprep.subr.mxu0 0.0
    %81 = vmatpush1.msra.mxu0 0.0
    %82 = vmatprep.subr.mxu0 0.0
    %83 = vmatpush1.msra.mxu0 0.0
    %84 = vmatprep.subr.mxu0 0.0
    %85 = vmatpush1.msra.mxu0 0.0
    %86 = vmatprep.subr.mxu0 0.0
    %87 = vmatpush1.msra.mxu0 0.0
    %88 = vmatprep.subr.mxu0 0.0
    %89 = vmatpush1.msra.mxu0 0.0
    %90 = vmatprep.subr.mxu0 0.0
    %91 = vmatpush1.msra.mxu0 0.0
    %92 = vmatprep.subr.mxu0 0.0
    %93 = vmatpush1.msra.mxu0 0.0
    %94 = vmatprep.subr.mxu0 0.0
    %95 = vmatpush1.msra.mxu0 0.0
    %96 = vmatprep.subr.mxu0 0.0
    %97 = vmatpush1.msra.mxu0 0.0
    %98 = vmatprep.subr.mxu0 0.0
    %99 = vmatpush1.msra.mxu0 0.0
    %100 = vmatprep.subr.mxu0 0.0
    %101 = vmatpush1.msra.mxu0 0.0
    %102 = vmatprep.subr.mxu0 0.0
    %103 = vmatpush1.msra.mxu0 0.0
    %104 = vmatprep.mubr.f32.mxu0 0.0
    %105 = vmatmul.mubr.f32.gmra.mrb[0].mxu0 %v38
    %v106 = vpop.f32.mrb[0].mxu0
    %v107 = vadd.f32 %v25, %v106
    %v108 = vpop.f32.mrb[0].mxu0
    %109 = vdwg.mxu0
    %v110 = vld [vmem:[%s0] sm:$0xf]
    %s111 = scalar_lea.vmem %s0, 36
    %v112 = vld [vmem:[%s111] sm:$0xf]
    %v113 = vadd.f32 %v110, %v107
    %v114 = vxor.u32 %v113, 2147483648
    %v115 = vmul.f32 %v114, 1.442695
    %v116 = vpow.pop %v115
    %v117 = vadd.f32 %v116, 1.0
    %v118 = vrcp.pop %v117
    %v119 = vmul.f32 1.0, %v118
    %121 = vrot.lane.b32.xlu0 %v107, 112
    %v122 = vpop.permute.xlu0 %121
    %v124 = vmul.f32 %v119, %v122
    %126 = vrot.lane.b32.xlu0 %v124, 16
    %v127 = vpop.permute.xlu0 %126
    %v129 = vadd.f32 %v110, %v127
    %v130 = vtanh.pop %v129
    %v131 = vsub.f32 1.0, %v119
    %133 = vrot.lane.b32.xlu0 %v130, 120
    %v134 = vpop.permute.xlu0 %133
    %v136 = vmul.f32 %v131, %v134
    %138 = vrot.lane.b32.xlu0 %v27, 8
    %v139 = vpop.permute.xlu0 %138
    %v141 = vmul.f32 %v119, %v139
    %v142 = vadd.f32 %v136, %v141
    %v143 = vadd.f32 %v112, %v107
    %v144 = vxor.u32 %v143, 2147483648
    %v145 = vmul.f32 %v144, 1.442695
    %v146 = vpow.pop %v145
    %v147 = vadd.f32 %v146, 1.0
    %v148 = vrcp.pop %v147
    %v149 = vmul.f32 1.0, %v148
    %v150 = vmul.f32 %v149, %v122
    %152 = vrot.lane.b32.xlu0 %v150, 16
    %v153 = vpop.permute.xlu0 %152
    %v155 = vadd.f32 %v112, %v153
    %v156 = vtanh.pop %v155
    %v157 = vsub.f32 1.0, %v149
    %159 = vrot.lane.b32.xlu0 %v156, 120
    %v160 = vpop.permute.xlu0 %159
    %v162 = vmul.f32 %v157, %v160
    %163 = vrot.lane.b32.xlu0 %v29, 32
    %v164 = vpop.permute.xlu0 %163
    %v166 = vmul.f32 %v149, %v164
    %v167 = vadd.f32 %v162, %v166
    %v168 = vmax.f32 %v142, -5.0
    %v169 = vmin.f32 %v168, 5.0
    %v170 = vmax.f32 %v167, -5.0
    %v171 = vmin.f32 %v170, 5.0
    %173 = vrot.lane.b32.xlu0 %v169, 120
    %v174 = vpop.permute.xlu0 %173
    %vm176 = vcmask 60416
    %177 = vst.msk [vmem:[#allocation2] sm:$0xf] %vm176, %v174
    %179 = vrot.lane.b32.xlu0 %v171, 104
    %v180 = vpop.permute.xlu0 %179
    %s182 = scalar_lea.vmem [#allocation2], 36
    %vm183 = vcmask 126016
    %184 = vst.msk [vmem:[%s182] sm:$0xf] %vm183, %v180
    %186 = vrot.lane.b32.xlu0 %v142, 120
    %v187 = vpop.permute.xlu0 %186
    %190 = vrot.lane.b32.xlu0 %v167, 104
    %v191 = vpop.permute.xlu0 %190
    %v193 = vsel %vm34, %v187, %v191
    %v195 = vsel %vm36, %v193, 0
    %197 = vmatprep.subr.mxu0 0.0
    %198 = vmatpush1.msra.mxu0 %v18
    %199 = vmatprep.subr.mxu0 0.0
    %200 = vmatpush1.msra.mxu0 %v19
    %201 = vmatprep.subr.mxu0 0.0
    %202 = vmatpush1.msra.mxu0 0.0
    %203 = vmatprep.subr.mxu0 0.0
    %204 = vmatpush1.msra.mxu0 0.0
    %205 = vmatprep.subr.mxu0 0.0
    %206 = vmatpush1.msra.mxu0 0.0
    %207 = vmatprep.subr.mxu0 0.0
    %208 = vmatpush1.msra.mxu0 0.0
    %209 = vmatprep.subr.mxu0 0.0
    %210 = vmatpush1.msra.mxu0 0.0
    %211 = vmatprep.subr.mxu0 0.0
    %212 = vmatpush1.msra.mxu0 0.0
    %213 = vmatprep.subr.mxu0 0.0
    %214 = vmatpush1.msra.mxu0 0.0
    %215 = vmatprep.subr.mxu0 0.0
    %216 = vmatpush1.msra.mxu0 0.0
    %217 = vmatprep.subr.mxu0 0.0
    %218 = vmatpush1.msra.mxu0 0.0
    %219 = vmatprep.subr.mxu0 0.0
    %220 = vmatpush1.msra.mxu0 0.0
    %221 = vmatprep.subr.mxu0 0.0
    %222 = vmatpush1.msra.mxu0 0.0
    %223 = vmatprep.subr.mxu0 0.0
    %224 = vmatpush1.msra.mxu0 0.0
    %225 = vmatprep.subr.mxu0 0.0
    %226 = vmatpush1.msra.mxu0 0.0
    %227 = vmatprep.subr.mxu0 0.0
    %228 = vmatpush1.msra.mxu0 0.0
    %229 = vmatprep.subr.mxu0 0.0
    %230 = vmatpush1.msra.mxu0 0.0
    %231 = vmatprep.subr.mxu0 0.0
    %232 = vmatpush1.msra.mxu0 0.0
    %233 = vmatprep.subr.mxu0 0.0
    %234 = vmatpush1.msra.mxu0 0.0
    %235 = vmatprep.subr.mxu0 0.0
    %236 = vmatpush1.msra.mxu0 0.0
    %237 = vmatprep.subr.mxu0 0.0
    %238 = vmatpush1.msra.mxu0 0.0
    %239 = vmatprep.subr.mxu0 0.0
    %240 = vmatpush1.msra.mxu0 0.0
    %241 = vmatprep.subr.mxu0 0.0
    %242 = vmatpush1.msra.mxu0 0.0
    %243 = vmatprep.subr.mxu0 0.0
    %244 = vmatpush1.msra.mxu0 0.0
    %245 = vmatprep.subr.mxu0 0.0
    %246 = vmatpush1.msra.mxu0 0.0
    %247 = vmatprep.subr.mxu0 0.0
    %248 = vmatpush1.msra.mxu0 0.0
    %249 = vmatprep.subr.mxu0 0.0
    %250 = vmatpush1.msra.mxu0 0.0
    %251 = vmatprep.subr.mxu0 0.0
    %252 = vmatpush1.msra.mxu0 0.0
    %253 = vmatprep.subr.mxu0 0.0
    %254 = vmatpush1.msra.mxu0 0.0
    %255 = vmatprep.subr.mxu0 0.0
    %256 = vmatpush1.msra.mxu0 0.0
    %257 = vmatprep.subr.mxu0 0.0
    %258 = vmatpush1.msra.mxu0 0.0
    %259 = vmatprep.subr.mxu0 0.0
    %260 = vmatpush1.msra.mxu0 0.0
    %261 = vmatprep.mubr.f32.mxu0 0.0
    %262 = vmatmul.mubr.f32.gmra.mrb[0].mxu0 %v195
    %v263 = vpop.f32.mrb[0].mxu0
    %v264 = vadd.f32 %v25, %v263
    %v265 = vpop.f32.mrb[0].mxu0
    %266 = vdwg.mxu0
    %s267 = scalar_lea.vmem %s0, 4
    %v268 = vld [vmem:[%s267] sm:$0xf]
    %s269 = scalar_lea.vmem %s0, 32
    %v270 = vld [vmem:[%s269] sm:$0xf]
    %v271 = vadd.f32 %v268, %v264
    %v272 = vxor.u32 %v271, 2147483648
    %v273 = vmul.f32 %v272, 1.442695
    %v274 = vpow.pop %v273
    %v275 = vadd.f32 %v274, 1.0
    %v276 = vrcp.pop %v275
    %v277 = vmul.f32 1.0, %v276
    %279 = vrot.lane.b32.xlu0 %v264, 112
    %v280 = vpop.permute.xlu0 %279
    %v282 = vmul.f32 %v277, %v280
    %284 = vrot.lane.b32.xlu0 %v282, 16
    %v285 = vpop.permute.xlu0 %284
    %v287 = vadd.f32 %v268, %v285
    %v288 = vtanh.pop %v287
    %v289 = vsub.f32 1.0, %v277
    %291 = vrot.lane.b32.xlu0 %v288, 120
    %v292 = vpop.permute.xlu0 %291
    %v294 = vmul.f32 %v289, %v292
    %v295 = vmul.f32 %v277, %v142
    %v296 = vadd.f32 %v294, %v295
    %v297 = vadd.f32 %v270, %v264
    %v298 = vxor.u32 %v297, 2147483648
    %v299 = vmul.f32 %v298, 1.442695
    %v300 = vpow.pop %v299
    %v301 = vadd.f32 %v300, 1.0
    %v302 = vrcp.pop %v301
    %v303 = vmul.f32 1.0, %v302
    %v304 = vmul.f32 %v303, %v280
    %306 = vrot.lane.b32.xlu0 %v304, 16
    %v307 = vpop.permute.xlu0 %306
    %v309 = vadd.f32 %v270, %v307
    %v310 = vtanh.pop %v309
    %v311 = vsub.f32 1.0, %v303
    %313 = vrot.lane.b32.xlu0 %v310, 120
    %v314 = vpop.permute.xlu0 %313
    %v316 = vmul.f32 %v311, %v314
    %v317 = vmul.f32 %v303, %v167
    %v318 = vadd.f32 %v316, %v317
    %v319 = vmax.f32 %v296, -5.0
    %v320 = vmin.f32 %v319, 5.0
    %v321 = vmax.f32 %v318, -5.0
    %v322 = vmin.f32 %v321, 5.0
    %324 = vrot.lane.b32.xlu0 %v320, 120
    %v325 = vpop.permute.xlu0 %324
    %s327 = scalar_lea.vmem [#allocation2], 4
    %328 = vst.msk [vmem:[%s327] sm:$0xf] %vm176, %v325
    %330 = vrot.lane.b32.xlu0 %v322, 104
    %v331 = vpop.permute.xlu0 %330
    %s333 = scalar_lea.vmem [#allocation2], 32
    %334 = vst.msk [vmem:[%s333] sm:$0xf] %vm183, %v331
    %336 = vrot.lane.b32.xlu0 %v296, 120
    %v337 = vpop.permute.xlu0 %336
    %340 = vrot.lane.b32.xlu0 %v318, 104
    %v341 = vpop.permute.xlu0 %340
    %v343 = vsel %vm34, %v337, %v341
    %v345 = vsel %vm36, %v343, 0
    %347 = vmatprep.subr.mxu0 0.0
    %348 = vmatpush1.msra.mxu0 %v18
    %349 = vmatprep.subr.mxu0 0.0
    %350 = vmatpush1.msra.mxu0 %v19
    %351 = vmatprep.subr.mxu0 0.0
    %352 = vmatpush1.msra.mxu0 0.0
    %353 = vmatprep.subr.mxu0 0.0
    %354 = vmatpush1.msra.mxu0 0.0
    %355 = vmatprep.subr.mxu0 0.0
    %356 = vmatpush1.msra.mxu0 0.0
    %357 = vmatprep.subr.mxu0 0.0
    %358 = vmatpush1.msra.mxu0 0.0
    %359 = vmatprep.subr.mxu0 0.0
    %360 = vmatpush1.msra.mxu0 0.0
    %361 = vmatprep.subr.mxu0 0.0
    %362 = vmatpush1.msra.mxu0 0.0
    %363 = vmatprep.subr.mxu0 0.0
    %364 = vmatpush1.msra.mxu0 0.0
    %365 = vmatprep.subr.mxu0 0.0
    %366 = vmatpush1.msra.mxu0 0.0
    %367 = vmatprep.subr.mxu0 0.0
    %368 = vmatpush1.msra.mxu0 0.0
    %369 = vmatprep.subr.mxu0 0.0
    %370 = vmatpush1.msra.mxu0 0.0
    %371 = vmatprep.subr.mxu0 0.0
    %372 = vmatpush1.msra.mxu0 0.0
    %373 = vmatprep.subr.mxu0 0.0
    %374 = vmatpush1.msra.mxu0 0.0
    %375 = vmatprep.subr.mxu0 0.0
    %376 = vmatpush1.msra.mxu0 0.0
    %377 = vmatprep.subr.mxu0 0.0
    %378 = vmatpush1.msra.mxu0 0.0
    %379 = vmatprep.subr.mxu0 0.0
    %380 = vmatpush1.msra.mxu0 0.0
    %381 = vmatprep.subr.mxu0 0.0
    %382 = vmatpush1.msra.mxu0 0.0
    %383 = vmatprep.subr.mxu0 0.0
    %384 = vmatpush1.msra.mxu0 0.0
    %385 = vmatprep.subr.mxu0 0.0
    %386 = vmatpush1.msra.mxu0 0.0
    %387 = vmatprep.subr.mxu0 0.0
    %388 = vmatpush1.msra.mxu0 0.0
    %389 = vmatprep.subr.mxu0 0.0
    %390 = vmatpush1.msra.mxu0 0.0
    %391 = vmatprep.subr.mxu0 0.0
    %392 = vmatpush1.msra.mxu0 0.0
    %393 = vmatprep.subr.mxu0 0.0
    %394 = vmatpush1.msra.mxu0 0.0
    %395 = vmatprep.subr.mxu0 0.0
    %396 = vmatpush1.msra.mxu0 0.0
    %397 = vmatprep.subr.mxu0 0.0
    %398 = vmatpush1.msra.mxu0 0.0
    %399 = vmatprep.subr.mxu0 0.0
    %400 = vmatpush1.msra.mxu0 0.0
    %401 = vmatprep.subr.mxu0 0.0
    %402 = vmatpush1.msra.mxu0 0.0
    %403 = vmatprep.subr.mxu0 0.0
    %404 = vmatpush1.msra.mxu0 0.0
    %405 = vmatprep.subr.mxu0 0.0
    %406 = vmatpush1.msra.mxu0 0.0
    %407 = vmatprep.subr.mxu0 0.0
    %408 = vmatpush1.msra.mxu0 0.0
    %409 = vmatprep.subr.mxu0 0.0
    %410 = vmatpush1.msra.mxu0 0.0
    %411 = vmatprep.mubr.f32.mxu0 0.0
    %412 = vmatmul.mubr.f32.gmra.mrb[0].mxu0 %v345
    %v413 = vpop.f32.mrb[0].mxu0
    %v414 = vadd.f32 %v25, %v413
    %v415 = vpop.f32.mrb[0].mxu0
    %416 = vdwg.mxu0
    %s417 = scalar_lea.vmem %s0, 8
    %v418 = vld [vmem:[%s417] sm:$0xf]
    %s419 = scalar_lea.vmem %s0, 28
    %v420 = vld [vmem:[%s419] sm:$0xf]
    %v421 = vadd.f32 %v418, %v414
    %v422 = vxor.u32 %v421, 2147483648
    %v423 = vmul.f32 %v422, 1.442695
    %v424 = vpow.pop %v423
    %v425 = vadd.f32 %v424, 1.0
    %v426 = vrcp.pop %v425
    %v427 = vmul.f32 1.0, %v426
    %429 = vrot.lane.b32.xlu0 %v414, 112
    %v430 = vpop.permute.xlu0 %429
    %v432 = vmul.f32 %v427, %v430
    %434 = vrot.lane.b32.xlu0 %v432, 16
    %v435 = vpop.permute.xlu0 %434
    %v437 = vadd.f32 %v418, %v435
    %v438 = vtanh.pop %v437
    %v439 = vsub.f32 1.0, %v427
    %441 = vrot.lane.b32.xlu0 %v438, 120
    %v442 = vpop.permute.xlu0 %441
    %v444 = vmul.f32 %v439, %v442
    %v445 = vmul.f32 %v427, %v296
    %v446 = vadd.f32 %v444, %v445
    %v447 = vadd.f32 %v420, %v414
    %v448 = vxor.u32 %v447, 2147483648
    %v449 = vmul.f32 %v448, 1.442695
    %v450 = vpow.pop %v449
    %v451 = vadd.f32 %v450, 1.0
    %v452 = vrcp.pop %v451
    %v453 = vmul.f32 1.0, %v452
    %v454 = vmul.f32 %v453, %v430
    %456 = vrot.lane.b32.xlu0 %v454, 16
    %v457 = vpop.permute.xlu0 %456
    %v459 = vadd.f32 %v420, %v457
    %v460 = vtanh.pop %v459
    %v461 = vsub.f32 1.0, %v453
    %463 = vrot.lane.b32.xlu0 %v460, 120
    %v464 = vpop.permute.xlu0 %463
    %v466 = vmul.f32 %v461, %v464
    %v467 = vmul.f32 %v453, %v318
    %v468 = vadd.f32 %v466, %v467
    %v469 = vmax.f32 %v446, -5.0
    %v470 = vmin.f32 %v469, 5.0
    %v471 = vmax.f32 %v468, -5.0
    %v472 = vmin.f32 %v471, 5.0
    %474 = vrot.lane.b32.xlu0 %v470, 120
    %v475 = vpop.permute.xlu0 %474
    %s477 = scalar_lea.vmem [#allocation2], 8
    %478 = vst.msk [vmem:[%s477] sm:$0xf] %vm176, %v475
    %480 = vrot.lane.b32.xlu0 %v472, 104
    %v481 = vpop.permute.xlu0 %480
    %s483 = scalar_lea.vmem [#allocation2], 28
    %484 = vst.msk [vmem:[%s483] sm:$0xf] %vm183, %v481
    %486 = vrot.lane.b32.xlu0 %v446, 120
    %v487 = vpop.permute.xlu0 %486
    %490 = vrot.lane.b32.xlu0 %v468, 104
    %v491 = vpop.permute.xlu0 %490
    %v493 = vsel %vm34, %v487, %v491
    %v495 = vsel %vm36, %v493, 0
    %497 = vmatprep.subr.mxu0 0.0
    %498 = vmatpush1.msra.mxu0 %v18
    %499 = vmatprep.subr.mxu0 0.0
    %500 = vmatpush1.msra.mxu0 %v19
    %501 = vmatprep.subr.mxu0 0.0
    %502 = vmatpush1.msra.mxu0 0.0
    %503 = vmatprep.subr.mxu0 0.0
    %504 = vmatpush1.msra.mxu0 0.0
    %505 = vmatprep.subr.mxu0 0.0
    %506 = vmatpush1.msra.mxu0 0.0
    %507 = vmatprep.subr.mxu0 0.0
    %508 = vmatpush1.msra.mxu0 0.0
    %509 = vmatprep.subr.mxu0 0.0
    %510 = vmatpush1.msra.mxu0 0.0
    %511 = vmatprep.subr.mxu0 0.0
    %512 = vmatpush1.msra.mxu0 0.0
    %513 = vmatprep.subr.mxu0 0.0
    %514 = vmatpush1.msra.mxu0 0.0
    %515 = vmatprep.subr.mxu0 0.0
    %516 = vmatpush1.msra.mxu0 0.0
    %517 = vmatprep.subr.mxu0 0.0
    %518 = vmatpush1.msra.mxu0 0.0
    %519 = vmatprep.subr.mxu0 0.0
    %520 = vmatpush1.msra.mxu0 0.0
    %521 = vmatprep.subr.mxu0 0.0
    %522 = vmatpush1.msra.mxu0 0.0
    %523 = vmatprep.subr.mxu0 0.0
    %524 = vmatpush1.msra.mxu0 0.0
    %525 = vmatprep.subr.mxu0 0.0
    %526 = vmatpush1.msra.mxu0 0.0
    %527 = vmatprep.subr.mxu0 0.0
    %528 = vmatpush1.msra.mxu0 0.0
    %529 = vmatprep.subr.mxu0 0.0
    %530 = vmatpush1.msra.mxu0 0.0
    %531 = vmatprep.subr.mxu0 0.0
    %532 = vmatpush1.msra.mxu0 0.0
    %533 = vmatprep.subr.mxu0 0.0
    %534 = vmatpush1.msra.mxu0 0.0
    %535 = vmatprep.subr.mxu0 0.0
    %536 = vmatpush1.msra.mxu0 0.0
    %537 = vmatprep.subr.mxu0 0.0
    %538 = vmatpush1.msra.mxu0 0.0
    %539 = vmatprep.subr.mxu0 0.0
    %540 = vmatpush1.msra.mxu0 0.0
    %541 = vmatprep.subr.mxu0 0.0
    %542 = vmatpush1.msra.mxu0 0.0
    %543 = vmatprep.subr.mxu0 0.0
    %544 = vmatpush1.msra.mxu0 0.0
    %545 = vmatprep.subr.mxu0 0.0
    %546 = vmatpush1.msra.mxu0 0.0
    %547 = vmatprep.subr.mxu0 0.0
    %548 = vmatpush1.msra.mxu0 0.0
    %549 = vmatprep.subr.mxu0 0.0
    %550 = vmatpush1.msra.mxu0 0.0
    %551 = vmatprep.subr.mxu0 0.0
    %552 = vmatpush1.msra.mxu0 0.0
    %553 = vmatprep.subr.mxu0 0.0
    %554 = vmatpush1.msra.mxu0 0.0
    %555 = vmatprep.subr.mxu0 0.0
    %556 = vmatpush1.msra.mxu0 0.0
    %557 = vmatprep.subr.mxu0 0.0
    %558 = vmatpush1.msra.mxu0 0.0
    %559 = vmatprep.subr.mxu0 0.0
    %560 = vmatpush1.msra.mxu0 0.0
    %561 = vmatprep.mubr.f32.mxu0 0.0
    %562 = vmatmul.mubr.f32.gmra.mrb[0].mxu0 %v495
    %v563 = vpop.f32.mrb[0].mxu0
    %v564 = vadd.f32 %v25, %v563
    %v565 = vpop.f32.mrb[0].mxu0
    %566 = vdwg.mxu0
    %s567 = scalar_lea.vmem %s0, 12
    %v568 = vld [vmem:[%s567] sm:$0xf]
    %s569 = scalar_lea.vmem %s0, 24
    %v570 = vld [vmem:[%s569] sm:$0xf]
    %v571 = vadd.f32 %v568, %v564
    %v572 = vxor.u32 %v571, 2147483648
    %v573 = vmul.f32 %v572, 1.442695
    %v574 = vpow.pop %v573
    %v575 = vadd.f32 %v574, 1.0
    %v576 = vrcp.pop %v575
    %v577 = vmul.f32 1.0, %v576
    %579 = vrot.lane.b32.xlu0 %v564, 112
    %v580 = vpop.permute.xlu0 %579
    %v582 = vmul.f32 %v577, %v580
    %584 = vrot.lane.b32.xlu0 %v582, 16
    %v585 = vpop.permute.xlu0 %584
    %v587 = vadd.f32 %v568, %v585
    %v588 = vtanh.pop %v587
    %v589 = vsub.f32 1.0, %v577
    %591 = vrot.lane.b32.xlu0 %v588, 120
    %v592 = vpop.permute.xlu0 %591
    %v594 = vmul.f32 %v589, %v592
    %v595 = vmul.f32 %v577, %v446
    %v596 = vadd.f32 %v594, %v595
    %v597 = vadd.f32 %v570, %v564
    %v598 = vxor.u32 %v597, 2147483648
    %v599 = vmul.f32 %v598, 1.442695
    %v600 = vpow.pop %v599
    %v601 = vadd.f32 %v600, 1.0
    %v602 = vrcp.pop %v601
    %v603 = vmul.f32 1.0, %v602
    %v604 = vmul.f32 %v603, %v580
    %606 = vrot.lane.b32.xlu0 %v604, 16
    %v607 = vpop.permute.xlu0 %606
    %v609 = vadd.f32 %v570, %v607
    %v610 = vtanh.pop %v609
    %v611 = vsub.f32 1.0, %v603
    %613 = vrot.lane.b32.xlu0 %v610, 120
    %v614 = vpop.permute.xlu0 %613
    %v616 = vmul.f32 %v611, %v614
    %v617 = vmul.f32 %v603, %v468
    %v618 = vadd.f32 %v616, %v617
    %v619 = vmax.f32 %v596, -5.0
    %v620 = vmin.f32 %v619, 5.0
    %v621 = vmax.f32 %v618, -5.0
    %v622 = vmin.f32 %v621, 5.0
    %624 = vrot.lane.b32.xlu0 %v620, 120
    %v625 = vpop.permute.xlu0 %624
    %s627 = scalar_lea.vmem [#allocation2], 12
    %628 = vst.msk [vmem:[%s627] sm:$0xf] %vm176, %v625
    %630 = vrot.lane.b32.xlu0 %v622, 104
    %v631 = vpop.permute.xlu0 %630
    %s633 = scalar_lea.vmem [#allocation2], 24
    %634 = vst.msk [vmem:[%s633] sm:$0xf] %vm183, %v631
    %636 = vrot.lane.b32.xlu0 %v596, 120
    %v637 = vpop.permute.xlu0 %636
    %640 = vrot.lane.b32.xlu0 %v618, 104
    %v641 = vpop.permute.xlu0 %640
    %v643 = vsel %vm34, %v637, %v641
    %v645 = vsel %vm36, %v643, 0
    %647 = vmatprep.subr.mxu0 0.0
    %648 = vmatpush1.msra.mxu0 %v18
    %649 = vmatprep.subr.mxu0 0.0
    %650 = vmatpush1.msra.mxu0 %v19
    %651 = vmatprep.subr.mxu0 0.0
    %652 = vmatpush1.msra.mxu0 0.0
    %653 = vmatprep.subr.mxu0 0.0
    %654 = vmatpush1.msra.mxu0 0.0
    %655 = vmatprep.subr.mxu0 0.0
    %656 = vmatpush1.msra.mxu0 0.0
    %657 = vmatprep.subr.mxu0 0.0
    %658 = vmatpush1.msra.mxu0 0.0
    %659 = vmatprep.subr.mxu0 0.0
    %660 = vmatpush1.msra.mxu0 0.0
    %661 = vmatprep.subr.mxu0 0.0
    %662 = vmatpush1.msra.mxu0 0.0
    %663 = vmatprep.subr.mxu0 0.0
    %664 = vmatpush1.msra.mxu0 0.0
    %665 = vmatprep.subr.mxu0 0.0
    %666 = vmatpush1.msra.mxu0 0.0
    %667 = vmatprep.subr.mxu0 0.0
    %668 = vmatpush1.msra.mxu0 0.0
    %669 = vmatprep.subr.mxu0 0.0
    %670 = vmatpush1.msra.mxu0 0.0
    %671 = vmatprep.subr.mxu0 0.0
    %672 = vmatpush1.msra.mxu0 0.0
    %673 = vmatprep.subr.mxu0 0.0
    %674 = vmatpush1.msra.mxu0 0.0
    %675 = vmatprep.subr.mxu0 0.0
    %676 = vmatpush1.msra.mxu0 0.0
    %677 = vmatprep.subr.mxu0 0.0
    %678 = vmatpush1.msra.mxu0 0.0
    %679 = vmatprep.subr.mxu0 0.0
    %680 = vmatpush1.msra.mxu0 0.0
    %681 = vmatprep.subr.mxu0 0.0
    %682 = vmatpush1.msra.mxu0 0.0
    %683 = vmatprep.subr.mxu0 0.0
    %684 = vmatpush1.msra.mxu0 0.0
    %685 = vmatprep.subr.mxu0 0.0
    %686 = vmatpush1.msra.mxu0 0.0
    %687 = vmatprep.subr.mxu0 0.0
    %688 = vmatpush1.msra.mxu0 0.0
    %689 = vmatprep.subr.mxu0 0.0
    %690 = vmatpush1.msra.mxu0 0.0
    %691 = vmatprep.subr.mxu0 0.0
    %692 = vmatpush1.msra.mxu0 0.0
    %693 = vmatprep.subr.mxu0 0.0
    %694 = vmatpush1.msra.mxu0 0.0
    %695 = vmatprep.subr.mxu0 0.0
    %696 = vmatpush1.msra.mxu0 0.0
    %697 = vmatprep.subr.mxu0 0.0
    %698 = vmatpush1.msra.mxu0 0.0
    %699 = vmatprep.subr.mxu0 0.0
    %700 = vmatpush1.msra.mxu0 0.0
    %701 = vmatprep.subr.mxu0 0.0
    %702 = vmatpush1.msra.mxu0 0.0
    %703 = vmatprep.subr.mxu0 0.0
    %704 = vmatpush1.msra.mxu0 0.0
    %705 = vmatprep.subr.mxu0 0.0
    %706 = vmatpush1.msra.mxu0 0.0
    %707 = vmatprep.subr.mxu0 0.0
    %708 = vmatpush1.msra.mxu0 0.0
    %709 = vmatprep.subr.mxu0 0.0
    %710 = vmatpush1.msra.mxu0 0.0
    %711 = vmatprep.mubr.f32.mxu0 0.0
    %712 = vmatmul.mubr.f32.gmra.mrb[0].mxu0 %v645
    %v713 = vpop.f32.mrb[0].mxu0
    %v714 = vadd.f32 %v25, %v713
    %v715 = vpop.f32.mrb[0].mxu0
    %716 = vdwg.mxu0
    %s717 = scalar_lea.vmem %s0, 16
    %v718 = vld [vmem:[%s717] sm:$0xf]
    %s719 = scalar_lea.vmem %s0, 20
    %v720 = vld [vmem:[%s719] sm:$0xf]
    %v721 = vadd.f32 %v718, %v714
    %v722 = vxor.u32 %v721, 2147483648
    %v723 = vmul.f32 %v722, 1.442695
    %v724 = vpow.pop %v723
    %v725 = vadd.f32 %v724, 1.0
    %v726 = vrcp.pop %v725
    %v727 = vmul.f32 1.0, %v726
    %729 = vrot.lane.b32.xlu0 %v714, 112
    %v730 = vpop.permute.xlu0 %729
    %v732 = vmul.f32 %v727, %v730
    %734 = vrot.lane.b32.xlu0 %v732, 16
    %v735 = vpop.permute.xlu0 %734
    %v737 = vadd.f32 %v718, %v735
    %v738 = vtanh.pop %v737
    %v739 = vsub.f32 1.0, %v727
    %741 = vrot.lane.b32.xlu0 %v738, 120
    %v742 = vpop.permute.xlu0 %741
    %v744 = vmul.f32 %v739, %v742
    %v745 = vmul.f32 %v727, %v596
    %v746 = vadd.f32 %v744, %v745
    %v747 = vadd.f32 %v720, %v714
    %v748 = vxor.u32 %v747, 2147483648
    %v749 = vmul.f32 %v748, 1.442695
    %v750 = vpow.pop %v749
    %v751 = vadd.f32 %v750, 1.0
    %v752 = vrcp.pop %v751
    %v753 = vmul.f32 1.0, %v752
    %v754 = vmul.f32 %v753, %v730
    %756 = vrot.lane.b32.xlu0 %v754, 16
    %v757 = vpop.permute.xlu0 %756
    %v759 = vadd.f32 %v720, %v757
    %v760 = vtanh.pop %v759
    %v761 = vsub.f32 1.0, %v753
    %763 = vrot.lane.b32.xlu0 %v760, 120
    %v764 = vpop.permute.xlu0 %763
    %v766 = vmul.f32 %v761, %v764
    %v767 = vmul.f32 %v753, %v618
    %v768 = vadd.f32 %v766, %v767
    %v769 = vmax.f32 %v746, -5.0
    %v770 = vmin.f32 %v769, 5.0
    %v771 = vmax.f32 %v768, -5.0
    %v772 = vmin.f32 %v771, 5.0
    %774 = vrot.lane.b32.xlu0 %v770, 120
    %v775 = vpop.permute.xlu0 %774
    %s777 = scalar_lea.vmem [#allocation2], 16
    %778 = vst.msk [vmem:[%s777] sm:$0xf] %vm176, %v775
    %780 = vrot.lane.b32.xlu0 %v772, 104
    %v781 = vpop.permute.xlu0 %780
    %s783 = scalar_lea.vmem [#allocation2], 20
    %784 = vst.msk [vmem:[%s783] sm:$0xf] %vm183, %v781
    %786 = vrot.lane.b32.xlu0 %v746, 120
    %v787 = vpop.permute.xlu0 %786
    %790 = vrot.lane.b32.xlu0 %v768, 104
    %v791 = vpop.permute.xlu0 %790
    %v793 = vsel %vm34, %v787, %v791
    %v795 = vsel %vm36, %v793, 0
    %797 = vmatprep.subr.mxu0 0.0
    %798 = vmatpush1.msra.mxu0 %v18
    %799 = vmatprep.subr.mxu0 0.0
    %800 = vmatpush1.msra.mxu0 %v19
    %801 = vmatprep.subr.mxu0 0.0
    %802 = vmatpush1.msra.mxu0 0.0
    %803 = vmatprep.subr.mxu0 0.0
    %804 = vmatpush1.msra.mxu0 0.0
    %805 = vmatprep.subr.mxu0 0.0
    %806 = vmatpush1.msra.mxu0 0.0
    %807 = vmatprep.subr.mxu0 0.0
    %808 = vmatpush1.msra.mxu0 0.0
    %809 = vmatprep.subr.mxu0 0.0
    %810 = vmatpush1.msra.mxu0 0.0
    %811 = vmatprep.subr.mxu0 0.0
    %812 = vmatpush1.msra.mxu0 0.0
    %813 = vmatprep.subr.mxu0 0.0
    %814 = vmatpush1.msra.mxu0 0.0
    %815 = vmatprep.subr.mxu0 0.0
    %816 = vmatpush1.msra.mxu0 0.0
    %817 = vmatprep.subr.mxu0 0.0
    %818 = vmatpush1.msra.mxu0 0.0
    %819 = vmatprep.subr.mxu0 0.0
    %820 = vmatpush1.msra.mxu0 0.0
    %821 = vmatprep.subr.mxu0 0.0
    %822 = vmatpush1.msra.mxu0 0.0
    %823 = vmatprep.subr.mxu0 0.0
    %824 = vmatpush1.msra.mxu0 0.0
    %825 = vmatprep.subr.mxu0 0.0
    %826 = vmatpush1.msra.mxu0 0.0
    %827 = vmatprep.subr.mxu0 0.0
    %828 = vmatpush1.msra.mxu0 0.0
    %829 = vmatprep.subr.mxu0 0.0
    %830 = vmatpush1.msra.mxu0 0.0
    %831 = vmatprep.subr.mxu0 0.0
    %832 = vmatpush1.msra.mxu0 0.0
    %833 = vmatprep.subr.mxu0 0.0
    %834 = vmatpush1.msra.mxu0 0.0
    %835 = vmatprep.subr.mxu0 0.0
    %836 = vmatpush1.msra.mxu0 0.0
    %837 = vmatprep.subr.mxu0 0.0
    %838 = vmatpush1.msra.mxu0 0.0
    %839 = vmatprep.subr.mxu0 0.0
    %840 = vmatpush1.msra.mxu0 0.0
    %841 = vmatprep.subr.mxu0 0.0
    %842 = vmatpush1.msra.mxu0 0.0
    %843 = vmatprep.subr.mxu0 0.0
    %844 = vmatpush1.msra.mxu0 0.0
    %845 = vmatprep.subr.mxu0 0.0
    %846 = vmatpush1.msra.mxu0 0.0
    %847 = vmatprep.subr.mxu0 0.0
    %848 = vmatpush1.msra.mxu0 0.0
    %849 = vmatprep.subr.mxu0 0.0
    %850 = vmatpush1.msra.mxu0 0.0
    %851 = vmatprep.subr.mxu0 0.0
    %852 = vmatpush1.msra.mxu0 0.0
    %853 = vmatprep.subr.mxu0 0.0
    %854 = vmatpush1.msra.mxu0 0.0
    %855 = vmatprep.subr.mxu0 0.0
    %856 = vmatpush1.msra.mxu0 0.0
    %857 = vmatprep.subr.mxu0 0.0
    %858 = vmatpush1.msra.mxu0 0.0
    %859 = vmatprep.subr.mxu0 0.0
    %860 = vmatpush1.msra.mxu0 0.0
    %861 = vmatprep.mubr.f32.mxu0 0.0
    %862 = vmatmul.mubr.f32.gmra.mrb[0].mxu0 %v795
    %v863 = vpop.f32.mrb[0].mxu0
    %v864 = vadd.f32 %v25, %v863
    %v865 = vpop.f32.mrb[0].mxu0
    %866 = vdwg.mxu0
    %v867 = vld [vmem:[%s719] sm:$0xf]
    %v868 = vld [vmem:[%s717] sm:$0xf]
    %v869 = vadd.f32 %v867, %v864
    %v870 = vxor.u32 %v869, 2147483648
    %v871 = vmul.f32 %v870, 1.442695
    %v872 = vpow.pop %v871
    %v873 = vadd.f32 %v872, 1.0
    %v874 = vrcp.pop %v873
    %v875 = vmul.f32 1.0, %v874
    %877 = vrot.lane.b32.xlu0 %v864, 112
    %v878 = vpop.permute.xlu0 %877
    %v880 = vmul.f32 %v875, %v878
    %882 = vrot.lane.b32.xlu0 %v880, 16
    %v883 = vpop.permute.xlu0 %882
    %v885 = vadd.f32 %v867, %v883
    %v886 = vtanh.pop %v885
    %v887 = vsub.f32 1.0, %v875
    %889 = vrot.lane.b32.xlu0 %v886, 120
    %v890 = vpop.permute.xlu0 %889
    %v892 = vmul.f32 %v887, %v890
    %v893 = vmul.f32 %v875, %v746
    %v894 = vadd.f32 %v892, %v893
    %v895 = vadd.f32 %v868, %v864
    %v896 = vxor.u32 %v895, 2147483648
    %v897 = vmul.f32 %v896, 1.442695
    %v898 = vpow.pop %v897
    %v899 = vadd.f32 %v898, 1.0
    %v900 = vrcp.pop %v899
    %v901 = vmul.f32 1.0, %v900
    %v902 = vmul.f32 %v901, %v878
    %904 = vrot.lane.b32.xlu0 %v902, 16
    %v905 = vpop.permute.xlu0 %904
    %v907 = vadd.f32 %v868, %v905
    %v908 = vtanh.pop %v907
    %v909 = vsub.f32 1.0, %v901
    %911 = vrot.lane.b32.xlu0 %v908, 120
    %v912 = vpop.permute.xlu0 %911
    %v914 = vmul.f32 %v909, %v912
    %v915 = vmul.f32 %v901, %v768
    %v916 = vadd.f32 %v914, %v915
    %v917 = vmax.f32 %v894, -5.0
    %v918 = vmin.f32 %v917, 5.0
    %v919 = vmax.f32 %v916, -5.0
    %v920 = vmin.f32 %v919, 5.0
    %922 = vrot.lane.b32.xlu0 %v918, 120
    %v923 = vpop.permute.xlu0 %922
    %925 = vst.msk [vmem:[%s783] sm:$0xf] %vm176, %v923
    %927 = vrot.lane.b32.xlu0 %v920, 104
    %v928 = vpop.permute.xlu0 %927
    %930 = vst.msk [vmem:[%s777] sm:$0xf] %vm183, %v928
    %932 = vrot.lane.b32.xlu0 %v894, 120
    %v933 = vpop.permute.xlu0 %932
    %936 = vrot.lane.b32.xlu0 %v916, 104
    %v937 = vpop.permute.xlu0 %936
    %v939 = vsel %vm34, %v933, %v937
    %v941 = vsel %vm36, %v939, 0
    %943 = vmatprep.subr.mxu0 0.0
    %944 = vmatpush1.msra.mxu0 %v18
    %945 = vmatprep.subr.mxu0 0.0
    %946 = vmatpush1.msra.mxu0 %v19
    %947 = vmatprep.subr.mxu0 0.0
    %948 = vmatpush1.msra.mxu0 0.0
    %949 = vmatprep.subr.mxu0 0.0
    %950 = vmatpush1.msra.mxu0 0.0
    %951 = vmatprep.subr.mxu0 0.0
    %952 = vmatpush1.msra.mxu0 0.0
    %953 = vmatprep.subr.mxu0 0.0
    %954 = vmatpush1.msra.mxu0 0.0
    %955 = vmatprep.subr.mxu0 0.0
    %956 = vmatpush1.msra.mxu0 0.0
    %957 = vmatprep.subr.mxu0 0.0
    %958 = vmatpush1.msra.mxu0 0.0
    %959 = vmatprep.subr.mxu0 0.0
    %960 = vmatpush1.msra.mxu0 0.0
    %961 = vmatprep.subr.mxu0 0.0
    %962 = vmatpush1.msra.mxu0 0.0
    %963 = vmatprep.subr.mxu0 0.0
    %964 = vmatpush1.msra.mxu0 0.0
    %965 = vmatprep.subr.mxu0 0.0
    %966 = vmatpush1.msra.mxu0 0.0
    %967 = vmatprep.subr.mxu0 0.0
    %968 = vmatpush1.msra.mxu0 0.0
    %969 = vmatprep.subr.mxu0 0.0
    %970 = vmatpush1.msra.mxu0 0.0
    %971 = vmatprep.subr.mxu0 0.0
    %972 = vmatpush1.msra.mxu0 0.0
    %973 = vmatprep.subr.mxu0 0.0
    %974 = vmatpush1.msra.mxu0 0.0
    %975 = vmatprep.subr.mxu0 0.0
    %976 = vmatpush1.msra.mxu0 0.0
    %977 = vmatprep.subr.mxu0 0.0
    %978 = vmatpush1.msra.mxu0 0.0
    %979 = vmatprep.subr.mxu0 0.0
    %980 = vmatpush1.msra.mxu0 0.0
    %981 = vmatprep.subr.mxu0 0.0
    %982 = vmatpush1.msra.mxu0 0.0
    %983 = vmatprep.subr.mxu0 0.0
    %984 = vmatpush1.msra.mxu0 0.0
    %985 = vmatprep.subr.mxu0 0.0
    %986 = vmatpush1.msra.mxu0 0.0
    %987 = vmatprep.subr.mxu0 0.0
    %988 = vmatpush1.msra.mxu0 0.0
    %989 = vmatprep.subr.mxu0 0.0
    %990 = vmatpush1.msra.mxu0 0.0
    %991 = vmatprep.subr.mxu0 0.0
    %992 = vmatpush1.msra.mxu0 0.0
    %993 = vmatprep.subr.mxu0 0.0
    %994 = vmatpush1.msra.mxu0 0.0
    %995 = vmatprep.subr.mxu0 0.0
    %996 = vmatpush1.msra.mxu0 0.0
    %997 = vmatprep.subr.mxu0 0.0
    %998 = vmatpush1.msra.mxu0 0.0
    %999 = vmatprep.subr.mxu0 0.0
    %1000 = vmatpush1.msra.mxu0 0.0
    %1001 = vmatprep.subr.mxu0 0.0
    %1002 = vmatpush1.msra.mxu0 0.0
    %1003 = vmatprep.subr.mxu0 0.0
    %1004 = vmatpush1.msra.mxu0 0.0
    %1005 = vmatprep.subr.mxu0 0.0
    %1006 = vmatpush1.msra.mxu0 0.0
    %1007 = vmatprep.mubr.f32.mxu0 0.0
    %1008 = vmatmul.mubr.f32.gmra.mrb[0].mxu0 %v941
    %v1009 = vpop.f32.mrb[0].mxu0
    %v1010 = vadd.f32 %v25, %v1009
    %v1011 = vpop.f32.mrb[0].mxu0
    %1012 = vdwg.mxu0
    %v1013 = vld [vmem:[%s569] sm:$0xf]
    %v1014 = vld [vmem:[%s567] sm:$0xf]
    %v1015 = vadd.f32 %v1013, %v1010
    %v1016 = vxor.u32 %v1015, 2147483648
    %v1017 = vmul.f32 %v1016, 1.442695
    %v1018 = vpow.pop %v1017
    %v1019 = vadd.f32 %v1018, 1.0
    %v1020 = vrcp.pop %v1019
    %v1021 = vmul.f32 1.0, %v1020
    %1023 = vrot.lane.b32.xlu0 %v1010, 112
    %v1024 = vpop.permute.xlu0 %1023
    %v1026 = vmul.f32 %v1021, %v1024
    %1028 = vrot.lane.b32.xlu0 %v1026, 16
    %v1029 = vpop.permute.xlu0 %1028
    %v1031 = vadd.f32 %v1013, %v1029
    %v1032 = vtanh.pop %v1031
    %v1033 = vsub.f32 1.0, %v1021
    %1035 = vrot.lane.b32.xlu0 %v1032, 120
    %v1036 = vpop.permute.xlu0 %1035
    %v1038 = vmul.f32 %v1033, %v1036
    %v1039 = vmul.f32 %v1021, %v894
    %v1040 = vadd.f32 %v1038, %v1039
    %v1041 = vadd.f32 %v1014, %v1010
    %v1042 = vxor.u32 %v1041, 2147483648
    %v1043 = vmul.f32 %v1042, 1.442695
    %v1044 = vpow.pop %v1043
    %v1045 = vadd.f32 %v1044, 1.0
    %v1046 = vrcp.pop %v1045
    %v1047 = vmul.f32 1.0, %v1046
    %v1048 = vmul.f32 %v1047, %v1024
    %1050 = vrot.lane.b32.xlu0 %v1048, 16
    %v1051 = vpop.permute.xlu0 %1050
    %v1053 = vadd.f32 %v1014, %v1051
    %v1054 = vtanh.pop %v1053
    %v1055 = vsub.f32 1.0, %v1047
    %1057 = vrot.lane.b32.xlu0 %v1054, 120
    %v1058 = vpop.permute.xlu0 %1057
    %v1060 = vmul.f32 %v1055, %v1058
    %v1061 = vmul.f32 %v1047, %v916
    %v1062 = vadd.f32 %v1060, %v1061
    %v1063 = vmax.f32 %v1040, -5.0
    %v1064 = vmin.f32 %v1063, 5.0
    %v1065 = vmax.f32 %v1062, -5.0
    %v1066 = vmin.f32 %v1065, 5.0
    %1068 = vrot.lane.b32.xlu0 %v1064, 120
    %v1069 = vpop.permute.xlu0 %1068
    %1071 = vst.msk [vmem:[%s633] sm:$0xf] %vm176, %v1069
    %1073 = vrot.lane.b32.xlu0 %v1066, 104
    %v1074 = vpop.permute.xlu0 %1073
    %1076 = vst.msk [vmem:[%s627] sm:$0xf] %vm183, %v1074
    %1078 = vrot.lane.b32.xlu0 %v1040, 120
    %v1079 = vpop.permute.xlu0 %1078
    %1082 = vrot.lane.b32.xlu0 %v1062, 104
    %v1083 = vpop.permute.xlu0 %1082
    %v1085 = vsel %vm34, %v1079, %v1083
    %v1087 = vsel %vm36, %v1085, 0
    %1089 = vmatprep.subr.mxu0 0.0
    %1090 = vmatpush1.msra.mxu0 %v18
    %1091 = vmatprep.subr.mxu0 0.0
    %1092 = vmatpush1.msra.mxu0 %v19
    %1093 = vmatprep.subr.mxu0 0.0
    %1094 = vmatpush1.msra.mxu0 0.0
    %1095 = vmatprep.subr.mxu0 0.0
    %1096 = vmatpush1.msra.mxu0 0.0
    %1097 = vmatprep.subr.mxu0 0.0
    %1098 = vmatpush1.msra.mxu0 0.0
    %1099 = vmatprep.subr.mxu0 0.0
    %1100 = vmatpush1.msra.mxu0 0.0
    %1101 = vmatprep.subr.mxu0 0.0
    %1102 = vmatpush1.msra.mxu0 0.0
    %1103 = vmatprep.subr.mxu0 0.0
    %1104 = vmatpush1.msra.mxu0 0.0
    %1105 = vmatprep.subr.mxu0 0.0
    %1106 = vmatpush1.msra.mxu0 0.0
    %1107 = vmatprep.subr.mxu0 0.0
    %1108 = vmatpush1.msra.mxu0 0.0
    %1109 = vmatprep.subr.mxu0 0.0
    %1110 = vmatpush1.msra.mxu0 0.0
    %1111 = vmatprep.subr.mxu0 0.0
    %1112 = vmatpush1.msra.mxu0 0.0
    %1113 = vmatprep.subr.mxu0 0.0
    %1114 = vmatpush1.msra.mxu0 0.0
    %1115 = vmatprep.subr.mxu0 0.0
    %1116 = vmatpush1.msra.mxu0 0.0
    %1117 = vmatprep.subr.mxu0 0.0
    %1118 = vmatpush1.msra.mxu0 0.0
    %1119 = vmatprep.subr.mxu0 0.0
    %1120 = vmatpush1.msra.mxu0 0.0
    %1121 = vmatprep.subr.mxu0 0.0
    %1122 = vmatpush1.msra.mxu0 0.0
    %1123 = vmatprep.subr.mxu0 0.0
    %1124 = vmatpush1.msra.mxu0 0.0
    %1125 = vmatprep.subr.mxu0 0.0
    %1126 = vmatpush1.msra.mxu0 0.0
    %1127 = vmatprep.subr.mxu0 0.0
    %1128 = vmatpush1.msra.mxu0 0.0
    %1129 = vmatprep.subr.mxu0 0.0
    %1130 = vmatpush1.msra.mxu0 0.0
    %1131 = vmatprep.subr.mxu0 0.0
    %1132 = vmatpush1.msra.mxu0 0.0
    %1133 = vmatprep.subr.mxu0 0.0
    %1134 = vmatpush1.msra.mxu0 0.0
    %1135 = vmatprep.subr.mxu0 0.0
    %1136 = vmatpush1.msra.mxu0 0.0
    %1137 = vmatprep.subr.mxu0 0.0
    %1138 = vmatpush1.msra.mxu0 0.0
    %1139 = vmatprep.subr.mxu0 0.0
    %1140 = vmatpush1.msra.mxu0 0.0
    %1141 = vmatprep.subr.mxu0 0.0
    %1142 = vmatpush1.msra.mxu0 0.0
    %1143 = vmatprep.subr.mxu0 0.0
    %1144 = vmatpush1.msra.mxu0 0.0
    %1145 = vmatprep.subr.mxu0 0.0
    %1146 = vmatpush1.msra.mxu0 0.0
    %1147 = vmatprep.subr.mxu0 0.0
    %1148 = vmatpush1.msra.mxu0 0.0
    %1149 = vmatprep.subr.mxu0 0.0
    %1150 = vmatpush1.msra.mxu0 0.0
    %1151 = vmatprep.subr.mxu0 0.0
    %1152 = vmatpush1.msra.mxu0 0.0
    %1153 = vmatprep.mubr.f32.mxu0 0.0
    %1154 = vmatmul.mubr.f32.gmra.mrb[0].mxu0 %v1087
    %v1155 = vpop.f32.mrb[0].mxu0
    %v1156 = vadd.f32 %v25, %v1155
    %v1157 = vpop.f32.mrb[0].mxu0
    %1158 = vdwg.mxu0
    %v1159 = vld [vmem:[%s419] sm:$0xf]
    %v1160 = vld [vmem:[%s417] sm:$0xf]
    %v1161 = vadd.f32 %v1159, %v1156
    %v1162 = vxor.u32 %v1161, 2147483648
    %v1163 = vmul.f32 %v1162, 1.442695
    %v1164 = vpow.pop %v1163
    %v1165 = vadd.f32 %v1164, 1.0
    %v1166 = vrcp.pop %v1165
    %v1167 = vmul.f32 1.0, %v1166
    %1169 = vrot.lane.b32.xlu0 %v1156, 112
    %v1170 = vpop.permute.xlu0 %1169
    %v1172 = vmul.f32 %v1167, %v1170
    %1174 = vrot.lane.b32.xlu0 %v1172, 16
    %v1175 = vpop.permute.xlu0 %1174
    %v1177 = vadd.f32 %v1159, %v1175
    %v1178 = vtanh.pop %v1177
    %v1179 = vsub.f32 1.0, %v1167
    %1181 = vrot.lane.b32.xlu0 %v1178, 120
    %v1182 = vpop.permute.xlu0 %1181
    %v1184 = vmul.f32 %v1179, %v1182
    %v1185 = vmul.f32 %v1167, %v1040
    %v1186 = vadd.f32 %v1184, %v1185
    %v1187 = vadd.f32 %v1160, %v1156
    %v1188 = vxor.u32 %v1187, 2147483648
    %v1189 = vmul.f32 %v1188, 1.442695
    %v1190 = vpow.pop %v1189
    %v1191 = vadd.f32 %v1190, 1.0
    %v1192 = vrcp.pop %v1191
    %v1193 = vmul.f32 1.0, %v1192
    %v1194 = vmul.f32 %v1193, %v1170
    %1196 = vrot.lane.b32.xlu0 %v1194, 16
    %v1197 = vpop.permute.xlu0 %1196
    %v1199 = vadd.f32 %v1160, %v1197
    %v1200 = vtanh.pop %v1199
    %v1201 = vsub.f32 1.0, %v1193
    %1203 = vrot.lane.b32.xlu0 %v1200, 120
    %v1204 = vpop.permute.xlu0 %1203
    %v1206 = vmul.f32 %v1201, %v1204
    %v1207 = vmul.f32 %v1193, %v1062
    %v1208 = vadd.f32 %v1206, %v1207
    %v1209 = vmax.f32 %v1186, -5.0
    %v1210 = vmin.f32 %v1209, 5.0
    %v1211 = vmax.f32 %v1208, -5.0
    %v1212 = vmin.f32 %v1211, 5.0
    %1214 = vrot.lane.b32.xlu0 %v1210, 120
    %v1215 = vpop.permute.xlu0 %1214
    %1217 = vst.msk [vmem:[%s483] sm:$0xf] %vm176, %v1215
    %1219 = vrot.lane.b32.xlu0 %v1212, 104
    %v1220 = vpop.permute.xlu0 %1219
    %1222 = vst.msk [vmem:[%s477] sm:$0xf] %vm183, %v1220
    %1224 = vrot.lane.b32.xlu0 %v1186, 120
    %v1225 = vpop.permute.xlu0 %1224
    %1228 = vrot.lane.b32.xlu0 %v1208, 104
    %v1229 = vpop.permute.xlu0 %1228
    %v1231 = vsel %vm34, %v1225, %v1229
    %v1233 = vsel %vm36, %v1231, 0
    %1235 = vmatprep.subr.mxu0 0.0
    %1236 = vmatpush1.msra.mxu0 %v18
    %1237 = vmatprep.subr.mxu0 0.0
    %1238 = vmatpush1.msra.mxu0 %v19
    %1239 = vmatprep.subr.mxu0 0.0
    %1240 = vmatpush1.msra.mxu0 0.0
    %1241 = vmatprep.subr.mxu0 0.0
    %1242 = vmatpush1.msra.mxu0 0.0
    %1243 = vmatprep.subr.mxu0 0.0
    %1244 = vmatpush1.msra.mxu0 0.0
    %1245 = vmatprep.subr.mxu0 0.0
    %1246 = vmatpush1.msra.mxu0 0.0
    %1247 = vmatprep.subr.mxu0 0.0
    %1248 = vmatpush1.msra.mxu0 0.0
    %1249 = vmatprep.subr.mxu0 0.0
    %1250 = vmatpush1.msra.mxu0 0.0
    %1251 = vmatprep.subr.mxu0 0.0
    %1252 = vmatpush1.msra.mxu0 0.0
    %1253 = vmatprep.subr.mxu0 0.0
    %1254 = vmatpush1.msra.mxu0 0.0
    %1255 = vmatprep.subr.mxu0 0.0
    %1256 = vmatpush1.msra.mxu0 0.0
    %1257 = vmatprep.subr.mxu0 0.0
    %1258 = vmatpush1.msra.mxu0 0.0
    %1259 = vmatprep.subr.mxu0 0.0
    %1260 = vmatpush1.msra.mxu0 0.0
    %1261 = vmatprep.subr.mxu0 0.0
    %1262 = vmatpush1.msra.mxu0 0.0
    %1263 = vmatprep.subr.mxu0 0.0
    %1264 = vmatpush1.msra.mxu0 0.0
    %1265 = vmatprep.subr.mxu0 0.0
    %1266 = vmatpush1.msra.mxu0 0.0
    %1267 = vmatprep.subr.mxu0 0.0
    %1268 = vmatpush1.msra.mxu0 0.0
    %1269 = vmatprep.subr.mxu0 0.0
    %1270 = vmatpush1.msra.mxu0 0.0
    %1271 = vmatprep.subr.mxu0 0.0
    %1272 = vmatpush1.msra.mxu0 0.0
    %1273 = vmatprep.subr.mxu0 0.0
    %1274 = vmatpush1.msra.mxu0 0.0
    %1275 = vmatprep.subr.mxu0 0.0
    %1276 = vmatpush1.msra.mxu0 0.0
    %1277 = vmatprep.subr.mxu0 0.0
    %1278 = vmatpush1.msra.mxu0 0.0
    %1279 = vmatprep.subr.mxu0 0.0
    %1280 = vmatpush1.msra.mxu0 0.0
    %1281 = vmatprep.subr.mxu0 0.0
    %1282 = vmatpush1.msra.mxu0 0.0
    %1283 = vmatprep.subr.mxu0 0.0
    %1284 = vmatpush1.msra.mxu0 0.0
    %1285 = vmatprep.subr.mxu0 0.0
    %1286 = vmatpush1.msra.mxu0 0.0
    %1287 = vmatprep.subr.mxu0 0.0
    %1288 = vmatpush1.msra.mxu0 0.0
    %1289 = vmatprep.subr.mxu0 0.0
    %1290 = vmatpush1.msra.mxu0 0.0
    %1291 = vmatprep.subr.mxu0 0.0
    %1292 = vmatpush1.msra.mxu0 0.0
    %1293 = vmatprep.subr.mxu0 0.0
    %1294 = vmatpush1.msra.mxu0 0.0
    %1295 = vmatprep.subr.mxu0 0.0
    %1296 = vmatpush1.msra.mxu0 0.0
    %1297 = vmatprep.subr.mxu0 0.0
    %1298 = vmatpush1.msra.mxu0 0.0
    %1299 = vmatprep.mubr.f32.mxu0 0.0
    %1300 = vmatmul.mubr.f32.gmra.mrb[0].mxu0 %v1233
    %v1301 = vpop.f32.mrb[0].mxu0
    %v1302 = vadd.f32 %v25, %v1301
    %v1303 = vpop.f32.mrb[0].mxu0
    %1304 = vdwg.mxu0
    %v1305 = vld [vmem:[%s269] sm:$0xf]
    %v1306 = vld [vmem:[%s267] sm:$0xf]
    %v1307 = vadd.f32 %v1305, %v1302
    %v1308 = vxor.u32 %v1307, 2147483648
    %v1309 = vmul.f32 %v1308, 1.442695
    %v1310 = vpow.pop %v1309
    %v1311 = vadd.f32 %v1310, 1.0
    %v1312 = vrcp.pop %v1311
    %v1313 = vmul.f32 1.0, %v1312
    %1315 = vrot.lane.b32.xlu0 %v1302, 112
    %v1316 = vpop.permute.xlu0 %1315
    %v1318 = vmul.f32 %v1313, %v1316
    %1320 = vrot.lane.b32.xlu0 %v1318, 16
    %v1321 = vpop.permute.xlu0 %1320
    %v1323 = vadd.f32 %v1305, %v1321
    %v1324 = vtanh.pop %v1323
    %v1325 = vsub.f32 1.0, %v1313
    %1327 = vrot.lane.b32.xlu0 %v1324, 120
    %v1328 = vpop.permute.xlu0 %1327
    %v1330 = vmul.f32 %v1325, %v1328
    %v1331 = vmul.f32 %v1313, %v1186
    %v1332 = vadd.f32 %v1330, %v1331
    %v1333 = vadd.f32 %v1306, %v1302
    %v1334 = vxor.u32 %v1333, 2147483648
    %v1335 = vmul.f32 %v1334, 1.442695
    %v1336 = vpow.pop %v1335
    %v1337 = vadd.f32 %v1336, 1.0
    %v1338 = vrcp.pop %v1337
    %v1339 = vmul.f32 1.0, %v1338
    %v1340 = vmul.f32 %v1339, %v1316
    %1342 = vrot.lane.b32.xlu0 %v1340, 16
    %v1343 = vpop.permute.xlu0 %1342
    %v1345 = vadd.f32 %v1306, %v1343
    %v1346 = vtanh.pop %v1345
    %v1347 = vsub.f32 1.0, %v1339
    %1349 = vrot.lane.b32.xlu0 %v1346, 120
    %v1350 = vpop.permute.xlu0 %1349
    %v1352 = vmul.f32 %v1347, %v1350
    %v1353 = vmul.f32 %v1339, %v1208
    %v1354 = vadd.f32 %v1352, %v1353
    %v1355 = vmax.f32 %v1332, -5.0
    %v1356 = vmin.f32 %v1355, 5.0
    %v1357 = vmax.f32 %v1354, -5.0
    %v1358 = vmin.f32 %v1357, 5.0
    %1360 = vrot.lane.b32.xlu0 %v1356, 120
    %v1361 = vpop.permute.xlu0 %1360
    %1363 = vst.msk [vmem:[%s333] sm:$0xf] %vm176, %v1361
    %1365 = vrot.lane.b32.xlu0 %v1358, 104
    %v1366 = vpop.permute.xlu0 %1365
    %1368 = vst.msk [vmem:[%s327] sm:$0xf] %vm183, %v1366
    %1370 = vrot.lane.b32.xlu0 %v1332, 120
    %v1371 = vpop.permute.xlu0 %1370
    %1374 = vrot.lane.b32.xlu0 %v1354, 104
    %v1375 = vpop.permute.xlu0 %1374
    %v1377 = vsel %vm34, %v1371, %v1375
    %v1379 = vsel %vm36, %v1377, 0
    %1381 = vmatprep.subr.mxu0 0.0
    %1382 = vmatpush1.msra.mxu0 %v18
    %1383 = vmatprep.subr.mxu0 0.0
    %1384 = vmatpush1.msra.mxu0 %v19
    %1385 = vmatprep.subr.mxu0 0.0
    %1386 = vmatpush1.msra.mxu0 0.0
    %1387 = vmatprep.subr.mxu0 0.0
    %1388 = vmatpush1.msra.mxu0 0.0
    %1389 = vmatprep.subr.mxu0 0.0
    %1390 = vmatpush1.msra.mxu0 0.0
    %1391 = vmatprep.subr.mxu0 0.0
    %1392 = vmatpush1.msra.mxu0 0.0
    %1393 = vmatprep.subr.mxu0 0.0
    %1394 = vmatpush1.msra.mxu0 0.0
    %1395 = vmatprep.subr.mxu0 0.0
    %1396 = vmatpush1.msra.mxu0 0.0
    %1397 = vmatprep.subr.mxu0 0.0
    %1398 = vmatpush1.msra.mxu0 0.0
    %1399 = vmatprep.subr.mxu0 0.0
    %1400 = vmatpush1.msra.mxu0 0.0
    %1401 = vmatprep.subr.mxu0 0.0
    %1402 = vmatpush1.msra.mxu0 0.0
    %1403 = vmatprep.subr.mxu0 0.0
    %1404 = vmatpush1.msra.mxu0 0.0
    %1405 = vmatprep.subr.mxu0 0.0
    %1406 = vmatpush1.msra.mxu0 0.0
    %1407 = vmatprep.subr.mxu0 0.0
    %1408 = vmatpush1.msra.mxu0 0.0
    %1409 = vmatprep.subr.mxu0 0.0
    %1410 = vmatpush1.msra.mxu0 0.0
    %1411 = vmatprep.subr.mxu0 0.0
    %1412 = vmatpush1.msra.mxu0 0.0
    %1413 = vmatprep.subr.mxu0 0.0
    %1414 = vmatpush1.msra.mxu0 0.0
    %1415 = vmatprep.subr.mxu0 0.0
    %1416 = vmatpush1.msra.mxu0 0.0
    %1417 = vmatprep.subr.mxu0 0.0
    %1418 = vmatpush1.msra.mxu0 0.0
    %1419 = vmatprep.subr.mxu0 0.0
    %1420 = vmatpush1.msra.mxu0 0.0
    %1421 = vmatprep.subr.mxu0 0.0
    %1422 = vmatpush1.msra.mxu0 0.0
    %1423 = vmatprep.subr.mxu0 0.0
    %1424 = vmatpush1.msra.mxu0 0.0
    %1425 = vmatprep.subr.mxu0 0.0
    %1426 = vmatpush1.msra.mxu0 0.0
    %1427 = vmatprep.subr.mxu0 0.0
    %1428 = vmatpush1.msra.mxu0 0.0
    %1429 = vmatprep.subr.mxu0 0.0
    %1430 = vmatpush1.msra.mxu0 0.0
    %1431 = vmatprep.subr.mxu0 0.0
    %1432 = vmatpush1.msra.mxu0 0.0
    %1433 = vmatprep.subr.mxu0 0.0
    %1434 = vmatpush1.msra.mxu0 0.0
    %1435 = vmatprep.subr.mxu0 0.0
    %1436 = vmatpush1.msra.mxu0 0.0
    %1437 = vmatprep.subr.mxu0 0.0
    %1438 = vmatpush1.msra.mxu0 0.0
    %1439 = vmatprep.subr.mxu0 0.0
    %1440 = vmatpush1.msra.mxu0 0.0
    %1441 = vmatprep.subr.mxu0 0.0
    %1442 = vmatpush1.msra.mxu0 0.0
    %1443 = vmatprep.subr.mxu0 0.0
    %1444 = vmatpush1.msra.mxu0 0.0
    %1445 = vmatprep.mubr.f32.mxu0 0.0
    %1446 = vmatmul.mubr.f32.gmra.mrb[0].mxu0 %v1379
    %v1447 = vpop.f32.mrb[0].mxu0
    %v1448 = vadd.f32 %v25, %v1447
    %v1449 = vpop.f32.mrb[0].mxu0
    %1450 = vdwg.mxu0
    %v1451 = vld [vmem:[%s111] sm:$0xf]
    %v1452 = vld [vmem:[%s0] sm:$0xf]
    %v1453 = vadd.f32 %v1451, %v1448
    %v1454 = vxor.u32 %v1453, 2147483648
    %v1455 = vmul.f32 %v1454, 1.442695
    %v1456 = vpow.pop %v1455
    %v1457 = vadd.f32 %v1456, 1.0
    %v1458 = vrcp.pop %v1457
    %v1459 = vmul.f32 1.0, %v1458
    %1461 = vrot.lane.b32.xlu0 %v1448, 112
    %v1462 = vpop.permute.xlu0 %1461
    %v1464 = vmul.f32 %v1459, %v1462
    %1466 = vrot.lane.b32.xlu0 %v1464, 16
    %v1467 = vpop.permute.xlu0 %1466
    %v1469 = vadd.f32 %v1451, %v1467
    %v1470 = vtanh.pop %v1469
    %v1471 = vsub.f32 1.0, %v1459
    %1473 = vrot.lane.b32.xlu0 %v1470, 120
    %v1474 = vpop.permute.xlu0 %1473
    %v1476 = vmul.f32 %v1471, %v1474
    %v1477 = vmul.f32 %v1459, %v1332
    %v1478 = vadd.f32 %v1476, %v1477
    %v1479 = vadd.f32 %v1452, %v1448
    %v1480 = vxor.u32 %v1479, 2147483648
    %v1481 = vmul.f32 %v1480, 1.442695
    %v1482 = vpow.pop %v1481
    %v1483 = vadd.f32 %v1482, 1.0
    %v1484 = vrcp.pop %v1483
    %v1485 = vmul.f32 1.0, %v1484
    %v1486 = vmul.f32 %v1485, %v1462
    %1488 = vrot.lane.b32.xlu0 %v1486, 16
    %v1489 = vpop.permute.xlu0 %1488
    %v1491 = vadd.f32 %v1452, %v1489
    %v1492 = vtanh.pop %v1491
    %v1493 = vsub.f32 1.0, %v1485
    %1495 = vrot.lane.b32.xlu0 %v1492, 120
    %v1496 = vpop.permute.xlu0 %1495
    %v1498 = vmul.f32 %v1493, %v1496
    %v1499 = vmul.f32 %v1485, %v1354
    %v1500 = vadd.f32 %v1498, %v1499
    %v1501 = vmax.f32 %v1478, -5.0
    %v1502 = vmin.f32 %v1501, 5.0
    %v1503 = vmax.f32 %v1500, -5.0
    %v1504 = vmin.f32 %v1503, 5.0
    %1506 = vrot.lane.b32.xlu0 %v1502, 120
    %v1507 = vpop.permute.xlu0 %1506
    %1509 = vst.msk [vmem:[%s182] sm:$0xf] %vm176, %v1507
    %1511 = vrot.lane.b32.xlu0 %v1504, 104
    %v1512 = vpop.permute.xlu0 %1511
    %1514 = vst.msk [vmem:[#allocation2] sm:$0xf] %vm183, %v1512
    // Predicated region
    $region18: #{lfads_encoder_forward.3} parent=1 // pred_check
      _
    $region19: #{lfads_encoder_forward.3} parent=1 // pred_check_branch
      %1516 = sbr.rel (0) target = $region21
    $region20: #{lfads_encoder_forward.3} parent=1 // pred_region
      %s1518 = ssub.s32 640, 640
      %1519 = vsyncadd [#allocation3], %s1518
      %s1520 = sshll.u32 [#allocation2], 4
      %s1521 = int_to_ptr.vmem [resolvable:$true] %s1520
      %1526 = dma.vmem_to_hbm [thread:$0]  %s1521, 640, %s4, [#allocation3], 64, 64, 4
    $region21: #{lfads_encoder_forward.3} parent=1 // pred_fallthru
      _
    // Predicated region
    $region22: #{lfads_encoder_forward.3} parent=1 // pred_check
      _
    $region23: #{lfads_encoder_forward.3} parent=1 // pred_check_branch
      %1528 = sbr.rel (0) target = $region25
    $region24: #{lfads_encoder_forward.3} parent=1 // pred_region
      %1529 = dma.done [#allocation3], 640
    $region25: #{lfads_encoder_forward.3} parent=1 // pred_fallthru
      _
    %1530 = vsyncpa [#allocation3], 1

</llo_original>
